<compile_context>
chip_gen: v7x
topology: tpu7x:2x2x1
jax: 0.10.0
libtpu: 0.0.40
codegen_flags: <defaults>
</compile_context>

<pallas_src>
import functools

import jax
import jax.numpy as jnp
from jax.experimental import pallas as pl
from jax.experimental.pallas import tpu as pltpu

# Module defaults (TransformerForecaster.__init__)
D_MODEL = 128
NHEAD = 8
HEAD_DIM = D_MODEL // NHEAD
D_FF = 256
NUM_LAYERS = 3
LN_EPS = 1e-5

# vec-slab row layout (per encoder layer); every row is 128 lanes wide:
#   0..2 : in_proj bias (q / k / v 128-lane chunks)
#   3    : out_proj bias
#   4,5  : LayerNorm1 gamma, beta
#   6,7  : linear1 bias (d_ff = 256 -> two rows)
#   8    : linear2 bias
#   9,10 : LayerNorm2 gamma, beta
VEC_ROWS = 11


def _batch_tile(B, S):
    """Batch elements per grid step.  TB must divide B and keep the output
    block sublane-legal (TB == B or TB % 8 == 0); target <= ~512 rows."""
    for tb in range(B, 0, -1):
        if B % tb == 0 and tb * S <= 512 and (tb == B or tb % 8 == 0):
            return tb
    return B


def _layernorm(x, gamma, beta, eps):
    mean = jnp.mean(x, axis=-1, keepdims=True)
    var = jnp.mean(jnp.square(x - mean), axis=-1, keepdims=True)
    return (x - mean) * jax.lax.rsqrt(var + eps) * gamma + beta


# ------------------------- The fused kernel -------------------------

def _forecaster_kernel(x_ref, in_w_ref, wqkv_ref, wo_ref, w1_ref, w2_ref,
                       vec_ref, dec1_w_ref, dec2_w_ref, misc_ref,
                       o_ref, h_ref, *, TB, S, n_out, scale, eps):
    """Grid point (bt, l): encoder layer `l` for batch tile `bt`.

    h_ref: VMEM scratch (TB*S, D_MODEL) f32, resident across the layer axis.
    Matmul weights are bf16, pre-transposed to (K, N); everything else f32.
    """
    l = pl.program_id(1)
    misc = misc_ref[...]                                   # (3, 128) f32

    # ---- input projection (once per batch tile, at layer step 0) ----
    @pl.when(l == 0)
    def _():
        h_ref[...] = jnp.dot(x_ref[...], in_w_ref[...],
                             preferred_element_type=jnp.float32) + misc[0:1, :]

    h = h_ref[...]                                         # (M, 128) f32
    vec = vec_ref[0]                                       # (11, 128) f32
    wqkv = wqkv_ref[0]                                     # (128, 384) bf16
    wo = wo_ref[0]                                         # (128, 128) bf16
    w1 = w1_ref[0]                                         # (128, 256) bf16
    w2 = w2_ref[0]                                         # (256, 128) bf16
    M = TB * S

    # ---- fused QKV projection (one wide N=384 matmul) ----
    qkv = jnp.dot(h.astype(jnp.bfloat16), wqkv,
                  preferred_element_type=jnp.float32)      # (M, 384)
    q = qkv[:, :D_MODEL] + vec[0:1, :]
    k = qkv[:, D_MODEL:2 * D_MODEL] + vec[1:2, :]
    v = qkv[:, 2 * D_MODEL:] + vec[2:3, :]

    # ---- multi-head attention: batched-over-batch dot_generals per head,
    #      out_proj folded per head (no lane concatenate) ----
    attn = None
    for hh in range(NHEAD):
        lo = hh * HEAD_DIM
        qh = q[:, lo:lo + HEAD_DIM].astype(jnp.bfloat16).reshape(TB, S, HEAD_DIM)
        kh = k[:, lo:lo + HEAD_DIM].astype(jnp.bfloat16).reshape(TB, S, HEAD_DIM)
        vh = v[:, lo:lo + HEAD_DIM].astype(jnp.bfloat16).reshape(TB, S, HEAD_DIM)
        s = jnp.einsum('bqd,bkd->bqk', qh, kh,
                       preferred_element_type=jnp.float32) * scale   # (TB,S,S)
        m = jnp.max(s, axis=-1, keepdims=True)
        p = jnp.exp(s - m)
        # approx reciprocal on the EUP (~1e-3 rel err vs exact divide)
        p = p * pl.reciprocal(jnp.sum(p, axis=-1, keepdims=True), approx=True)
        ah = jnp.einsum('bqk,bkd->bqd', p.astype(jnp.bfloat16), vh,
                        preferred_element_type=jnp.float32)          # (TB,S,Dh)
        # fold this head straight through its slice of W_out -> (M, 128)
        contrib = jnp.dot(ah.reshape(M, HEAD_DIM).astype(jnp.bfloat16),
                          wo[lo:lo + HEAD_DIM, :],
                          preferred_element_type=jnp.float32)
        attn = contrib if attn is None else attn + contrib
    attn = attn + vec[3:4, :]                               # out_proj bias

    # TODO(synk): dropout(p=0.1) omitted (eval-mode identity semantics).
    h1 = _layernorm(h + attn, vec[4:5, :], vec[5:6, :], eps)

    # ---- FFN (ReLU) + residual + LayerNorm 2 ----
    bff1 = jnp.concatenate([vec[6:7, :], vec[7:8, :]], axis=-1)      # (1, 256)
    ff = jnp.dot(h1.astype(jnp.bfloat16), w1,
                 preferred_element_type=jnp.float32) + bff1
    ff = jnp.maximum(ff, 0.0)
    ff = jnp.dot(ff.astype(jnp.bfloat16), w2,
                 preferred_element_type=jnp.float32) + vec[8:9, :]
    h2 = _layernorm(h1 + ff, vec[9:10, :], vec[10:11, :], eps)
    h_ref[...] = h2

    # ---- last-token selection + decoder, fused (only at the last layer) ----
    @pl.when(l == pl.num_programs(1) - 1)
    def _():
        rows = [h2[(b + 1) * S - 1:(b + 1) * S, :] for b in range(TB)]
        last = rows[0] if TB == 1 else jnp.concatenate(rows, axis=0)  # (TB,128)
        d = jnp.dot(last.astype(jnp.bfloat16), dec1_w_ref[...],
                    preferred_element_type=jnp.float32) + misc[1:2, :]
        d = jnp.maximum(d, 0.0)
        o_ref[...] = jnp.dot(d.astype(jnp.bfloat16), dec2_w_ref[...],
                             preferred_element_type=jnp.float32) + misc[2:3, :n_out]


# ------------------------- Model wrapper -------------------------

@jax.jit
def transformer_forecaster(x, kp):
    """x: (B, S, F) batch-first f32, kp: prepared (kernel-layout) params."""
    B, S, F = x.shape
    n_out = kp["dec2_w"].shape[1]
    TB = _batch_tile(B, S)
    assert B % TB == 0
    scale = 1.0 / (HEAD_DIM ** 0.5)

    kernel = functools.partial(_forecaster_kernel, TB=TB, S=S, n_out=n_out,
                               scale=scale, eps=LN_EPS)

    out = pl.pallas_call(
        kernel,
        out_shape=jax.ShapeDtypeStruct((B, n_out), jnp.float32),
        grid=(B // TB, NUM_LAYERS),
        in_specs=[
            pl.BlockSpec((TB * S, F), lambda bt, l: (bt, 0)),             # x (bf16)
            pl.BlockSpec((F, D_MODEL), lambda bt, l: (0, 0)),             # in_w
            pl.BlockSpec((1, D_MODEL, 3 * D_MODEL), lambda bt, l: (l, 0, 0)),  # wqkv
            pl.BlockSpec((1, D_MODEL, D_MODEL), lambda bt, l: (l, 0, 0)),      # wo
            pl.BlockSpec((1, D_MODEL, D_FF), lambda bt, l: (l, 0, 0)),         # w1
            pl.BlockSpec((1, D_FF, D_MODEL), lambda bt, l: (l, 0, 0)),         # w2
            pl.BlockSpec((1, VEC_ROWS, 128), lambda bt, l: (l, 0, 0)),     # vec slab
            pl.BlockSpec((D_MODEL, 128), lambda bt, l: (0, 0)),            # dec1_w
            pl.BlockSpec((128, n_out), lambda bt, l: (0, 0)),              # dec2_w
            pl.BlockSpec((3, 128), lambda bt, l: (0, 0)),                  # misc slab
        ],
        out_specs=pl.BlockSpec((TB, n_out), lambda bt, l: (bt, 0)),
        scratch_shapes=[pltpu.VMEM((TB * S, D_MODEL), jnp.float32)],
        compiler_params=pltpu.CompilerParams(
            dimension_semantics=("parallel", "arbitrary")),
    )(x.reshape(B * S, F).astype(jnp.bfloat16),
      kp["in_w"], kp["wqkv_s"], kp["wo_s"], kp["w1_s"], kp["w2_s"],
      kp["vec_s"], kp["dec1_w"], kp["dec2_w"], kp["misc"])

    return out[:, :, None]                                          # unsqueeze(-1)


# ------------------------- Parameters -------------------------

def init_params(key, n_features, n_outputs):
    """torch.nn layout: Linear weights are (out, in)."""
    def dense(k, n_out, n_in, scale=0.05):
        kw, kb = jax.random.split(k)
        return (scale * jax.random.normal(kw, (n_out, n_in), jnp.float32),
                scale * jax.random.normal(kb, (n_out,), jnp.float32))

    keys = jax.random.split(key, 3 + NUM_LAYERS)
    params = {}
    params["in_w"], params["in_b"] = dense(keys[0], D_MODEL, n_features)
    params["dec1_w"], params["dec1_b"] = dense(keys[1], 128, D_MODEL)
    params["dec2_w"], params["dec2_b"] = dense(keys[2], n_outputs, 128)
    layers = []
    for li in range(NUM_LAYERS):
        lk = jax.random.split(keys[3 + li], 4)
        lp = {}
        lp["in_proj_w"], lp["in_proj_b"] = dense(lk[0], 3 * D_MODEL, D_MODEL)
        lp["out_proj_w"], lp["out_proj_b"] = dense(lk[1], D_MODEL, D_MODEL)
        lp["lin1_w"], lp["lin1_b"] = dense(lk[2], D_FF, D_MODEL)
        lp["lin2_w"], lp["lin2_b"] = dense(lk[3], D_MODEL, D_FF)
        lp["ln1_g"] = jnp.ones((D_MODEL,), jnp.float32)
        lp["ln1_b"] = jnp.zeros((D_MODEL,), jnp.float32)
        lp["ln2_g"] = jnp.ones((D_MODEL,), jnp.float32)
        lp["ln2_b"] = jnp.zeros((D_MODEL,), jnp.float32)
        layers.append(lp)
    params["layers"] = layers
    return params


def prepare_params(params):
    """Kernel layout: matmul weights pre-transposed to (K, N) bf16, per-layer
    weights stacked on a leading NUM_LAYERS axis, tiny vectors packed into
    f32 slabs."""
    def wT(w):
        return jnp.asarray(w.T, jnp.bfloat16)

    def f32(v):
        return jnp.asarray(v, jnp.float32)

    n_out = params["dec2_w"].shape[0]
    dec2_b_pad = jnp.zeros((128,), jnp.float32).at[:n_out].set(f32(params["dec2_b"]))
    misc = jnp.stack([f32(params["in_b"]), f32(params["dec1_b"]), dec2_b_pad])

    wqkv_s, wo_s, w1_s, w2_s, vec_s = [], [], [], [], []
    for lp in params["layers"]:
        wqkv_s.append(wT(lp["in_proj_w"]))          # (128, 384)
        wo_s.append(wT(lp["out_proj_w"]))           # (128, 128)
        w1_s.append(wT(lp["lin1_w"]))               # (128, 256)
        w2_s.append(wT(lp["lin2_w"]))               # (256, 128)
        b_qkv = f32(lp["in_proj_b"])
        b_ff1 = f32(lp["lin1_b"])
        vec_s.append(jnp.stack([
            b_qkv[:128], b_qkv[128:256], b_qkv[256:384],
            f32(lp["out_proj_b"]),
            f32(lp["ln1_g"]), f32(lp["ln1_b"]),
            b_ff1[:128], b_ff1[128:256],
            f32(lp["lin2_b"]),
            f32(lp["ln2_g"]), f32(lp["ln2_b"]),
        ]))                                          # (11, 128)

    return {
        "in_w": wT(params["in_w"]),
        "dec1_w": wT(params["dec1_w"]),
        "dec2_w": wT(params["dec2_w"]),
        "misc": misc,
        "wqkv_s": jnp.stack(wqkv_s),
        "wo_s": jnp.stack(wo_s),
        "w1_s": jnp.stack(w1_s),
        "w2_s": jnp.stack(w2_s),
        "vec_s": jnp.stack(vec_s),
    }


# ------------------------- Pure-JAX reference -------------------------

def ref_forward(x, params):
    B, S, F = x.shape

    def lin(t, w, b):
        return t @ w.T + b

    def ln(t, g, b):
        m = t.mean(-1, keepdims=True)
        v = jnp.square(t - m).mean(-1, keepdims=True)
        return (t - m) / jnp.sqrt(v + LN_EPS) * g + b

    h = lin(x, params["in_w"], params["in_b"])
    h = jnp.transpose(h, (1, 0, 2))                                  # (S, B, E)
    for lp in params["layers"]:
        qkv = lin(h, lp["in_proj_w"], lp["in_proj_b"])
        q, k, v = jnp.split(qkv, 3, axis=-1)

        def heads(t):
            return jnp.transpose(t.reshape(S, B, NHEAD, HEAD_DIM), (1, 2, 0, 3))

        qh, kh, vh = heads(q), heads(k), heads(v)
        s = jnp.einsum("bhqd,bhkd->bhqk", qh, kh) / jnp.sqrt(float(HEAD_DIM))
        p = jax.nn.softmax(s, axis=-1)
        a = jnp.einsum("bhqk,bhkd->bhqd", p, vh)
        a = jnp.transpose(a, (2, 0, 1, 3)).reshape(S, B, D_MODEL)
        a = lin(a, lp["out_proj_w"], lp["out_proj_b"])
        h = ln(h + a, lp["ln1_g"], lp["ln1_b"])
        ff = lin(jax.nn.relu(lin(h, lp["lin1_w"], lp["lin1_b"])),
                 lp["lin2_w"], lp["lin2_b"])
        h = ln(h + ff, lp["ln2_g"], lp["ln2_b"])
    out = h[-1]
    y = lin(jax.nn.relu(lin(out, params["dec1_w"], params["dec1_b"])),
            params["dec2_w"], params["dec2_b"])
    return y[:, :, None]


# ------------------------- Main -------------------------

if __name__ == "__main__":
    key = jax.random.PRNGKey(0)
    kx, kparam = jax.random.split(key)

    B, S, F, n_outputs = 2, 8, 16, 4
    x = jax.random.normal(kx, (B, S, F), jnp.float32)
    params = init_params(kparam, F, n_outputs)
    kparams = prepare_params(params)

    out = transformer_forecaster(x, kparams)
    out = jax.block_until_ready(out)
    assert out.shape == (B, n_outputs, 1), out.shape

    ref = jax.block_until_ready(ref_forward(x, params))
    assert bool(jnp.all(jnp.isfinite(out)))
    assert bool(jnp.allclose(out, ref, atol=1e-1, rtol=1e-1)), \
        float(jnp.max(jnp.abs(out - ref)))

    print("KERNEL_OK")
</pallas_src>

<mosaic_0001>
module attributes {stable_mosaic.version = 11 : i64} {
  func.func @_forecaster_kernel(%arg0: i32, %arg1: i32, %arg2: memref<16x16xbf16, #tpu.memory_space<vmem>>, %arg3: memref<16x128xbf16, #tpu.memory_space<vmem>>, %arg4: memref<1x128x384xbf16, #tpu.memory_space<vmem>>, %arg5: memref<1x128x128xbf16, #tpu.memory_space<vmem>>, %arg6: memref<1x128x256xbf16, #tpu.memory_space<vmem>>, %arg7: memref<1x256x128xbf16, #tpu.memory_space<vmem>>, %arg8: memref<1x11x128xf32, #tpu.memory_space<vmem>>, %arg9: memref<128x128xbf16, #tpu.memory_space<vmem>>, %arg10: memref<128x4xbf16, #tpu.memory_space<vmem>>, %arg11: memref<3x128xf32, #tpu.memory_space<vmem>>, %arg12: memref<2x4xf32, #tpu.memory_space<vmem>>, %arg13: memref<16x128xf32, #tpu.memory_space<vmem>>) attributes {dimension_semantics = [#tpu.dimension_semantics<parallel>, #tpu.dimension_semantics<arbitrary>], iteration_bounds = array<i64: 1, 3>, scalar_prefetch = 0 : i64, scratch_operands = 1 : i64, tpu.core_type = #tpu.core_type<tc>, window_params = [{transform_indices = @transform_0, window_bounds = array<i64: 16, 16>}, {pipeline_mode = #tpu.pipeline_mode<synchronous>, transform_indices = @transform_1, window_bounds = array<i64: 16, 128>}, {transform_indices = @transform_2, window_bounds = array<i64: 1, 128, 384>}, {transform_indices = @transform_3, window_bounds = array<i64: 1, 128, 128>}, {transform_indices = @transform_4, window_bounds = array<i64: 1, 128, 256>}, {transform_indices = @transform_5, window_bounds = array<i64: 1, 256, 128>}, {transform_indices = @transform_6, window_bounds = array<i64: 1, 11, 128>}, {pipeline_mode = #tpu.pipeline_mode<synchronous>, transform_indices = @transform_7, window_bounds = array<i64: 128, 128>}, {pipeline_mode = #tpu.pipeline_mode<synchronous>, transform_indices = @transform_8, window_bounds = array<i64: 128, 4>}, {pipeline_mode = #tpu.pipeline_mode<synchronous>, transform_indices = @transform_9, window_bounds = array<i64: 3, 128>}, {transform_indices = @transform_10, window_bounds = array<i64: 2, 4>}]} {
    %c0 = arith.constant 0 : index
    %c0_0 = arith.constant 0 : index
    %0 = vector.load %arg11[%c0, %c0_0] : memref<3x128xf32, #tpu.memory_space<vmem>>, vector<3x128xf32>
    %c0_i32 = arith.constant 0 : i32
    %1 = arith.cmpi eq, %arg1, %c0_i32 : i32
    %2 = arith.extui %1 : i1 to i32
    %c0_i32_1 = arith.constant 0 : i32
    %3 = arith.cmpi ne, %2, %c0_i32_1 : i32
    scf.if %3 {
      %c0_83 = arith.constant 0 : index
      %c0_84 = arith.constant 0 : index
      %331 = vector.load %arg2[%c0_83, %c0_84] : memref<16x16xbf16, #tpu.memory_space<vmem>>, vector<16x16xbf16>
      %c0_85 = arith.constant 0 : index
      %c0_86 = arith.constant 0 : index
      %332 = vector.load %arg3[%c0_85, %c0_86] : memref<16x128xbf16, #tpu.memory_space<vmem>>, vector<16x128xbf16>
      %cst_87 = arith.constant dense<0.000000e+00> : vector<16x128xf32>
      %333 = tpu.matmul %331, %332, %cst_87 {dimension_numbers = #tpu.dot_dimension_numbers<[1], [0], [0], [1], [0, 0, 1, 1], [], []>} : vector<16x16xbf16>, vector<16x128xbf16>, vector<16x128xf32> -> vector<16x128xf32>
      %334 = vector.extract_strided_slice %0 {offsets = [0, 0], sizes = [1, 128], strides = [1, 1]} : vector<3x128xf32> to vector<1x128xf32>
      %335 = vector.broadcast %334 : vector<1x128xf32> to vector<16x128xf32>
      %336 = arith.addf %333, %335 : vector<16x128xf32>
      %c0_88 = arith.constant 0 : index
      %c0_89 = arith.constant 0 : index
      %337 = vector.load %arg13[%c0_88, %c0_89] : memref<16x128xf32, #tpu.memory_space<vmem>>, vector<16x128xf32>
      tpu.vector_store %arg13[%c0_88, %c0_89], %336 {strides = array<i32>} : memref<16x128xf32, #tpu.memory_space<vmem>>, vector<16x128xf32>,
    } else {
    }
    %c0_2 = arith.constant 0 : index
    %c0_3 = arith.constant 0 : index
    %4 = vector.load %arg13[%c0_2, %c0_3] : memref<16x128xf32, #tpu.memory_space<vmem>>, vector<16x128xf32>
    %c0_4 = arith.constant 0 : index
    %c0_5 = arith.constant 0 : index
    %c0_6 = arith.constant 0 : index
    %5 = vector.load %arg8[%c0_4, %c0_5, %c0_6] : memref<1x11x128xf32, #tpu.memory_space<vmem>>, vector<1x11x128xf32>
    %6 = vector.shape_cast %5 : vector<1x11x128xf32> to vector<11x128xf32>
    %c0_7 = arith.constant 0 : index
    %c0_8 = arith.constant 0 : index
    %c0_9 = arith.constant 0 : index
    %7 = vector.load %arg4[%c0_7, %c0_8, %c0_9] : memref<1x128x384xbf16, #tpu.memory_space<vmem>>, vector<1x128x384xbf16>
    %8 = vector.shape_cast %7 : vector<1x128x384xbf16> to vector<128x384xbf16>
    %c0_10 = arith.constant 0 : index
    %c0_11 = arith.constant 0 : index
    %c0_12 = arith.constant 0 : index
    %9 = vector.load %arg5[%c0_10, %c0_11, %c0_12] : memref<1x128x128xbf16, #tpu.memory_space<vmem>>, vector<1x128x128xbf16>
    %10 = vector.shape_cast %9 : vector<1x128x128xbf16> to vector<128x128xbf16>
    %c0_13 = arith.constant 0 : index
    %c0_14 = arith.constant 0 : index
    %c0_15 = arith.constant 0 : index
    %11 = vector.load %arg6[%c0_13, %c0_14, %c0_15] : memref<1x128x256xbf16, #tpu.memory_space<vmem>>, vector<1x128x256xbf16>
    %12 = vector.shape_cast %11 : vector<1x128x256xbf16> to vector<128x256xbf16>
    %c0_16 = arith.constant 0 : index
    %c0_17 = arith.constant 0 : index
    %c0_18 = arith.constant 0 : index
    %13 = vector.load %arg7[%c0_16, %c0_17, %c0_18] : memref<1x256x128xbf16, #tpu.memory_space<vmem>>, vector<1x256x128xbf16>
    %14 = vector.shape_cast %13 : vector<1x256x128xbf16> to vector<256x128xbf16>
    %15 = arith.truncf %4 : vector<16x128xf32> to vector<16x128xbf16>
    %cst = arith.constant dense<0.000000e+00> : vector<16x384xf32>
    %16 = tpu.matmul %15, %8, %cst {dimension_numbers = #tpu.dot_dimension_numbers<[1], [0], [0], [1], [0, 0, 1, 1], [], []>} : vector<16x128xbf16>, vector<128x384xbf16>, vector<16x384xf32> -> vector<16x384xf32>
    %17 = vector.extract_strided_slice %16 {offsets = [0, 0], sizes = [16, 128], strides = [1, 1]} : vector<16x384xf32> to vector<16x128xf32>
    %18 = vector.extract_strided_slice %6 {offsets = [0, 0], sizes = [1, 128], strides = [1, 1]} : vector<11x128xf32> to vector<1x128xf32>
    %19 = vector.broadcast %18 : vector<1x128xf32> to vector<16x128xf32>
    %20 = arith.addf %17, %19 : vector<16x128xf32>
    %21 = vector.extract_strided_slice %16 {offsets = [0, 128], sizes = [16, 128], strides = [1, 1]} : vector<16x384xf32> to vector<16x128xf32>
    %22 = vector.extract_strided_slice %6 {offsets = [1, 0], sizes = [1, 128], strides = [1, 1]} : vector<11x128xf32> to vector<1x128xf32>
    %23 = vector.broadcast %22 : vector<1x128xf32> to vector<16x128xf32>
    %24 = arith.addf %21, %23 : vector<16x128xf32>
    %25 = vector.extract_strided_slice %16 {offsets = [0, 256], sizes = [16, 128], strides = [1, 1]} : vector<16x384xf32> to vector<16x128xf32>
    %26 = vector.extract_strided_slice %6 {offsets = [2, 0], sizes = [1, 128], strides = [1, 1]} : vector<11x128xf32> to vector<1x128xf32>
    %27 = vector.broadcast %26 : vector<1x128xf32> to vector<16x128xf32>
    %28 = arith.addf %25, %27 : vector<16x128xf32>
    %29 = vector.extract_strided_slice %20 {offsets = [0, 0], sizes = [16, 16], strides = [1, 1]} : vector<16x128xf32> to vector<16x16xf32>
    %30 = arith.truncf %29 : vector<16x16xf32> to vector<16x16xbf16>
    %31 = vector.shape_cast %30 : vector<16x16xbf16> to vector<2x8x16xbf16>
    %32 = vector.extract_strided_slice %24 {offsets = [0, 0], sizes = [16, 16], strides = [1, 1]} : vector<16x128xf32> to vector<16x16xf32>
    %33 = arith.truncf %32 : vector<16x16xf32> to vector<16x16xbf16>
    %34 = vector.shape_cast %33 : vector<16x16xbf16> to vector<2x8x16xbf16>
    %35 = vector.extract_strided_slice %28 {offsets = [0, 0], sizes = [16, 16], strides = [1, 1]} : vector<16x128xf32> to vector<16x16xf32>
    %36 = arith.truncf %35 : vector<16x16xf32> to vector<16x16xbf16>
    %37 = vector.shape_cast %36 : vector<16x16xbf16> to vector<2x8x16xbf16>
    "tpu.trace_start"() <{level = 10 : i32, message = "bqd,bkd->bqk"}> : () -> ()
    %cst_19 = arith.constant dense<0.000000e+00> : vector<2x8x8xf32>
    %38 = tpu.matmul %31, %34, %cst_19 {dimension_numbers = #tpu.dot_dimension_numbers<[2], [2], [1], [1], [0, 0, 0, 1, 1, 1], [0], [0]>} : vector<2x8x16xbf16>, vector<2x8x16xbf16>, vector<2x8x8xf32> -> vector<2x8x8xf32>
    "tpu.trace_stop"() : () -> ()
    %cst_20 = arith.constant 2.500000e-01 : f32
    %39 = vector.broadcast %cst_20 : f32 to vector<2x8x8xf32>
    %40 = arith.mulf %38, %39 : vector<2x8x8xf32>
    %cst_21 = arith.constant dense<0xFF800000> : vector<2x8xf32>
    %41 = vector.multi_reduction <maximumf>, %40, %cst_21 [2] : vector<2x8x8xf32> to vector<2x8xf32>
    %42 = vector.shape_cast %41 : vector<2x8xf32> to vector<2x8x1xf32>
    %43 = vector.broadcast %42 : vector<2x8x1xf32> to vector<2x8x8xf32>
    %44 = arith.subf %40, %43 : vector<2x8x8xf32>
    %45 = math.exp %44 : vector<2x8x8xf32>
    %cst_22 = arith.constant dense<0.000000e+00> : vector<2x8xf32>
    %46 = vector.multi_reduction <add>, %45, %cst_22 [2] : vector<2x8x8xf32> to vector<2x8xf32>
    %47 = vector.shape_cast %46 : vector<2x8xf32> to vector<2x8x1xf32>
    %48 = tpu.reciprocal %47 {approx = true} : vector<2x8x1xf32> -> vector<2x8x1xf32>
    %49 = vector.broadcast %48 : vector<2x8x1xf32> to vector<2x8x8xf32>
    %50 = arith.mulf %45, %49 : vector<2x8x8xf32>
    %51 = arith.truncf %50 : vector<2x8x8xf32> to vector<2x8x8xbf16>
    "tpu.trace_start"() <{level = 10 : i32, message = "bqk,bkd->bqd"}> : () -> ()
    %cst_23 = arith.constant dense<0.000000e+00> : vector<2x8x16xf32>
    %52 = tpu.matmul %51, %37, %cst_23 {dimension_numbers = #tpu.dot_dimension_numbers<[2], [1], [1], [2], [0, 0, 0, 1, 1, 2], [0], [0]>} : vector<2x8x8xbf16>, vector<2x8x16xbf16>, vector<2x8x16xf32> -> vector<2x8x16xf32>
    "tpu.trace_stop"() : () -> ()
    %53 = vector.shape_cast %52 : vector<2x8x16xf32> to vector<16x16xf32>
    %54 = arith.truncf %53 : vector<16x16xf32> to vector<16x16xbf16>
    %55 = vector.extract_strided_slice %10 {offsets = [0, 0], sizes = [16, 128], strides = [1, 1]} : vector<128x128xbf16> to vector<16x128xbf16>
    %cst_24 = arith.constant dense<0.000000e+00> : vector<16x128xf32>
    %56 = tpu.matmul %54, %55, %cst_24 {dimension_numbers = #tpu.dot_dimension_numbers<[1], [0], [0], [1], [0, 0, 1, 1], [], []>} : vector<16x16xbf16>, vector<16x128xbf16>, vector<16x128xf32> -> vector<16x128xf32>
    %57 = vector.extract_strided_slice %20 {offsets = [0, 16], sizes = [16, 16], strides = [1, 1]} : vector<16x128xf32> to vector<16x16xf32>
    %58 = arith.truncf %57 : vector<16x16xf32> to vector<16x16xbf16>
    %59 = vector.shape_cast %58 : vector<16x16xbf16> to vector<2x8x16xbf16>
    %60 = vector.extract_strided_slice %24 {offsets = [0, 16], sizes = [16, 16], strides = [1, 1]} : vector<16x128xf32> to vector<16x16xf32>
    %61 = arith.truncf %60 : vector<16x16xf32> to vector<16x16xbf16>
    %62 = vector.shape_cast %61 : vector<16x16xbf16> to vector<2x8x16xbf16>
    %63 = vector.extract_strided_slice %28 {offsets = [0, 16], sizes = [16, 16], strides = [1, 1]} : vector<16x128xf32> to vector<16x16xf32>
    %64 = arith.truncf %63 : vector<16x16xf32> to vector<16x16xbf16>
    %65 = vector.shape_cast %64 : vector<16x16xbf16> to vector<2x8x16xbf16>
    "tpu.trace_start"() <{level = 10 : i32, message = "bqd,bkd->bqk"}> : () -> ()
    %cst_25 = arith.constant dense<0.000000e+00> : vector<2x8x8xf32>
    %66 = tpu.matmul %59, %62, %cst_25 {dimension_numbers = #tpu.dot_dimension_numbers<[2], [2], [1], [1], [0, 0, 0, 1, 1, 1], [0], [0]>} : vector<2x8x16xbf16>, vector<2x8x16xbf16>, vector<2x8x8xf32> -> vector<2x8x8xf32>
    "tpu.trace_stop"() : () -> ()
    %cst_26 = arith.constant 2.500000e-01 : f32
    %67 = vector.broadcast %cst_26 : f32 to vector<2x8x8xf32>
    %68 = arith.mulf %66, %67 : vector<2x8x8xf32>
    %cst_27 = arith.constant dense<0xFF800000> : vector<2x8xf32>
    %69 = vector.multi_reduction <maximumf>, %68, %cst_27 [2] : vector<2x8x8xf32> to vector<2x8xf32>
    %70 = vector.shape_cast %69 : vector<2x8xf32> to vector<2x8x1xf32>
    %71 = vector.broadcast %70 : vector<2x8x1xf32> to vector<2x8x8xf32>
    %72 = arith.subf %68, %71 : vector<2x8x8xf32>
    %73 = math.exp %72 : vector<2x8x8xf32>
    %cst_28 = arith.constant dense<0.000000e+00> : vector<2x8xf32>
    %74 = vector.multi_reduction <add>, %73, %cst_28 [2] : vector<2x8x8xf32> to vector<2x8xf32>
    %75 = vector.shape_cast %74 : vector<2x8xf32> to vector<2x8x1xf32>
    %76 = tpu.reciprocal %75 {approx = true} : vector<2x8x1xf32> -> vector<2x8x1xf32>
    %77 = vector.broadcast %76 : vector<2x8x1xf32> to vector<2x8x8xf32>
    %78 = arith.mulf %73, %77 : vector<2x8x8xf32>
    %79 = arith.truncf %78 : vector<2x8x8xf32> to vector<2x8x8xbf16>
    "tpu.trace_start"() <{level = 10 : i32, message = "bqk,bkd->bqd"}> : () -> ()
    %cst_29 = arith.constant dense<0.000000e+00> : vector<2x8x16xf32>
    %80 = tpu.matmul %79, %65, %cst_29 {dimension_numbers = #tpu.dot_dimension_numbers<[2], [1], [1], [2], [0, 0, 0, 1, 1, 2], [0], [0]>} : vector<2x8x8xbf16>, vector<2x8x16xbf16>, vector<2x8x16xf32> -> vector<2x8x16xf32>
    "tpu.trace_stop"() : () -> ()
    %81 = vector.shape_cast %80 : vector<2x8x16xf32> to vector<16x16xf32>
    %82 = arith.truncf %81 : vector<16x16xf32> to vector<16x16xbf16>
    %83 = vector.extract_strided_slice %10 {offsets = [16, 0], sizes = [16, 128], strides = [1, 1]} : vector<128x128xbf16> to vector<16x128xbf16>
    %cst_30 = arith.constant dense<0.000000e+00> : vector<16x128xf32>
    %84 = tpu.matmul %82, %83, %cst_30 {dimension_numbers = #tpu.dot_dimension_numbers<[1], [0], [0], [1], [0, 0, 1, 1], [], []>} : vector<16x16xbf16>, vector<16x128xbf16>, vector<16x128xf32> -> vector<16x128xf32>
    %85 = arith.addf %56, %84 : vector<16x128xf32>
    %86 = vector.extract_strided_slice %20 {offsets = [0, 32], sizes = [16, 16], strides = [1, 1]} : vector<16x128xf32> to vector<16x16xf32>
    %87 = arith.truncf %86 : vector<16x16xf32> to vector<16x16xbf16>
    %88 = vector.shape_cast %87 : vector<16x16xbf16> to vector<2x8x16xbf16>
    %89 = vector.extract_strided_slice %24 {offsets = [0, 32], sizes = [16, 16], strides = [1, 1]} : vector<16x128xf32> to vector<16x16xf32>
    %90 = arith.truncf %89 : vector<16x16xf32> to vector<16x16xbf16>
    %91 = vector.shape_cast %90 : vector<16x16xbf16> to vector<2x8x16xbf16>
    %92 = vector.extract_strided_slice %28 {offsets = [0, 32], sizes = [16, 16], strides = [1, 1]} : vector<16x128xf32> to vector<16x16xf32>
    %93 = arith.truncf %92 : vector<16x16xf32> to vector<16x16xbf16>
    %94 = vector.shape_cast %93 : vector<16x16xbf16> to vector<2x8x16xbf16>
    "tpu.trace_start"() <{level = 10 : i32, message = "bqd,bkd->bqk"}> : () -> ()
    %cst_31 = arith.constant dense<0.000000e+00> : vector<2x8x8xf32>
    %95 = tpu.matmul %88, %91, %cst_31 {dimension_numbers = #tpu.dot_dimension_numbers<[2], [2], [1], [1], [0, 0, 0, 1, 1, 1], [0], [0]>} : vector<2x8x16xbf16>, vector<2x8x16xbf16>, vector<2x8x8xf32> -> vector<2x8x8xf32>
    "tpu.trace_stop"() : () -> ()
    %cst_32 = arith.constant 2.500000e-01 : f32
    %96 = vector.broadcast %cst_32 : f32 to vector<2x8x8xf32>
    %97 = arith.mulf %95, %96 : vector<2x8x8xf32>
    %cst_33 = arith.constant dense<0xFF800000> : vector<2x8xf32>
    %98 = vector.multi_reduction <maximumf>, %97, %cst_33 [2] : vector<2x8x8xf32> to vector<2x8xf32>
    %99 = vector.shape_cast %98 : vector<2x8xf32> to vector<2x8x1xf32>
    %100 = vector.broadcast %99 : vector<2x8x1xf32> to vector<2x8x8xf32>
    %101 = arith.subf %97, %100 : vector<2x8x8xf32>
    %102 = math.exp %101 : vector<2x8x8xf32>
    %cst_34 = arith.constant dense<0.000000e+00> : vector<2x8xf32>
    %103 = vector.multi_reduction <add>, %102, %cst_34 [2] : vector<2x8x8xf32> to vector<2x8xf32>
    %104 = vector.shape_cast %103 : vector<2x8xf32> to vector<2x8x1xf32>
    %105 = tpu.reciprocal %104 {approx = true} : vector<2x8x1xf32> -> vector<2x8x1xf32>
    %106 = vector.broadcast %105 : vector<2x8x1xf32> to vector<2x8x8xf32>
    %107 = arith.mulf %102, %106 : vector<2x8x8xf32>
    %108 = arith.truncf %107 : vector<2x8x8xf32> to vector<2x8x8xbf16>
    "tpu.trace_start"() <{level = 10 : i32, message = "bqk,bkd->bqd"}> : () -> ()
    %cst_35 = arith.constant dense<0.000000e+00> : vector<2x8x16xf32>
    %109 = tpu.matmul %108, %94, %cst_35 {dimension_numbers = #tpu.dot_dimension_numbers<[2], [1], [1], [2], [0, 0, 0, 1, 1, 2], [0], [0]>} : vector<2x8x8xbf16>, vector<2x8x16xbf16>, vector<2x8x16xf32> -> vector<2x8x16xf32>
    "tpu.trace_stop"() : () -> ()
    %110 = vector.shape_cast %109 : vector<2x8x16xf32> to vector<16x16xf32>
    %111 = arith.truncf %110 : vector<16x16xf32> to vector<16x16xbf16>
    %112 = vector.extract_strided_slice %10 {offsets = [32, 0], sizes = [16, 128], strides = [1, 1]} : vector<128x128xbf16> to vector<16x128xbf16>
    %cst_36 = arith.constant dense<0.000000e+00> : vector<16x128xf32>
    %113 = tpu.matmul %111, %112, %cst_36 {dimension_numbers = #tpu.dot_dimension_numbers<[1], [0], [0], [1], [0, 0, 1, 1], [], []>} : vector<16x16xbf16>, vector<16x128xbf16>, vector<16x128xf32> -> vector<16x128xf32>
    %114 = arith.addf %85, %113 : vector<16x128xf32>
    %115 = vector.extract_strided_slice %20 {offsets = [0, 48], sizes = [16, 16], strides = [1, 1]} : vector<16x128xf32> to vector<16x16xf32>
    %116 = arith.truncf %115 : vector<16x16xf32> to vector<16x16xbf16>
    %117 = vector.shape_cast %116 : vector<16x16xbf16> to vector<2x8x16xbf16>
    %118 = vector.extract_strided_slice %24 {offsets = [0, 48], sizes = [16, 16], strides = [1, 1]} : vector<16x128xf32> to vector<16x16xf32>
    %119 = arith.truncf %118 : vector<16x16xf32> to vector<16x16xbf16>
    %120 = vector.shape_cast %119 : vector<16x16xbf16> to vector<2x8x16xbf16>
    %121 = vector.extract_strided_slice %28 {offsets = [0, 48], sizes = [16, 16], strides = [1, 1]} : vector<16x128xf32> to vector<16x16xf32>
    %122 = arith.truncf %121 : vector<16x16xf32> to vector<16x16xbf16>
    %123 = vector.shape_cast %122 : vector<16x16xbf16> to vector<2x8x16xbf16>
    "tpu.trace_start"() <{level = 10 : i32, message = "bqd,bkd->bqk"}> : () -> ()
    %cst_37 = arith.constant dense<0.000000e+00> : vector<2x8x8xf32>
    %124 = tpu.matmul %117, %120, %cst_37 {dimension_numbers = #tpu.dot_dimension_numbers<[2], [2], [1], [1], [0, 0, 0, 1, 1, 1], [0], [0]>} : vector<2x8x16xbf16>, vector<2x8x16xbf16>, vector<2x8x8xf32> -> vector<2x8x8xf32>
    "tpu.trace_stop"() : () -> ()
    %cst_38 = arith.constant 2.500000e-01 : f32
    %125 = vector.broadcast %cst_38 : f32 to vector<2x8x8xf32>
    %126 = arith.mulf %124, %125 : vector<2x8x8xf32>
    %cst_39 = arith.constant dense<0xFF800000> : vector<2x8xf32>
    %127 = vector.multi_reduction <maximumf>, %126, %cst_39 [2] : vector<2x8x8xf32> to vector<2x8xf32>
    %128 = vector.shape_cast %127 : vector<2x8xf32> to vector<2x8x1xf32>
    %129 = vector.broadcast %128 : vector<2x8x1xf32> to vector<2x8x8xf32>
    %130 = arith.subf %126, %129 : vector<2x8x8xf32>
    %131 = math.exp %130 : vector<2x8x8xf32>
    %cst_40 = arith.constant dense<0.000000e+00> : vector<2x8xf32>
    %132 = vector.multi_reduction <add>, %131, %cst_40 [2] : vector<2x8x8xf32> to vector<2x8xf32>
    %133 = vector.shape_cast %132 : vector<2x8xf32> to vector<2x8x1xf32>
    %134 = tpu.reciprocal %133 {approx = true} : vector<2x8x1xf32> -> vector<2x8x1xf32>
    %135 = vector.broadcast %134 : vector<2x8x1xf32> to vector<2x8x8xf32>
    %136 = arith.mulf %131, %135 : vector<2x8x8xf32>
    %137 = arith.truncf %136 : vector<2x8x8xf32> to vector<2x8x8xbf16>
    "tpu.trace_start"() <{level = 10 : i32, message = "bqk,bkd->bqd"}> : () -> ()
    %cst_41 = arith.constant dense<0.000000e+00> : vector<2x8x16xf32>
    %138 = tpu.matmul %137, %123, %cst_41 {dimension_numbers = #tpu.dot_dimension_numbers<[2], [1], [1], [2], [0, 0, 0, 1, 1, 2], [0], [0]>} : vector<2x8x8xbf16>, vector<2x8x16xbf16>, vector<2x8x16xf32> -> vector<2x8x16xf32>
    "tpu.trace_stop"() : () -> ()
    %139 = vector.shape_cast %138 : vector<2x8x16xf32> to vector<16x16xf32>
    %140 = arith.truncf %139 : vector<16x16xf32> to vector<16x16xbf16>
    %141 = vector.extract_strided_slice %10 {offsets = [48, 0], sizes = [16, 128], strides = [1, 1]} : vector<128x128xbf16> to vector<16x128xbf16>
    %cst_42 = arith.constant dense<0.000000e+00> : vector<16x128xf32>
    %142 = tpu.matmul %140, %141, %cst_42 {dimension_numbers = #tpu.dot_dimension_numbers<[1], [0], [0], [1], [0, 0, 1, 1], [], []>} : vector<16x16xbf16>, vector<16x128xbf16>, vector<16x128xf32> -> vector<16x128xf32>
    %143 = arith.addf %114, %142 : vector<16x128xf32>
    %144 = vector.extract_strided_slice %20 {offsets = [0, 64], sizes = [16, 16], strides = [1, 1]} : vector<16x128xf32> to vector<16x16xf32>
    %145 = arith.truncf %144 : vector<16x16xf32> to vector<16x16xbf16>
    %146 = vector.shape_cast %145 : vector<16x16xbf16> to vector<2x8x16xbf16>
    %147 = vector.extract_strided_slice %24 {offsets = [0, 64], sizes = [16, 16], strides = [1, 1]} : vector<16x128xf32> to vector<16x16xf32>
    %148 = arith.truncf %147 : vector<16x16xf32> to vector<16x16xbf16>
    %149 = vector.shape_cast %148 : vector<16x16xbf16> to vector<2x8x16xbf16>
    %150 = vector.extract_strided_slice %28 {offsets = [0, 64], sizes = [16, 16], strides = [1, 1]} : vector<16x128xf32> to vector<16x16xf32>
    %151 = arith.truncf %150 : vector<16x16xf32> to vector<16x16xbf16>
    %152 = vector.shape_cast %151 : vector<16x16xbf16> to vector<2x8x16xbf16>
    "tpu.trace_start"() <{level = 10 : i32, message = "bqd,bkd->bqk"}> : () -> ()
    %cst_43 = arith.constant dense<0.000000e+00> : vector<2x8x8xf32>
    %153 = tpu.matmul %146, %149, %cst_43 {dimension_numbers = #tpu.dot_dimension_numbers<[2], [2], [1], [1], [0, 0, 0, 1, 1, 1], [0], [0]>} : vector<2x8x16xbf16>, vector<2x8x16xbf16>, vector<2x8x8xf32> -> vector<2x8x8xf32>
    "tpu.trace_stop"() : () -> ()
    %cst_44 = arith.constant 2.500000e-01 : f32
    %154 = vector.broadcast %cst_44 : f32 to vector<2x8x8xf32>
    %155 = arith.mulf %153, %154 : vector<2x8x8xf32>
    %cst_45 = arith.constant dense<0xFF800000> : vector<2x8xf32>
    %156 = vector.multi_reduction <maximumf>, %155, %cst_45 [2] : vector<2x8x8xf32> to vector<2x8xf32>
    %157 = vector.shape_cast %156 : vector<2x8xf32> to vector<2x8x1xf32>
    %158 = vector.broadcast %157 : vector<2x8x1xf32> to vector<2x8x8xf32>
    %159 = arith.subf %155, %158 : vector<2x8x8xf32>
    %160 = math.exp %159 : vector<2x8x8xf32>
    %cst_46 = arith.constant dense<0.000000e+00> : vector<2x8xf32>
    %161 = vector.multi_reduction <add>, %160, %cst_46 [2] : vector<2x8x8xf32> to vector<2x8xf32>
    %162 = vector.shape_cast %161 : vector<2x8xf32> to vector<2x8x1xf32>
    %163 = tpu.reciprocal %162 {approx = true} : vector<2x8x1xf32> -> vector<2x8x1xf32>
    %164 = vector.broadcast %163 : vector<2x8x1xf32> to vector<2x8x8xf32>
    %165 = arith.mulf %160, %164 : vector<2x8x8xf32>
    %166 = arith.truncf %165 : vector<2x8x8xf32> to vector<2x8x8xbf16>
    "tpu.trace_start"() <{level = 10 : i32, message = "bqk,bkd->bqd"}> : () -> ()
    %cst_47 = arith.constant dense<0.000000e+00> : vector<2x8x16xf32>
    %167 = tpu.matmul %166, %152, %cst_47 {dimension_numbers = #tpu.dot_dimension_numbers<[2], [1], [1], [2], [0, 0, 0, 1, 1, 2], [0], [0]>} : vector<2x8x8xbf16>, vector<2x8x16xbf16>, vector<2x8x16xf32> -> vector<2x8x16xf32>
    "tpu.trace_stop"() : () -> ()
    %168 = vector.shape_cast %167 : vector<2x8x16xf32> to vector<16x16xf32>
    %169 = arith.truncf %168 : vector<16x16xf32> to vector<16x16xbf16>
    %170 = vector.extract_strided_slice %10 {offsets = [64, 0], sizes = [16, 128], strides = [1, 1]} : vector<128x128xbf16> to vector<16x128xbf16>
    %cst_48 = arith.constant dense<0.000000e+00> : vector<16x128xf32>
    %171 = tpu.matmul %169, %170, %cst_48 {dimension_numbers = #tpu.dot_dimension_numbers<[1], [0], [0], [1], [0, 0, 1, 1], [], []>} : vector<16x16xbf16>, vector<16x128xbf16>, vector<16x128xf32> -> vector<16x128xf32>
    %172 = arith.addf %143, %171 : vector<16x128xf32>
    %173 = vector.extract_strided_slice %20 {offsets = [0, 80], sizes = [16, 16], strides = [1, 1]} : vector<16x128xf32> to vector<16x16xf32>
    %174 = arith.truncf %173 : vector<16x16xf32> to vector<16x16xbf16>
    %175 = vector.shape_cast %174 : vector<16x16xbf16> to vector<2x8x16xbf16>
    %176 = vector.extract_strided_slice %24 {offsets = [0, 80], sizes = [16, 16], strides = [1, 1]} : vector<16x128xf32> to vector<16x16xf32>
    %177 = arith.truncf %176 : vector<16x16xf32> to vector<16x16xbf16>
    %178 = vector.shape_cast %177 : vector<16x16xbf16> to vector<2x8x16xbf16>
    %179 = vector.extract_strided_slice %28 {offsets = [0, 80], sizes = [16, 16], strides = [1, 1]} : vector<16x128xf32> to vector<16x16xf32>
    %180 = arith.truncf %179 : vector<16x16xf32> to vector<16x16xbf16>
    %181 = vector.shape_cast %180 : vector<16x16xbf16> to vector<2x8x16xbf16>
    "tpu.trace_start"() <{level = 10 : i32, message = "bqd,bkd->bqk"}> : () -> ()
    %cst_49 = arith.constant dense<0.000000e+00> : vector<2x8x8xf32>
    %182 = tpu.matmul %175, %178, %cst_49 {dimension_numbers = #tpu.dot_dimension_numbers<[2], [2], [1], [1], [0, 0, 0, 1, 1, 1], [0], [0]>} : vector<2x8x16xbf16>, vector<2x8x16xbf16>, vector<2x8x8xf32> -> vector<2x8x8xf32>
    "tpu.trace_stop"() : () -> ()
    %cst_50 = arith.constant 2.500000e-01 : f32
    %183 = vector.broadcast %cst_50 : f32 to vector<2x8x8xf32>
    %184 = arith.mulf %182, %183 : vector<2x8x8xf32>
    %cst_51 = arith.constant dense<0xFF800000> : vector<2x8xf32>
    %185 = vector.multi_reduction <maximumf>, %184, %cst_51 [2] : vector<2x8x8xf32> to vector<2x8xf32>
    %186 = vector.shape_cast %185 : vector<2x8xf32> to vector<2x8x1xf32>
    %187 = vector.broadcast %186 : vector<2x8x1xf32> to vector<2x8x8xf32>
    %188 = arith.subf %184, %187 : vector<2x8x8xf32>
    %189 = math.exp %188 : vector<2x8x8xf32>
    %cst_52 = arith.constant dense<0.000000e+00> : vector<2x8xf32>
    %190 = vector.multi_reduction <add>, %189, %cst_52 [2] : vector<2x8x8xf32> to vector<2x8xf32>
    %191 = vector.shape_cast %190 : vector<2x8xf32> to vector<2x8x1xf32>
    %192 = tpu.reciprocal %191 {approx = true} : vector<2x8x1xf32> -> vector<2x8x1xf32>
    %193 = vector.broadcast %192 : vector<2x8x1xf32> to vector<2x8x8xf32>
    %194 = arith.mulf %189, %193 : vector<2x8x8xf32>
    %195 = arith.truncf %194 : vector<2x8x8xf32> to vector<2x8x8xbf16>
    "tpu.trace_start"() <{level = 10 : i32, message = "bqk,bkd->bqd"}> : () -> ()
    %cst_53 = arith.constant dense<0.000000e+00> : vector<2x8x16xf32>
    %196 = tpu.matmul %195, %181, %cst_53 {dimension_numbers = #tpu.dot_dimension_numbers<[2], [1], [1], [2], [0, 0, 0, 1, 1, 2], [0], [0]>} : vector<2x8x8xbf16>, vector<2x8x16xbf16>, vector<2x8x16xf32> -> vector<2x8x16xf32>
    "tpu.trace_stop"() : () -> ()
    %197 = vector.shape_cast %196 : vector<2x8x16xf32> to vector<16x16xf32>
    %198 = arith.truncf %197 : vector<16x16xf32> to vector<16x16xbf16>
    %199 = vector.extract_strided_slice %10 {offsets = [80, 0], sizes = [16, 128], strides = [1, 1]} : vector<128x128xbf16> to vector<16x128xbf16>
    %cst_54 = arith.constant dense<0.000000e+00> : vector<16x128xf32>
    %200 = tpu.matmul %198, %199, %cst_54 {dimension_numbers = #tpu.dot_dimension_numbers<[1], [0], [0], [1], [0, 0, 1, 1], [], []>} : vector<16x16xbf16>, vector<16x128xbf16>, vector<16x128xf32> -> vector<16x128xf32>
    %201 = arith.addf %172, %200 : vector<16x128xf32>
    %202 = vector.extract_strided_slice %20 {offsets = [0, 96], sizes = [16, 16], strides = [1, 1]} : vector<16x128xf32> to vector<16x16xf32>
    %203 = arith.truncf %202 : vector<16x16xf32> to vector<16x16xbf16>
    %204 = vector.shape_cast %203 : vector<16x16xbf16> to vector<2x8x16xbf16>
    %205 = vector.extract_strided_slice %24 {offsets = [0, 96], sizes = [16, 16], strides = [1, 1]} : vector<16x128xf32> to vector<16x16xf32>
    %206 = arith.truncf %205 : vector<16x16xf32> to vector<16x16xbf16>
    %207 = vector.shape_cast %206 : vector<16x16xbf16> to vector<2x8x16xbf16>
    %208 = vector.extract_strided_slice %28 {offsets = [0, 96], sizes = [16, 16], strides = [1, 1]} : vector<16x128xf32> to vector<16x16xf32>
    %209 = arith.truncf %208 : vector<16x16xf32> to vector<16x16xbf16>
    %210 = vector.shape_cast %209 : vector<16x16xbf16> to vector<2x8x16xbf16>
    "tpu.trace_start"() <{level = 10 : i32, message = "bqd,bkd->bqk"}> : () -> ()
    %cst_55 = arith.constant dense<0.000000e+00> : vector<2x8x8xf32>
    %211 = tpu.matmul %204, %207, %cst_55 {dimension_numbers = #tpu.dot_dimension_numbers<[2], [2], [1], [1], [0, 0, 0, 1, 1, 1], [0], [0]>} : vector<2x8x16xbf16>, vector<2x8x16xbf16>, vector<2x8x8xf32> -> vector<2x8x8xf32>
    "tpu.trace_stop"() : () -> ()
    %cst_56 = arith.constant 2.500000e-01 : f32
    %212 = vector.broadcast %cst_56 : f32 to vector<2x8x8xf32>
    %213 = arith.mulf %211, %212 : vector<2x8x8xf32>
    %cst_57 = arith.constant dense<0xFF800000> : vector<2x8xf32>
    %214 = vector.multi_reduction <maximumf>, %213, %cst_57 [2] : vector<2x8x8xf32> to vector<2x8xf32>
    %215 = vector.shape_cast %214 : vector<2x8xf32> to vector<2x8x1xf32>
    %216 = vector.broadcast %215 : vector<2x8x1xf32> to vector<2x8x8xf32>
    %217 = arith.subf %213, %216 : vector<2x8x8xf32>
    %218 = math.exp %217 : vector<2x8x8xf32>
    %cst_58 = arith.constant dense<0.000000e+00> : vector<2x8xf32>
    %219 = vector.multi_reduction <add>, %218, %cst_58 [2] : vector<2x8x8xf32> to vector<2x8xf32>
    %220 = vector.shape_cast %219 : vector<2x8xf32> to vector<2x8x1xf32>
    %221 = tpu.reciprocal %220 {approx = true} : vector<2x8x1xf32> -> vector<2x8x1xf32>
    %222 = vector.broadcast %221 : vector<2x8x1xf32> to vector<2x8x8xf32>
    %223 = arith.mulf %218, %222 : vector<2x8x8xf32>
    %224 = arith.truncf %223 : vector<2x8x8xf32> to vector<2x8x8xbf16>
    "tpu.trace_start"() <{level = 10 : i32, message = "bqk,bkd->bqd"}> : () -> ()
    %cst_59 = arith.constant dense<0.000000e+00> : vector<2x8x16xf32>
    %225 = tpu.matmul %224, %210, %cst_59 {dimension_numbers = #tpu.dot_dimension_numbers<[2], [1], [1], [2], [0, 0, 0, 1, 1, 2], [0], [0]>} : vector<2x8x8xbf16>, vector<2x8x16xbf16>, vector<2x8x16xf32> -> vector<2x8x16xf32>
    "tpu.trace_stop"() : () -> ()
    %226 = vector.shape_cast %225 : vector<2x8x16xf32> to vector<16x16xf32>
    %227 = arith.truncf %226 : vector<16x16xf32> to vector<16x16xbf16>
    %228 = vector.extract_strided_slice %10 {offsets = [96, 0], sizes = [16, 128], strides = [1, 1]} : vector<128x128xbf16> to vector<16x128xbf16>
    %cst_60 = arith.constant dense<0.000000e+00> : vector<16x128xf32>
    %229 = tpu.matmul %227, %228, %cst_60 {dimension_numbers = #tpu.dot_dimension_numbers<[1], [0], [0], [1], [0, 0, 1, 1], [], []>} : vector<16x16xbf16>, vector<16x128xbf16>, vector<16x128xf32> -> vector<16x128xf32>
    %230 = arith.addf %201, %229 : vector<16x128xf32>
    %231 = vector.extract_strided_slice %20 {offsets = [0, 112], sizes = [16, 16], strides = [1, 1]} : vector<16x128xf32> to vector<16x16xf32>
    %232 = arith.truncf %231 : vector<16x16xf32> to vector<16x16xbf16>
    %233 = vector.shape_cast %232 : vector<16x16xbf16> to vector<2x8x16xbf16>
    %234 = vector.extract_strided_slice %24 {offsets = [0, 112], sizes = [16, 16], strides = [1, 1]} : vector<16x128xf32> to vector<16x16xf32>
    %235 = arith.truncf %234 : vector<16x16xf32> to vector<16x16xbf16>
    %236 = vector.shape_cast %235 : vector<16x16xbf16> to vector<2x8x16xbf16>
    %237 = vector.extract_strided_slice %28 {offsets = [0, 112], sizes = [16, 16], strides = [1, 1]} : vector<16x128xf32> to vector<16x16xf32>
    %238 = arith.truncf %237 : vector<16x16xf32> to vector<16x16xbf16>
    %239 = vector.shape_cast %238 : vector<16x16xbf16> to vector<2x8x16xbf16>
    "tpu.trace_start"() <{level = 10 : i32, message = "bqd,bkd->bqk"}> : () -> ()
    %cst_61 = arith.constant dense<0.000000e+00> : vector<2x8x8xf32>
    %240 = tpu.matmul %233, %236, %cst_61 {dimension_numbers = #tpu.dot_dimension_numbers<[2], [2], [1], [1], [0, 0, 0, 1, 1, 1], [0], [0]>} : vector<2x8x16xbf16>, vector<2x8x16xbf16>, vector<2x8x8xf32> -> vector<2x8x8xf32>
    "tpu.trace_stop"() : () -> ()
    %cst_62 = arith.constant 2.500000e-01 : f32
    %241 = vector.broadcast %cst_62 : f32 to vector<2x8x8xf32>
    %242 = arith.mulf %240, %241 : vector<2x8x8xf32>
    %cst_63 = arith.constant dense<0xFF800000> : vector<2x8xf32>
    %243 = vector.multi_reduction <maximumf>, %242, %cst_63 [2] : vector<2x8x8xf32> to vector<2x8xf32>
    %244 = vector.shape_cast %243 : vector<2x8xf32> to vector<2x8x1xf32>
    %245 = vector.broadcast %244 : vector<2x8x1xf32> to vector<2x8x8xf32>
    %246 = arith.subf %242, %245 : vector<2x8x8xf32>
    %247 = math.exp %246 : vector<2x8x8xf32>
    %cst_64 = arith.constant dense<0.000000e+00> : vector<2x8xf32>
    %248 = vector.multi_reduction <add>, %247, %cst_64 [2] : vector<2x8x8xf32> to vector<2x8xf32>
    %249 = vector.shape_cast %248 : vector<2x8xf32> to vector<2x8x1xf32>
    %250 = tpu.reciprocal %249 {approx = true} : vector<2x8x1xf32> -> vector<2x8x1xf32>
    %251 = vector.broadcast %250 : vector<2x8x1xf32> to vector<2x8x8xf32>
    %252 = arith.mulf %247, %251 : vector<2x8x8xf32>
    %253 = arith.truncf %252 : vector<2x8x8xf32> to vector<2x8x8xbf16>
    "tpu.trace_start"() <{level = 10 : i32, message = "bqk,bkd->bqd"}> : () -> ()
    %cst_65 = arith.constant dense<0.000000e+00> : vector<2x8x16xf32>
    %254 = tpu.matmul %253, %239, %cst_65 {dimension_numbers = #tpu.dot_dimension_numbers<[2], [1], [1], [2], [0, 0, 0, 1, 1, 2], [0], [0]>} : vector<2x8x8xbf16>, vector<2x8x16xbf16>, vector<2x8x16xf32> -> vector<2x8x16xf32>
    "tpu.trace_stop"() : () -> ()
    %255 = vector.shape_cast %254 : vector<2x8x16xf32> to vector<16x16xf32>
    %256 = arith.truncf %255 : vector<16x16xf32> to vector<16x16xbf16>
    %257 = vector.extract_strided_slice %10 {offsets = [112, 0], sizes = [16, 128], strides = [1, 1]} : vector<128x128xbf16> to vector<16x128xbf16>
    %cst_66 = arith.constant dense<0.000000e+00> : vector<16x128xf32>
    %258 = tpu.matmul %256, %257, %cst_66 {dimension_numbers = #tpu.dot_dimension_numbers<[1], [0], [0], [1], [0, 0, 1, 1], [], []>} : vector<16x16xbf16>, vector<16x128xbf16>, vector<16x128xf32> -> vector<16x128xf32>
    %259 = arith.addf %230, %258 : vector<16x128xf32>
    %260 = vector.extract_strided_slice %6 {offsets = [3, 0], sizes = [1, 128], strides = [1, 1]} : vector<11x128xf32> to vector<1x128xf32>
    %261 = vector.broadcast %260 : vector<1x128xf32> to vector<16x128xf32>
    %262 = arith.addf %259, %261 : vector<16x128xf32>
    %263 = arith.addf %4, %262 : vector<16x128xf32>
    %264 = vector.extract_strided_slice %6 {offsets = [4, 0], sizes = [1, 128], strides = [1, 1]} : vector<11x128xf32> to vector<1x128xf32>
    %265 = vector.extract_strided_slice %6 {offsets = [5, 0], sizes = [1, 128], strides = [1, 1]} : vector<11x128xf32> to vector<1x128xf32>
    %cst_67 = arith.constant dense<0.000000e+00> : vector<16xf32>
    %266 = vector.multi_reduction <add>, %263, %cst_67 [1] : vector<16x128xf32> to vector<16xf32>
    %267 = vector.shape_cast %266 : vector<16xf32> to vector<16x1xf32>
    %cst_68 = arith.constant 1.280000e+02 : f32
    %268 = vector.broadcast %cst_68 : f32 to vector<16x1xf32>
    %269 = arith.divf %267, %268 : vector<16x1xf32>
    %270 = vector.broadcast %269 : vector<16x1xf32> to vector<16x128xf32>
    %271 = arith.subf %263, %270 : vector<16x128xf32>
    %272 = arith.mulf %271, %271 : vector<16x128xf32>
    %cst_69 = arith.constant dense<0.000000e+00> : vector<16xf32>
    %273 = vector.multi_reduction <add>, %272, %cst_69 [1] : vector<16x128xf32> to vector<16xf32>
    %274 = vector.shape_cast %273 : vector<16xf32> to vector<16x1xf32>
    %cst_70 = arith.constant 1.280000e+02 : f32
    %275 = vector.broadcast %cst_70 : f32 to vector<16x1xf32>
    %276 = arith.divf %274, %275 : vector<16x1xf32>
    %277 = vector.broadcast %269 : vector<16x1xf32> to vector<16x128xf32>
    %278 = arith.subf %263, %277 : vector<16x128xf32>
    %cst_71 = arith.constant 9.99999974E-6 : f32
    %279 = vector.broadcast %cst_71 : f32 to vector<16x1xf32>
    %280 = arith.addf %276, %279 : vector<16x1xf32>
    %281 = math.rsqrt %280 : vector<16x1xf32>
    %282 = vector.broadcast %281 : vector<16x1xf32> to vector<16x128xf32>
    %283 = arith.mulf %278, %282 : vector<16x128xf32>
    %284 = vector.broadcast %264 : vector<1x128xf32> to vector<16x128xf32>
    %285 = arith.mulf %283, %284 : vector<16x128xf32>
    %286 = vector.broadcast %265 : vector<1x128xf32> to vector<16x128xf32>
    %287 = arith.addf %285, %286 : vector<16x128xf32>
    %288 = vector.extract_strided_slice %6 {offsets = [6, 0], sizes = [1, 128], strides = [1, 1]} : vector<11x128xf32> to vector<1x128xf32>
    %289 = vector.extract_strided_slice %6 {offsets = [7, 0], sizes = [1, 128], strides = [1, 1]} : vector<11x128xf32> to vector<1x128xf32>
    %290 = tpu.concatenate %288, %289 in 1 : vector<1x128xf32>, vector<1x128xf32> -> vector<1x256xf32>
    %291 = arith.truncf %287 : vector<16x128xf32> to vector<16x128xbf16>
    %cst_72 = arith.constant dense<0.000000e+00> : vector<16x256xf32>
    %292 = tpu.matmul %291, %12, %cst_72 {dimension_numbers = #tpu.dot_dimension_numbers<[1], [0], [0], [1], [0, 0, 1, 1], [], []>} : vector<16x128xbf16>, vector<128x256xbf16>, vector<16x256xf32> -> vector<16x256xf32>
    %293 = vector.broadcast %290 : vector<1x256xf32> to vector<16x256xf32>
    %294 = arith.addf %292, %293 : vector<16x256xf32>
    %cst_73 = arith.constant 0.000000e+00 : f32
    %295 = vector.broadcast %cst_73 : f32 to vector<16x256xf32>
    %296 = arith.maximumf %294, %295 : vector<16x256xf32>
    %297 = arith.truncf %296 : vector<16x256xf32> to vector<16x256xbf16>
    %cst_74 = arith.constant dense<0.000000e+00> : vector<16x128xf32>
    %298 = tpu.matmul %297, %14, %cst_74 {dimension_numbers = #tpu.dot_dimension_numbers<[1], [0], [0], [1], [0, 0, 1, 1], [], []>} : vector<16x256xbf16>, vector<256x128xbf16>, vector<16x128xf32> -> vector<16x128xf32>
    %299 = vector.extract_strided_slice %6 {offsets = [8, 0], sizes = [1, 128], strides = [1, 1]} : vector<11x128xf32> to vector<1x128xf32>
    %300 = vector.broadcast %299 : vector<1x128xf32> to vector<16x128xf32>
    %301 = arith.addf %298, %300 : vector<16x128xf32>
    %302 = arith.addf %287, %301 : vector<16x128xf32>
    %303 = vector.extract_strided_slice %6 {offsets = [9, 0], sizes = [1, 128], strides = [1, 1]} : vector<11x128xf32> to vector<1x128xf32>
    %304 = vector.extract_strided_slice %6 {offsets = [10, 0], sizes = [1, 128], strides = [1, 1]} : vector<11x128xf32> to vector<1x128xf32>
    %cst_75 = arith.constant dense<0.000000e+00> : vector<16xf32>
    %305 = vector.multi_reduction <add>, %302, %cst_75 [1] : vector<16x128xf32> to vector<16xf32>
    %306 = vector.shape_cast %305 : vector<16xf32> to vector<16x1xf32>
    %cst_76 = arith.constant 1.280000e+02 : f32
    %307 = vector.broadcast %cst_76 : f32 to vector<16x1xf32>
    %308 = arith.divf %306, %307 : vector<16x1xf32>
    %309 = vector.broadcast %308 : vector<16x1xf32> to vector<16x128xf32>
    %310 = arith.subf %302, %309 : vector<16x128xf32>
    %311 = arith.mulf %310, %310 : vector<16x128xf32>
    %cst_77 = arith.constant dense<0.000000e+00> : vector<16xf32>
    %312 = vector.multi_reduction <add>, %311, %cst_77 [1] : vector<16x128xf32> to vector<16xf32>
    %313 = vector.shape_cast %312 : vector<16xf32> to vector<16x1xf32>
    %cst_78 = arith.constant 1.280000e+02 : f32
    %314 = vector.broadcast %cst_78 : f32 to vector<16x1xf32>
    %315 = arith.divf %313, %314 : vector<16x1xf32>
    %316 = vector.broadcast %308 : vector<16x1xf32> to vector<16x128xf32>
    %317 = arith.subf %302, %316 : vector<16x128xf32>
    %cst_79 = arith.constant 9.99999974E-6 : f32
    %318 = vector.broadcast %cst_79 : f32 to vector<16x1xf32>
    %319 = arith.addf %315, %318 : vector<16x1xf32>
    %320 = math.rsqrt %319 : vector<16x1xf32>
    %321 = vector.broadcast %320 : vector<16x1xf32> to vector<16x128xf32>
    %322 = arith.mulf %317, %321 : vector<16x128xf32>
    %323 = vector.broadcast %303 : vector<1x128xf32> to vector<16x128xf32>
    %324 = arith.mulf %322, %323 : vector<16x128xf32>
    %325 = vector.broadcast %304 : vector<1x128xf32> to vector<16x128xf32>
    %326 = arith.addf %324, %325 : vector<16x128xf32>
    %c0_80 = arith.constant 0 : index
    %c0_81 = arith.constant 0 : index
    %327 = vector.load %arg13[%c0_80, %c0_81] : memref<16x128xf32, #tpu.memory_space<vmem>>, vector<16x128xf32>
    tpu.vector_store %arg13[%c0_80, %c0_81], %326 {strides = array<i32>} : memref<16x128xf32, #tpu.memory_space<vmem>>, vector<16x128xf32>,
    %c2_i32 = arith.constant 2 : i32
    %328 = arith.cmpi eq, %arg1, %c2_i32 : i32
    %329 = arith.extui %328 : i1 to i32
    %c0_i32_82 = arith.constant 0 : i32
    %330 = arith.cmpi ne, %329, %c0_i32_82 : i32
    scf.if %330 {
      %331 = vector.extract_strided_slice %326 {offsets = [7, 0], sizes = [1, 128], strides = [1, 1]} : vector<16x128xf32> to vector<1x128xf32>
      %332 = vector.extract_strided_slice %326 {offsets = [15, 0], sizes = [1, 128], strides = [1, 1]} : vector<16x128xf32> to vector<1x128xf32>
      %333 = tpu.concatenate %331, %332 in 0 : vector<1x128xf32>, vector<1x128xf32> -> vector<2x128xf32>
      %334 = arith.truncf %333 : vector<2x128xf32> to vector<2x128xbf16>
      %c0_83 = arith.constant 0 : index
      %c0_84 = arith.constant 0 : index
      %335 = vector.load %arg9[%c0_83, %c0_84] : memref<128x128xbf16, #tpu.memory_space<vmem>>, vector<128x128xbf16>
      %cst_85 = arith.constant dense<0.000000e+00> : vector<2x128xf32>
      %336 = tpu.matmul %334, %335, %cst_85 {dimension_numbers = #tpu.dot_dimension_numbers<[1], [0], [0], [1], [0, 0, 1, 1], [], []>} : vector<2x128xbf16>, vector<128x128xbf16>, vector<2x128xf32> -> vector<2x128xf32>
      %337 = vector.extract_strided_slice %0 {offsets = [1, 0], sizes = [1, 128], strides = [1, 1]} : vector<3x128xf32> to vector<1x128xf32>
      %338 = vector.broadcast %337 : vector<1x128xf32> to vector<2x128xf32>
      %339 = arith.addf %336, %338 : vector<2x128xf32>
      %cst_86 = arith.constant 0.000000e+00 : f32
      %340 = vector.broadcast %cst_86 : f32 to vector<2x128xf32>
      %341 = arith.maximumf %339, %340 : vector<2x128xf32>
      %342 = arith.truncf %341 : vector<2x128xf32> to vector<2x128xbf16>
      %c0_87 = arith.constant 0 : index
      %c0_88 = arith.constant 0 : index
      %343 = vector.load %arg10[%c0_87, %c0_88] : memref<128x4xbf16, #tpu.memory_space<vmem>>, vector<128x4xbf16>
      %cst_89 = arith.constant dense<0.000000e+00> : vector<2x4xf32>
      %344 = tpu.matmul %342, %343, %cst_89 {dimension_numbers = #tpu.dot_dimension_numbers<[1], [0], [0], [1], [0, 0, 1, 1], [], []>} : vector<2x128xbf16>, vector<128x4xbf16>, vector<2x4xf32> -> vector<2x4xf32>
      %345 = vector.extract_strided_slice %0 {offsets = [2, 0], sizes = [1, 4], strides = [1, 1]} : vector<3x128xf32> to vector<1x4xf32>
      %346 = vector.broadcast %345 : vector<1x4xf32> to vector<2x4xf32>
      %347 = arith.addf %344, %346 : vector<2x4xf32>
      %c0_90 = arith.constant 0 : index
      %c0_91 = arith.constant 0 : index
      %348 = vector.load %arg12[%c0_90, %c0_91] : memref<2x4xf32, #tpu.memory_space<vmem>>, vector<2x4xf32>
      tpu.vector_store %arg12[%c0_90, %c0_91], %347 {strides = array<i32>} : memref<2x4xf32, #tpu.memory_space<vmem>>, vector<2x4xf32>,
    } else {
    }
    return
  }
  func.func @transform_0(%arg0: i32, %arg1: i32) -> (i32, i32) {
    %c0_i32 = arith.constant 0 : i32
    %c0_i32_0 = arith.constant 0 : i32
    return %arg0, %c0_i32 : i32, i32
  }
  func.func @transform_1(%arg0: i32, %arg1: i32) -> (i32, i32) {
    %c0_i32 = arith.constant 0 : i32
    %c0_i32_0 = arith.constant 0 : i32
    %c0_i32_1 = arith.constant 0 : i32
    return %c0_i32, %c0_i32_0 : i32, i32
  }
  func.func @transform_2(%arg0: i32, %arg1: i32) -> (i32, i32, i32) {
    %c0_i32 = arith.constant 0 : i32
    %c0_i32_0 = arith.constant 0 : i32
    %c0_i32_1 = arith.constant 0 : i32
    return %arg1, %c0_i32, %c0_i32_0 : i32, i32, i32
  }
  func.func @transform_3(%arg0: i32, %arg1: i32) -> (i32, i32, i32) {
    %c0_i32 = arith.constant 0 : i32
    %c0_i32_0 = arith.constant 0 : i32
    %c0_i32_1 = arith.constant 0 : i32
    return %arg1, %c0_i32, %c0_i32_0 : i32, i32, i32
  }
  func.func @transform_4(%arg0: i32, %arg1: i32) -> (i32, i32, i32) {
    %c0_i32 = arith.constant 0 : i32
    %c0_i32_0 = arith.constant 0 : i32
    %c0_i32_1 = arith.constant 0 : i32
    return %arg1, %c0_i32, %c0_i32_0 : i32, i32, i32
  }
  func.func @transform_5(%arg0: i32, %arg1: i32) -> (i32, i32, i32) {
    %c0_i32 = arith.constant 0 : i32
    %c0_i32_0 = arith.constant 0 : i32
    %c0_i32_1 = arith.constant 0 : i32
    return %arg1, %c0_i32, %c0_i32_0 : i32, i32, i32
  }
  func.func @transform_6(%arg0: i32, %arg1: i32) -> (i32, i32, i32) {
    %c0_i32 = arith.constant 0 : i32
    %c0_i32_0 = arith.constant 0 : i32
    %c0_i32_1 = arith.constant 0 : i32
    return %arg1, %c0_i32, %c0_i32_0 : i32, i32, i32
  }
  func.func @transform_7(%arg0: i32, %arg1: i32) -> (i32, i32) {
    %c0_i32 = arith.constant 0 : i32
    %c0_i32_0 = arith.constant 0 : i32
    %c0_i32_1 = arith.constant 0 : i32
    return %c0_i32, %c0_i32_0 : i32, i32
  }
  func.func @transform_8(%arg0: i32, %arg1: i32) -> (i32, i32) {
    %c0_i32 = arith.constant 0 : i32
    %c0_i32_0 = arith.constant 0 : i32
    %c0_i32_1 = arith.constant 0 : i32
    return %c0_i32, %c0_i32_0 : i32, i32
  }
  func.func @transform_9(%arg0: i32, %arg1: i32) -> (i32, i32) {
    %c0_i32 = arith.constant 0 : i32
    %c0_i32_0 = arith.constant 0 : i32
    %c0_i32_1 = arith.constant 0 : i32
    return %c0_i32, %c0_i32_0 : i32, i32
  }
  func.func @transform_10(%arg0: i32, %arg1: i32) -> (i32, i32) {
    %c0_i32 = arith.constant 0 : i32
    %c0_i32_0 = arith.constant 0 : i32
    return %arg0, %c0_i32 : i32, i32
  }
}

</mosaic_0001>

<llo_original>
// kernel: transformer_forecaster.1
$region0: #{transformer_forecaster.1}
  #allocation0 [shape = 'u32[]', space=smem, size = 0x4, offset = 0x4, fixed_abs, tag = 'smem constant byte address 0x4 - core index']
  #allocation1 [shape = 'u32[144,128]{1,0:T(1,128)}', space=vmem, size = 0x12000, scoped, tag = 'internal scratch']
  #allocation2 [shape = 'f32[16,128]{1,0:T(8,128)}', space=vmem, size = 0x2000, scoped, tag = 'scratch operand']
  %s0 = inlined_call_operand.vmem [shape: bf16[16,16], index: 0, kind: input, shape index: {}]
  %s1 = inlined_call_operand.vmem [shape: bf16[16,128], index: 1, kind: input, shape index: {}]
  %s2 = inlined_call_operand.hbm [shape: bf16[3,128,384], index: 2, kind: input, shape index: {}]
  %s3 = inlined_call_operand.vmem [shape: bf16[3,128,128], index: 3, kind: input, shape index: {}]
  %s4 = inlined_call_operand.hbm [shape: bf16[3,128,256], index: 4, kind: input, shape index: {}]
  %s5 = inlined_call_operand.hbm [shape: bf16[3,256,128], index: 5, kind: input, shape index: {}]
  %s6 = inlined_call_operand.vmem [shape: f32[3,11,128], index: 6, kind: input, shape index: {}]
  %s7 = inlined_call_operand.hbm [shape: bf16[128,128], index: 7, kind: input, shape index: {}]
  %s8 = inlined_call_operand.vmem [shape: bf16[128,4], index: 8, kind: input, shape index: {}]
  %s9 = inlined_call_operand.vmem [shape: f32[3,128], index: 9, kind: input, shape index: {}]
  %s10 = inlined_call_operand.hbm [shape: f32[2,4], index: 10, kind: output, shape index: {}]
  %s11 = sld [smem:[#allocation0]]
  $region97: #{transformer_forecaster.1} parent=0
    _
  %s13 = ssub.s32 1, %s11
  %s14 = scalar_select 0, %s13, %s11
  $region1: #{transformer_forecaster.1} parent=0
    #allocation3 [shape = 'u8[196608]{0}', space=vmem, size = 0x30000, scoped, tag = 'input window, operand 2']
    #allocation4 [shape = 's32[2]{0}', space=sflag, size = 0x8, scoped, tag = 'scoped memory for transformer_forecaster.1']
    #allocation5 [shape = 's32[2]{0}', space=sflag, size = 0x8, scoped, tag = 'scoped memory for transformer_forecaster.1']
    #allocation6 [shape = 'u8[131072]{0}', space=vmem, size = 0x20000, scoped, tag = 'input window, operand 4']
    #allocation7 [shape = 's32[2]{0}', space=sflag, size = 0x8, scoped, tag = 'scoped memory for transformer_forecaster.1']
    #allocation8 [shape = 'u8[131072]{0}', space=vmem, size = 0x20000, scoped, tag = 'input window, operand 5']
    #allocation9 [shape = 'u8[32768]{0}', space=vmem, size = 0x8000, scoped, tag = 'input window, operand 7, single buffered']
    #allocation10 [shape = 's32[1]{0}', space=sflag, size = 0x4, scoped, tag = 'scoped memory for transformer_forecaster.1']
    #allocation11 [shape = 'u8[1024]{0}', space=vmem, size = 0x400, scoped, tag = 'output window, operand 0, single buffered']
    %15 = vsyncpa [#allocation4], 0
    %s16 = scalar_lea.sflag [#allocation4], 1
    %17 = vsyncpa %s16, 0
    %18 = vsyncpa [#allocation7], 0
    %s19 = scalar_lea.sflag [#allocation7], 1
    %20 = vsyncpa %s19, 0
    %21 = vsyncpa [#allocation10], 0
    %22 = vsyncpa [#allocation5], 0
    loop: start=0, step=1, limit=5
    $region2: #{transformer_forecaster.1} parent=1 // loop_pre_header
      _
    $region3: #{transformer_forecaster.1} parent=1 // loop_header
      %s24 = sphi 0, %s28
      %p25 = scmp.ge.s32.totalorder %s24, 5
      %s31 = sphi 0, %s43
      %s32 = sphi 0, %s39
      %s33 = sphi 0, %s31
      %s34 = sphi 0, %s32
      %s35 = sphi 0, %s33
      %s36 = sphi 0, %s34
      %s46 = sphi 0, %s48
      %s49 = sphi 0, %s46
      %s50 = sphi 0, %s49
      %s66 = sphi 0, %s50
      %s70 = sphi 0, %s70
      %s72 = sphi 0, %s70
      %s73 = sphi 0, %s72
      %s87 = sphi 0, %s73
      %s93 = sphi 0, %s95
      %s96 = sphi 0, %s93
      %s97 = sphi 0, %s96
      %s113 = sphi 0, %s97
      %s119 = sphi 0, %s121
      %s122 = sphi 0, %s119
      %s123 = sphi 0, %s122
      %s139 = sphi 0, %s123
      %s145 = sphi 0, %s147
      %s148 = sphi 0, %s145
      %s149 = sphi 0, %s148
      %s165 = sphi 0, %s149
      %s171 = sphi 0, %s173
      %s174 = sphi 0, %s171
      %s175 = sphi 0, %s174
      %s191 = sphi 0, %s175
      %s197 = sphi 0, %s199
      %s200 = sphi 0, %s197
      %s201 = sphi 0, %s200
      %s217 = sphi 0, %s201
      %s221 = sphi 0, %s221
      %s223 = sphi 0, %s221
      %s224 = sphi 0, %s223
      %s238 = sphi 0, %s224
      %s242 = sphi 0, %s242
      %s244 = sphi 0, %s242
      %s245 = sphi 0, %s244
      %s259 = sphi 0, %s245
      %s263 = sphi 0, %s263
      %s265 = sphi 0, %s263
      %s266 = sphi 0, %s265
      %s280 = sphi 0, %s266
      %s286 = sphi 0, %s288
      %s289 = sphi 0, %s286
      %s290 = sphi 0, %s289
      %s306 = sphi 0, %s290
    $region4: #{transformer_forecaster.1} parent=1 // loop_header_branch
      %27 = sbr.rel (%p25) target = $region8
    $region5: #{transformer_forecaster.1} parent=1 // loop_body
      %s29 = ssub.s32 %s24, 1
      %s30 = ssub.s32 %s24, 2
      %s37 = sadd.s32 1, %s32
      %p38 = scmp.ge.s32.totalorder %s37, 3
      %s39 = scalar_select %p38, 0, %s37
      %s40 = sadd.s32 1, %s31
      %s41 = scalar_select %p38, %s40, %s31
      %p42 = scmp.ge.s32.totalorder %s41, 1
      %s43 = scalar_select %p42, 0, %s41
      %s44 = ssub.s32 %s31, %s43
      %p45 = scmp.eq.s32.totalorder %s44, 0
      %s47 = sadd.s32 %s46, 1
      %s48 = scalar_select %p45, %s46, %s47
      %p51 = pneg %p45
      %p52 = scmp.eq.s32.totalorder %s24, 2
      %p53 = por %p51, %p52
      %p54 = scmp.ne.s32.totalorder %s46, %s49
      %p55 = scmp.eq.s32.totalorder %s24, 0
      %p56 = por %p54, %p55
      %p57 = scmp.ne.s32.totalorder %s46, %s49
      %p58 = scmp.eq.s32.totalorder %s29, 2
      %p59 = por %p57, %p58
      %p60 = scmp.ne.s32.totalorder %s49, %s50
      %p61 = scmp.eq.s32.totalorder %s29, 0
      %p62 = por %p60, %p61
      %p63 = scmp.ne.s32.totalorder %s49, %s50
      %p64 = scmp.eq.s32.totalorder %s30, 2
      %p65 = por %p63, %p64
      %p67 = scmp.ne.s32.totalorder %s50, %s66
      %p68 = scmp.eq.s32.totalorder %s30, 0
      %p69 = por %p67, %p68
      %s71 = sadd.s32 %s70, 1
      %p74 = scmp.eq.s32.totalorder %s24, 2
      %p75 = scmp.ne.s32.totalorder %s70, %s72
      %p76 = scmp.eq.s32.totalorder %s24, 0
      %p77 = por %p75, %p76
      %p78 = scmp.ne.s32.totalorder %s70, %s72
      %p79 = scmp.eq.s32.totalorder %s29, 2
      %p80 = por %p78, %p79
      %p81 = scmp.ne.s32.totalorder %s72, %s73
      %p82 = scmp.eq.s32.totalorder %s29, 0
      %p83 = por %p81, %p82
      %p84 = scmp.ne.s32.totalorder %s72, %s73
      %p85 = scmp.eq.s32.totalorder %s30, 2
      %p86 = por %p84, %p85
      %p88 = scmp.ne.s32.totalorder %s73, %s87
      %p89 = scmp.eq.s32.totalorder %s30, 0
      %p90 = por %p88, %p89
      %s91 = ssub.s32 %s32, %s39
      %p92 = scmp.eq.s32.totalorder %s91, 0
      %s94 = sadd.s32 %s93, 1
      %s95 = scalar_select %p92, %s93, %s94
      %p98 = pneg %p92
      %p99 = scmp.eq.s32.totalorder %s24, 2
      %p100 = por %p98, %p99
      %p101 = scmp.ne.s32.totalorder %s93, %s96
      %p102 = scmp.eq.s32.totalorder %s24, 0
      %p103 = por %p101, %p102
      %p104 = scmp.ne.s32.totalorder %s93, %s96
      %p105 = scmp.eq.s32.totalorder %s29, 2
      %p106 = por %p104, %p105
      %p107 = scmp.ne.s32.totalorder %s96, %s97
      %p108 = scmp.eq.s32.totalorder %s29, 0
      %p109 = por %p107, %p108
      %p110 = scmp.ne.s32.totalorder %s96, %s97
      %p111 = scmp.eq.s32.totalorder %s30, 2
      %p112 = por %p110, %p111
      %p114 = scmp.ne.s32.totalorder %s97, %s113
      %p115 = scmp.eq.s32.totalorder %s30, 0
      %p116 = por %p114, %p115
      %s117 = ssub.s32 %s32, %s39
      %p118 = scmp.eq.s32.totalorder %s117, 0
      %s120 = sadd.s32 %s119, 1
      %s121 = scalar_select %p118, %s119, %s120
      %p124 = pneg %p118
      %p125 = scmp.eq.s32.totalorder %s24, 2
      %p126 = por %p124, %p125
      %p127 = scmp.ne.s32.totalorder %s119, %s122
      %p128 = scmp.eq.s32.totalorder %s24, 0
      %p129 = por %p127, %p128
      %p130 = scmp.ne.s32.totalorder %s119, %s122
      %p131 = scmp.eq.s32.totalorder %s29, 2
      %p132 = por %p130, %p131
      %p133 = scmp.ne.s32.totalorder %s122, %s123
      %p134 = scmp.eq.s32.totalorder %s29, 0
      %p135 = por %p133, %p134
      %p136 = scmp.ne.s32.totalorder %s122, %s123
      %p137 = scmp.eq.s32.totalorder %s30, 2
      %p138 = por %p136, %p137
      %p140 = scmp.ne.s32.totalorder %s123, %s139
      %p141 = scmp.eq.s32.totalorder %s30, 0
      %p142 = por %p140, %p141
      %s143 = ssub.s32 %s32, %s39
      %p144 = scmp.eq.s32.totalorder %s143, 0
      %s146 = sadd.s32 %s145, 1
      %s147 = scalar_select %p144, %s145, %s146
      %p150 = pneg %p144
      %p151 = scmp.eq.s32.totalorder %s24, 2
      %p152 = por %p150, %p151
      %p153 = scmp.ne.s32.totalorder %s145, %s148
      %p154 = scmp.eq.s32.totalorder %s24, 0
      %p155 = por %p153, %p154
      %p156 = scmp.ne.s32.totalorder %s145, %s148
      %p157 = scmp.eq.s32.totalorder %s29, 2
      %p158 = por %p156, %p157
      %p159 = scmp.ne.s32.totalorder %s148, %s149
      %p160 = scmp.eq.s32.totalorder %s29, 0
      %p161 = por %p159, %p160
      %p162 = scmp.ne.s32.totalorder %s148, %s149
      %p163 = scmp.eq.s32.totalorder %s30, 2
      %p164 = por %p162, %p163
      %p166 = scmp.ne.s32.totalorder %s149, %s165
      %p167 = scmp.eq.s32.totalorder %s30, 0
      %p168 = por %p166, %p167
      %s169 = ssub.s32 %s32, %s39
      %p170 = scmp.eq.s32.totalorder %s169, 0
      %s172 = sadd.s32 %s171, 1
      %s173 = scalar_select %p170, %s171, %s172
      %p176 = pneg %p170
      %p177 = scmp.eq.s32.totalorder %s24, 2
      %p178 = por %p176, %p177
      %p179 = scmp.ne.s32.totalorder %s171, %s174
      %p180 = scmp.eq.s32.totalorder %s24, 0
      %p181 = por %p179, %p180
      %p182 = scmp.ne.s32.totalorder %s171, %s174
      %p183 = scmp.eq.s32.totalorder %s29, 2
      %p184 = por %p182, %p183
      %p185 = scmp.ne.s32.totalorder %s174, %s175
      %p186 = scmp.eq.s32.totalorder %s29, 0
      %p187 = por %p185, %p186
      %p188 = scmp.ne.s32.totalorder %s174, %s175
      %p189 = scmp.eq.s32.totalorder %s30, 2
      %p190 = por %p188, %p189
      %p192 = scmp.ne.s32.totalorder %s175, %s191
      %p193 = scmp.eq.s32.totalorder %s30, 0
      %p194 = por %p192, %p193
      %s195 = ssub.s32 %s32, %s39
      %p196 = scmp.eq.s32.totalorder %s195, 0
      %s198 = sadd.s32 %s197, 1
      %s199 = scalar_select %p196, %s197, %s198
      %p202 = pneg %p196
      %p203 = scmp.eq.s32.totalorder %s24, 2
      %p204 = por %p202, %p203
      %p205 = scmp.ne.s32.totalorder %s197, %s200
      %p206 = scmp.eq.s32.totalorder %s24, 0
      %p207 = por %p205, %p206
      %p208 = scmp.ne.s32.totalorder %s197, %s200
      %p209 = scmp.eq.s32.totalorder %s29, 2
      %p210 = por %p208, %p209
      %p211 = scmp.ne.s32.totalorder %s200, %s201
      %p212 = scmp.eq.s32.totalorder %s29, 0
      %p213 = por %p211, %p212
      %p214 = scmp.ne.s32.totalorder %s200, %s201
      %p215 = scmp.eq.s32.totalorder %s30, 2
      %p216 = por %p214, %p215
      %p218 = scmp.ne.s32.totalorder %s201, %s217
      %p219 = scmp.eq.s32.totalorder %s30, 0
      %p220 = por %p218, %p219
      %s222 = sadd.s32 %s221, 1
      %p225 = scmp.eq.s32.totalorder %s24, 2
      %p226 = scmp.ne.s32.totalorder %s221, %s223
      %p227 = scmp.eq.s32.totalorder %s24, 0
      %p228 = por %p226, %p227
      %p229 = scmp.ne.s32.totalorder %s221, %s223
      %p230 = scmp.eq.s32.totalorder %s29, 2
      %p231 = por %p229, %p230
      %p232 = scmp.ne.s32.totalorder %s223, %s224
      %p233 = scmp.eq.s32.totalorder %s29, 0
      %p234 = por %p232, %p233
      %p235 = scmp.ne.s32.totalorder %s223, %s224
      %p236 = scmp.eq.s32.totalorder %s30, 2
      %p237 = por %p235, %p236
      %p239 = scmp.ne.s32.totalorder %s224, %s238
      %p240 = scmp.eq.s32.totalorder %s30, 0
      %p241 = por %p239, %p240
      %s243 = sadd.s32 %s242, 1
      %p246 = scmp.eq.s32.totalorder %s24, 2
      %p247 = scmp.ne.s32.totalorder %s242, %s244
      %p248 = scmp.eq.s32.totalorder %s24, 0
      %p249 = por %p247, %p248
      %p250 = scmp.ne.s32.totalorder %s242, %s244
      %p251 = scmp.eq.s32.totalorder %s29, 2
      %p252 = por %p250, %p251
      %p253 = scmp.ne.s32.totalorder %s244, %s245
      %p254 = scmp.eq.s32.totalorder %s29, 0
      %p255 = por %p253, %p254
      %p256 = scmp.ne.s32.totalorder %s244, %s245
      %p257 = scmp.eq.s32.totalorder %s30, 2
      %p258 = por %p256, %p257
      %p260 = scmp.ne.s32.totalorder %s245, %s259
      %p261 = scmp.eq.s32.totalorder %s30, 0
      %p262 = por %p260, %p261
      %s264 = sadd.s32 %s263, 1
      %p267 = scmp.eq.s32.totalorder %s24, 2
      %p268 = scmp.ne.s32.totalorder %s263, %s265
      %p269 = scmp.eq.s32.totalorder %s24, 0
      %p270 = por %p268, %p269
      %p271 = scmp.ne.s32.totalorder %s263, %s265
      %p272 = scmp.eq.s32.totalorder %s29, 2
      %p273 = por %p271, %p272
      %p274 = scmp.ne.s32.totalorder %s265, %s266
      %p275 = scmp.eq.s32.totalorder %s29, 0
      %p276 = por %p274, %p275
      %p277 = scmp.ne.s32.totalorder %s265, %s266
      %p278 = scmp.eq.s32.totalorder %s30, 2
      %p279 = por %p277, %p278
      %p281 = scmp.ne.s32.totalorder %s266, %s280
      %p282 = scmp.eq.s32.totalorder %s30, 0
      %p283 = por %p281, %p282
      %s284 = ssub.s32 %s31, %s43
      %p285 = scmp.eq.s32.totalorder %s284, 0
      %s287 = sadd.s32 %s286, 1
      %s288 = scalar_select %p285, %s286, %s287
      %p291 = pneg %p285
      %p292 = scmp.eq.s32.totalorder %s24, 2
      %p293 = por %p291, %p292
      %p294 = scmp.ne.s32.totalorder %s286, %s289
      %p295 = scmp.eq.s32.totalorder %s24, 0
      %p296 = por %p294, %p295
      %p297 = scmp.ne.s32.totalorder %s286, %s289
      %p298 = scmp.eq.s32.totalorder %s29, 2
      %p299 = por %p297, %p298
      %p300 = scmp.ne.s32.totalorder %s289, %s290
      %p301 = scmp.eq.s32.totalorder %s29, 0
      %p302 = por %p300, %p301
      %p303 = scmp.ne.s32.totalorder %s289, %s290
      %p304 = scmp.eq.s32.totalorder %s30, 2
      %p305 = por %p303, %p304
      %p307 = scmp.ne.s32.totalorder %s290, %s306
      %p308 = scmp.eq.s32.totalorder %s30, 0
      %p309 = por %p307, %p308
      %p310 = scmp.le.s32.totalorder 1, %s24
      %p311 = scmp.lt.s32.totalorder %s24, 4
      %p312 = pnand %p310, %p311
      %p313 = pneg %p312
      // Predicated region
      $region9: #{transformer_forecaster.1} parent=5 // pred_check
        _
      $region10: #{transformer_forecaster.1} parent=5 // pred_check_branch
        %315 = sbr.rel (%p312) target = $region12
      $region11: #{transformer_forecaster.1} parent=5 // pred_region
        %s316 = ssub.s32 %s24, 1
        // Predicated region
        $region13: #{transformer_forecaster.1} parent=11 // pred_check
          %p317 = pneg %p62
        $region14: #{transformer_forecaster.1} parent=11 // pred_check_branch
          %319 = sbr.rel (%p317) target = $region16
        $region15: #{transformer_forecaster.1} parent=11 // pred_region
          %s320 = smul.u32 2, %s33
          %p321 = scmp.lt.s32.totalorder %s320, 1
          %s322 = scalar_select %p321, %s320, 1
          %s323 = smul.addr %s322, 4
          %s324 = scalar_lea.vmem %s0, %s323
          %s325 = smul.u32 2, %s33
        $region16: #{transformer_forecaster.1} parent=11 // pred_fallthru
          _
        // Predicated region
        $region17: #{transformer_forecaster.1} parent=11 // pred_check
          %p326 = pneg %p83
        $region18: #{transformer_forecaster.1} parent=11 // pred_check_branch
          %328 = sbr.rel (%p326) target = $region20
        $region19: #{transformer_forecaster.1} parent=11 // pred_region
          _
        $region20: #{transformer_forecaster.1} parent=11 // pred_fallthru
          _
        // Predicated region
        $region21: #{transformer_forecaster.1} parent=11 // pred_check
          %p329 = pneg %p234
        $region22: #{transformer_forecaster.1} parent=11 // pred_check_branch
          %331 = sbr.rel (%p329) target = $region24
        $region23: #{transformer_forecaster.1} parent=11 // pred_region
          %s333 = ssub.s32 1024, 1024
          %334 = vsyncadd [#allocation10], %s333
          %s335 = sshll.u32 [#allocation9], 4
          %s336 = int_to_ptr.vmem [resolvable:$true] %s335
          %341 = dma.hbm_to_vmem [thread:$0]  %s7, 1024, %s336, [#allocation10], 64, 64, 4
        $region24: #{transformer_forecaster.1} parent=11 // pred_fallthru
          _
        // Predicated region
        $region25: #{transformer_forecaster.1} parent=11 // pred_check
          %p342 = pneg %p255
        $region26: #{transformer_forecaster.1} parent=11 // pred_check_branch
          %344 = sbr.rel (%p342) target = $region28
        $region27: #{transformer_forecaster.1} parent=11 // pred_region
          _
        $region28: #{transformer_forecaster.1} parent=11 // pred_fallthru
          _
        // Predicated region
        $region29: #{transformer_forecaster.1} parent=11 // pred_check
          %p345 = pneg %p276
        $region30: #{transformer_forecaster.1} parent=11 // pred_check_branch
          %347 = sbr.rel (%p345) target = $region32
        $region31: #{transformer_forecaster.1} parent=11 // pred_region
          _
        $region32: #{transformer_forecaster.1} parent=11 // pred_fallthru
          _
      $region12: #{transformer_forecaster.1} parent=5 // pred_fallthru
        _
      %p348 = scmp.lt.s32.totalorder %s24, 3
      // Predicated region
      $region33: #{transformer_forecaster.1} parent=5 // pred_check
        %p349 = pneg %p348
      $region34: #{transformer_forecaster.1} parent=5 // pred_check_branch
        %351 = sbr.rel (%p349) target = $region36
      $region35: #{transformer_forecaster.1} parent=5 // pred_region
        // Predicated region
        $region37: #{transformer_forecaster.1} parent=35 // pred_check
          %p352 = pneg %p103
        $region38: #{transformer_forecaster.1} parent=35 // pred_check_branch
          %354 = sbr.rel (%p352) target = $region40
        $region39: #{transformer_forecaster.1} parent=35 // pred_region
          %s355 = sand.u32 %s93, 1
          %s356 = scalar_lea.sflag [#allocation4], %s355
          %s357 = sand.u32 %s93, 1
          %s358 = smul.addr %s357, 192
          %s359 = scalar_lea.vmem [#allocation3], %s358
          %s361 = ssub.s32 3072, 3072
          %362 = vsyncadd %s356, %s361
          %s363 = smul.addr %s32, 48
          %s364 = smul.addr %s363, 64
          %s365 = scalar_lea.hbm %s2, %s364
          %s366 = sshll.u32 %s359, 4
          %s367 = int_to_ptr.vmem [resolvable:$true] %s366
          %372 = dma.hbm_to_vmem [thread:$0]  %s365, 3072, %s367, %s356, 192, 192, 12
        $region40: #{transformer_forecaster.1} parent=35 // pred_fallthru
          _
        // Predicated region
        $region41: #{transformer_forecaster.1} parent=35 // pred_check
          %p373 = pneg %p129
        $region42: #{transformer_forecaster.1} parent=35 // pred_check_branch
          %375 = sbr.rel (%p373) target = $region44
        $region43: #{transformer_forecaster.1} parent=35 // pred_region
          %p376 = scmp.lt.s32.totalorder %s32, 2
          %s377 = scalar_select %p376, %s32, 2
          %s378 = smul.addr %s377, 16
          %s379 = smul.addr %s378, 4
          %s380 = scalar_lea.vmem %s3, %s379
        $region44: #{transformer_forecaster.1} parent=35 // pred_fallthru
          _
        // Predicated region
        $region45: #{transformer_forecaster.1} parent=35 // pred_check
          %p381 = pneg %p155
        $region46: #{transformer_forecaster.1} parent=35 // pred_check_branch
          %383 = sbr.rel (%p381) target = $region48
        $region47: #{transformer_forecaster.1} parent=35 // pred_region
          %s384 = sand.u32 %s24, 1
          %s385 = scalar_lea.sflag [#allocation7], %s384
          %s386 = sand.u32 %s145, 1
          %s387 = smul.addr %s386, 128
          %s388 = scalar_lea.vmem [#allocation6], %s387
          %s390 = ssub.s32 2048, 2048
          %391 = vsyncadd %s385, %s390
          %s392 = smul.addr %s32, 32
          %s393 = smul.addr %s392, 64
          %s394 = scalar_lea.hbm %s4, %s393
          %s395 = sshll.u32 %s388, 4
          %s396 = int_to_ptr.vmem [resolvable:$true] %s395
          %401 = dma.hbm_to_vmem [thread:$0]  %s394, 2048, %s396, %s385, 128, 128, 8
        $region48: #{transformer_forecaster.1} parent=35 // pred_fallthru
          _
        // Predicated region
        $region49: #{transformer_forecaster.1} parent=35 // pred_check
          %p402 = pneg %p181
        $region50: #{transformer_forecaster.1} parent=35 // pred_check_branch
          %404 = sbr.rel (%p402) target = $region52
        $region51: #{transformer_forecaster.1} parent=35 // pred_region
          %s405 = sand.u32 %s24, 1
          %s406 = scalar_lea.sflag [#allocation7], %s405
          %s407 = sand.u32 %s171, 1
          %s408 = smul.addr %s407, 128
          %s409 = scalar_lea.vmem [#allocation8], %s408
          %s411 = ssub.s32 2048, 2048
          %412 = vsyncadd %s406, %s411
          %s413 = smul.addr %s32, 32
          %s414 = smul.addr %s413, 64
          %s415 = scalar_lea.hbm %s5, %s414
          %s416 = sshll.u32 %s409, 4
          %s417 = int_to_ptr.vmem [resolvable:$true] %s416
          %422 = dma.hbm_to_vmem [thread:$0]  %s415, 2048, %s417, %s406, 64, 64, 4
        $region52: #{transformer_forecaster.1} parent=35 // pred_fallthru
          _
        // Predicated region
        $region53: #{transformer_forecaster.1} parent=35 // pred_check
          %p423 = pneg %p207
        $region54: #{transformer_forecaster.1} parent=35 // pred_check_branch
          %425 = sbr.rel (%p423) target = $region56
        $region55: #{transformer_forecaster.1} parent=35 // pred_region
          %p426 = scmp.lt.s32.totalorder %s32, 2
          %s427 = scalar_select %p426, %s32, 2
          %s428 = smul.addr %s427, 2
          %s429 = smul.addr %s428, 8
          %s430 = scalar_lea.vmem %s6, %s429
        $region56: #{transformer_forecaster.1} parent=35 // pred_fallthru
          _
      $region36: #{transformer_forecaster.1} parent=5 // pred_fallthru
        _
      %p431 = scmp.le.s32.totalorder 1, %s24
      %p432 = scmp.lt.s32.totalorder %s24, 4
      %p433 = pnand %p431, %p432
      %p434 = pneg %p433
      // Predicated region
      $region57: #{transformer_forecaster.1} parent=5 // pred_check
        _
      $region58: #{transformer_forecaster.1} parent=5 // pred_check_branch
        %436 = sbr.rel (%p433) target = $region60
      $region59: #{transformer_forecaster.1} parent=5 // pred_region
        %s437 = ssub.s32 %s24, 1
        %s438 = sand.u32 %s96, 1
        %s439 = scalar_lea.sflag [#allocation4], %s438
        %s440 = sand.u32 %s96, 1
        %s441 = smul.addr %s440, 192
        %s442 = scalar_lea.vmem [#allocation3], %s441
        // Predicated region
        $region61: #{transformer_forecaster.1} parent=59 // pred_check
          %p443 = pneg %p109
        $region62: #{transformer_forecaster.1} parent=59 // pred_check_branch
          %445 = sbr.rel (%p443) target = $region64
        $region63: #{transformer_forecaster.1} parent=59 // pred_region
          %446 = dma.done %s439, 3072
        $region64: #{transformer_forecaster.1} parent=59 // pred_fallthru
          _
        %s447 = sand.u32 %s29, 1
        %s448 = scalar_lea.sflag [#allocation7], %s447
        %s449 = sand.u32 %s148, 1
        %s450 = smul.addr %s449, 128
        %s451 = scalar_lea.vmem [#allocation6], %s450
        // Predicated region
        $region65: #{transformer_forecaster.1} parent=59 // pred_check
          %p452 = pneg %p161
        $region66: #{transformer_forecaster.1} parent=59 // pred_check_branch
          %454 = sbr.rel (%p452) target = $region68
        $region67: #{transformer_forecaster.1} parent=59 // pred_region
          %455 = dma.done %s448, 2048
        $region68: #{transformer_forecaster.1} parent=59 // pred_fallthru
          _
        %s456 = sand.u32 %s29, 1
        %s457 = scalar_lea.sflag [#allocation7], %s456
        %s458 = sand.u32 %s174, 1
        %s459 = smul.addr %s458, 128
        %s460 = scalar_lea.vmem [#allocation8], %s459
        // Predicated region
        $region69: #{transformer_forecaster.1} parent=59 // pred_check
          %p461 = pneg %p187
        $region70: #{transformer_forecaster.1} parent=59 // pred_check_branch
          %463 = sbr.rel (%p461) target = $region72
        $region71: #{transformer_forecaster.1} parent=59 // pred_region
          %464 = dma.done %s457, 2048
        $region72: #{transformer_forecaster.1} parent=59 // pred_fallthru
          _
        // Predicated region
        $region73: #{transformer_forecaster.1} parent=59 // pred_check
          %p465 = pneg %p234
        $region74: #{transformer_forecaster.1} parent=59 // pred_check_branch
          %467 = sbr.rel (%p465) target = $region76
        $region75: #{transformer_forecaster.1} parent=59 // pred_region
          %468 = dma.done [#allocation10], 1024
        $region76: #{transformer_forecaster.1} parent=59 // pred_fallthru
          _
        %s469 = smul.u32 2, %s33
        %p470 = scmp.lt.s32.totalorder %s469, 1
        %s471 = scalar_select %p470, %s469, 1
        %s472 = smul.addr %s471, 4
        %s473 = scalar_lea.vmem %s0, %s472
        %p474 = pneg %p62
        %p475 = pneg %p59
        %p476 = pneg %p83
        %p477 = pneg %p80
        %s478 = sand.u32 %s96, 1
        %s479 = scalar_lea.sflag [#allocation4], %s478
        %s480 = sand.u32 %s96, 1
        %s481 = smul.addr %s480, 192
        %s482 = scalar_lea.vmem [#allocation3], %s481
        %p483 = pneg %p109
        %p484 = pneg %p106
        %p485 = scmp.lt.s32.totalorder %s34, 2
        %s486 = scalar_select %p485, %s34, 2
        %s487 = smul.addr %s486, 16
        %s488 = smul.addr %s487, 4
        %s489 = scalar_lea.vmem %s3, %s488
        %p490 = pneg %p135
        %p491 = pneg %p132
        %s492 = sand.u32 %s29, 1
        %s493 = scalar_lea.sflag [#allocation7], %s492
        %s494 = sand.u32 %s148, 1
        %s495 = smul.addr %s494, 128
        %s496 = scalar_lea.vmem [#allocation6], %s495
        %p497 = pneg %p161
        %p498 = pneg %p158
        %s499 = sand.u32 %s29, 1
        %s500 = scalar_lea.sflag [#allocation7], %s499
        %s501 = sand.u32 %s174, 1
        %s502 = smul.addr %s501, 128
        %s503 = scalar_lea.vmem [#allocation8], %s502
        %p504 = pneg %p187
        %p505 = pneg %p184
        %p506 = scmp.lt.s32.totalorder %s34, 2
        %s507 = scalar_select %p506, %s34, 2
        %s508 = smul.addr %s507, 2
        %s509 = smul.addr %s508, 8
        %s510 = scalar_lea.vmem %s6, %s509
        %p511 = pneg %p213
        %p512 = pneg %p210
        %p513 = pneg %p234
        %p514 = pneg %p231
        %p515 = pneg %p255
        %p516 = pneg %p252
        %p517 = pneg %p276
        %p518 = pneg %p273
        %p519 = pneg %p302
        %p520 = pneg %p299
        %s521 = smul.u32 2, %s33
        %p522 = scmp.lt.s32.totalorder %s521, 1
        %s523 = scalar_select %p522, %s521, 1
        %s524 = smul.addr %s523, 4
        %s525 = scalar_lea.vmem %s0, %s524
        %s526 = smul.u32 2, %s33
        %p527 = scmp.lt.s32.totalorder %s34, 2
        %s528 = scalar_select %p527, %s34, 2
        %s529 = smul.addr %s528, 16
        %s530 = smul.addr %s529, 4
        %s531 = scalar_lea.vmem %s3, %s530
        %p532 = scmp.lt.s32.totalorder %s34, 2
        %s533 = scalar_select %p532, %s34, 2
        %s534 = smul.addr %s533, 2
        %s535 = smul.addr %s534, 8
        %s536 = scalar_lea.vmem %s6, %s535
        %v538 = vld [vmem:[%s9] sm:$0x7]
        %p539 = scmp.eq.s32.totalorder %s34, 0
        // Predicated region
        $region77: #{transformer_forecaster.1} parent=59 // pred_check
          %p540 = pneg %p539
        $region78: #{transformer_forecaster.1} parent=59 // pred_check_branch
          %542 = sbr.rel (%p540) target = $region80
        $region79: #{transformer_forecaster.1} parent=59 // pred_region
          %v543 = vld [vmem:[%s525] sm:$0xf]
          %v544 = vld [vmem:[%s525 + $0x4] sm:$0xf]
          %v545 = vld [vmem:[%s1] sm:$0xf]
          %v546 = vld [vmem:[%s1 + $0x4] sm:$0xf]
          %v547 = vlaneseq
          %v548 = vshrl.u32 %v547, 7
          %v549 = vsub.s32 0, %v548
          %v550 = vrot.slane %v538, %v549
          %v553 = vunpack.c.l.b16 %v543
          %v554 = vunpack.c.l.b16 %v544
          %v555 = vpack.c.b16 %v554, %v553
          %v558 = vunpack.c.l.b16 %v545
          %v559 = vunpack.c.l.b16 %v546
          %v560 = vpack.c.b16 %v559, %v558
          %vm562 = vcmask 130048
          %v564 = vsel %vm562, %v555, 0
          %566 = vmatprep.subr.bf16.mxu0 0
          %567 = vmatpush1.bf16.msra.mxu0 %v560
          %568 = vmatprep.subr.bf16.mxu0 0
          %569 = vmatpush1.bf16.msra.mxu0 0
          %570 = vmatprep.subr.bf16.mxu0 0
          %571 = vmatpush1.bf16.msra.mxu0 0
          %572 = vmatprep.subr.bf16.mxu0 0
          %573 = vmatpush1.bf16.msra.mxu0 0
          %574 = vmatprep.subr.bf16.mxu0 0
          %575 = vmatpush1.bf16.msra.mxu0 0
          %576 = vmatprep.subr.bf16.mxu0 0
          %577 = vmatpush1.bf16.msra.mxu0 0
          %578 = vmatprep.subr.bf16.mxu0 0
          %579 = vmatpush1.bf16.msra.mxu0 0
          %580 = vmatprep.subr.bf16.mxu0 0
          %581 = vmatpush1.bf16.msra.mxu0 0
          %582 = vmatprep.subr.bf16.mxu0 0
          %583 = vmatpush1.bf16.msra.mxu0 0
          %584 = vmatprep.subr.bf16.mxu0 0
          %585 = vmatpush1.bf16.msra.mxu0 0
          %586 = vmatprep.subr.bf16.mxu0 0
          %587 = vmatpush1.bf16.msra.mxu0 0
          %588 = vmatprep.subr.bf16.mxu0 0
          %589 = vmatpush1.bf16.msra.mxu0 0
          %590 = vmatprep.subr.bf16.mxu0 0
          %591 = vmatpush1.bf16.msra.mxu0 0
          %592 = vmatprep.subr.bf16.mxu0 0
          %593 = vmatpush1.bf16.msra.mxu0 0
          %594 = vmatprep.subr.bf16.mxu0 0
          %595 = vmatpush1.bf16.msra.mxu0 0
          %596 = vmatprep.subr.bf16.mxu0 0
          %597 = vmatpush1.bf16.msra.mxu0 0
          %598 = vmatprep.mubr.bf16.mxu0 0
          %599 = vmatmul.mubr.bf16.gmra.mrb[0].mxu0 %v564
          %v600 = vpop.f32.mrb[0].mxu0
          %v601 = vadd.f32 %v550, %v600
          %v602 = vpop.f32.mrb[0].mxu0
          %v603 = vpop.f32.mrb[0].mxu0
          %v604 = vadd.f32 %v550, %v603
          %v605 = vpop.f32.mrb[0].mxu0
          %606 = vdwg.mxu0
          %607 = vst [vmem:[#allocation2] sm:$0xff] %v601
          %608 = vst [vmem:[#allocation2 + $0x8] sm:$0xff] %v604
        $region80: #{transformer_forecaster.1} parent=59 // pred_fallthru
          _
        %v609 = vld [vmem:[#allocation2] sm:$0xff]
        %v610 = vld [vmem:[#allocation2 + $0x8] sm:$0xff]
        %v611 = vld [vmem:[%s536] sm:$0xff]
        %v612 = vld [vmem:[%s536 + $0x8] sm:$0x7]
        %v613 = vld [vmem:[%s442] sm:$0xff]
        %v614 = vld [vmem:[%s442 + $0x8] sm:$0xf]
        %v615 = vld [vmem:[%s442 + $0xc] sm:$0xff]
        %v616 = vld [vmem:[%s442 + $0x14] sm:$0xf]
        %v617 = vld [vmem:[%s442 + $0x18] sm:$0xff]
        %v618 = vld [vmem:[%s442 + $0x20] sm:$0xf]
        %v619 = vld [vmem:[%s442 + $0x24] sm:$0xff]
        %v620 = vld [vmem:[%s442 + $0x2c] sm:$0xf]
        %v621 = vld [vmem:[%s442 + $0x30] sm:$0xff]
        %v622 = vld [vmem:[%s442 + $0x38] sm:$0xf]
        %v623 = vld [vmem:[%s442 + $0x3c] sm:$0xff]
        %v624 = vld [vmem:[%s442 + $0x44] sm:$0xf]
        %v625 = vld [vmem:[%s442 + $0x48] sm:$0xff]
        %v626 = vld [vmem:[%s442 + $0x50] sm:$0xf]
        %v627 = vld [vmem:[%s442 + $0x54] sm:$0xff]
        %v628 = vld [vmem:[%s442 + $0x5c] sm:$0xf]
        %v629 = vld [vmem:[%s442 + $0x60] sm:$0xff]
        %v630 = vld [vmem:[%s442 + $0x68] sm:$0xf]
        %v631 = vld [vmem:[%s442 + $0x6c] sm:$0xff]
        %v632 = vld [vmem:[%s442 + $0x74] sm:$0xf]
        %v633 = vld [vmem:[%s442 + $0x78] sm:$0xff]
        %v634 = vld [vmem:[%s442 + $0x80] sm:$0xf]
        %v635 = vld [vmem:[%s442 + $0x84] sm:$0xff]
        %v636 = vld [vmem:[%s442 + $0x8c] sm:$0xf]
        %v637 = vld [vmem:[%s442 + $0x90] sm:$0xff]
        %v638 = vld [vmem:[%s442 + $0x98] sm:$0xf]
        %v639 = vld [vmem:[%s442 + $0x9c] sm:$0xff]
        %v640 = vld [vmem:[%s442 + $0xa4] sm:$0xf]
        %v641 = vld [vmem:[%s442 + $0xa8] sm:$0xff]
        %v642 = vld [vmem:[%s442 + $0xb0] sm:$0xf]
        %v643 = vld [vmem:[%s442 + $0xb4] sm:$0xff]
        %v644 = vld [vmem:[%s442 + $0xbc] sm:$0xf]
        %v645 = vld [vmem:[%s531] sm:$0xf]
        %v646 = vld [vmem:[%s531 + $0x4] sm:$0xf]
        %v647 = vld [vmem:[%s531 + $0x8] sm:$0xf]
        %v648 = vld [vmem:[%s531 + $0xc] sm:$0xf]
        %v649 = vld [vmem:[%s531 + $0x10] sm:$0xf]
        %v650 = vld [vmem:[%s531 + $0x14] sm:$0xf]
        %v651 = vld [vmem:[%s531 + $0x18] sm:$0xf]
        %v652 = vld [vmem:[%s531 + $0x1c] sm:$0xf]
        %v653 = vld [vmem:[%s531 + $0x20] sm:$0xf]
        %v654 = vld [vmem:[%s531 + $0x24] sm:$0xf]
        %v655 = vld [vmem:[%s531 + $0x28] sm:$0xf]
        %v656 = vld [vmem:[%s531 + $0x2c] sm:$0xf]
        %v657 = vld [vmem:[%s531 + $0x30] sm:$0xf]
        %v658 = vld [vmem:[%s531 + $0x34] sm:$0xf]
        %v659 = vld [vmem:[%s531 + $0x38] sm:$0xf]
        %v660 = vld [vmem:[%s531 + $0x3c] sm:$0xf]
        %v661 = vld [vmem:[%s451] sm:$0xff]
        %v662 = vld [vmem:[%s451 + $0x8] sm:$0xff]
        %v663 = vld [vmem:[%s451 + $0x10] sm:$0xff]
        %v664 = vld [vmem:[%s451 + $0x18] sm:$0xff]
        %v665 = vld [vmem:[%s451 + $0x20] sm:$0xff]
        %v666 = vld [vmem:[%s451 + $0x28] sm:$0xff]
        %v667 = vld [vmem:[%s451 + $0x30] sm:$0xff]
        %v668 = vld [vmem:[%s451 + $0x38] sm:$0xff]
        %v669 = vld [vmem:[%s451 + $0x40] sm:$0xff]
        %v670 = vld [vmem:[%s451 + $0x48] sm:$0xff]
        %v671 = vld [vmem:[%s451 + $0x50] sm:$0xff]
        %v672 = vld [vmem:[%s451 + $0x58] sm:$0xff]
        %v673 = vld [vmem:[%s451 + $0x60] sm:$0xff]
        %v674 = vld [vmem:[%s451 + $0x68] sm:$0xff]
        %v675 = vld [vmem:[%s451 + $0x70] sm:$0xff]
        %v676 = vld [vmem:[%s451 + $0x78] sm:$0xff]
        %v677 = vld [vmem:[%s460] sm:$0xf]
        %v678 = vld [vmem:[%s460 + $0x4] sm:$0xf]
        %v679 = vld [vmem:[%s460 + $0x8] sm:$0xf]
        %v680 = vld [vmem:[%s460 + $0xc] sm:$0xf]
        %v681 = vld [vmem:[%s460 + $0x10] sm:$0xf]
        %v682 = vld [vmem:[%s460 + $0x14] sm:$0xf]
        %v683 = vld [vmem:[%s460 + $0x18] sm:$0xf]
        %v684 = vld [vmem:[%s460 + $0x1c] sm:$0xf]
        %v685 = vld [vmem:[%s460 + $0x20] sm:$0xf]
        %v686 = vld [vmem:[%s460 + $0x24] sm:$0xf]
        %v687 = vld [vmem:[%s460 + $0x28] sm:$0xf]
        %v688 = vld [vmem:[%s460 + $0x2c] sm:$0xf]
        %v689 = vld [vmem:[%s460 + $0x30] sm:$0xf]
        %v690 = vld [vmem:[%s460 + $0x34] sm:$0xf]
        %v691 = vld [vmem:[%s460 + $0x38] sm:$0xf]
        %v692 = vld [vmem:[%s460 + $0x3c] sm:$0xf]
        %v693 = vld [vmem:[%s460 + $0x40] sm:$0xf]
        %v694 = vld [vmem:[%s460 + $0x44] sm:$0xf]
        %v695 = vld [vmem:[%s460 + $0x48] sm:$0xf]
        %v696 = vld [vmem:[%s460 + $0x4c] sm:$0xf]
        %v697 = vld [vmem:[%s460 + $0x50] sm:$0xf]
        %v698 = vld [vmem:[%s460 + $0x54] sm:$0xf]
        %v699 = vld [vmem:[%s460 + $0x58] sm:$0xf]
        %v700 = vld [vmem:[%s460 + $0x5c] sm:$0xf]
        %v701 = vld [vmem:[%s460 + $0x60] sm:$0xf]
        %v702 = vld [vmem:[%s460 + $0x64] sm:$0xf]
        %v703 = vld [vmem:[%s460 + $0x68] sm:$0xf]
        %v704 = vld [vmem:[%s460 + $0x6c] sm:$0xf]
        %v705 = vld [vmem:[%s460 + $0x70] sm:$0xf]
        %v706 = vld [vmem:[%s460 + $0x74] sm:$0xf]
        %v707 = vld [vmem:[%s460 + $0x78] sm:$0xf]
        %v708 = vld [vmem:[%s460 + $0x7c] sm:$0xf]
        %v709 = vpack.c.bf16 %v610, %v609
        %v742 = vunpack.c.l.b16 %v613
        %v743 = vunpack.c.h.b16 %v613
        %v744 = vunpack.c.l.b16 %v614
        %v745 = vunpack.c.l.b16 %v615
        %v746 = vunpack.c.h.b16 %v615
        %v747 = vunpack.c.l.b16 %v616
        %v748 = vunpack.c.l.b16 %v617
        %v749 = vunpack.c.h.b16 %v617
        %v750 = vunpack.c.l.b16 %v618
        %v751 = vunpack.c.l.b16 %v619
        %v752 = vunpack.c.h.b16 %v619
        %v753 = vunpack.c.l.b16 %v620
        %v754 = vunpack.c.l.b16 %v621
        %v755 = vunpack.c.h.b16 %v621
        %v756 = vunpack.c.l.b16 %v622
        %v757 = vunpack.c.l.b16 %v623
        %v758 = vunpack.c.h.b16 %v623
        %v759 = vunpack.c.l.b16 %v624
        %v760 = vunpack.c.l.b16 %v625
        %v761 = vunpack.c.h.b16 %v625
        %v762 = vunpack.c.l.b16 %v626
        %v763 = vunpack.c.l.b16 %v627
        %v764 = vunpack.c.h.b16 %v627
        %v765 = vunpack.c.l.b16 %v628
        %v766 = vunpack.c.l.b16 %v629
        %v767 = vunpack.c.h.b16 %v629
        %v768 = vunpack.c.l.b16 %v630
        %v769 = vunpack.c.l.b16 %v631
        %v770 = vunpack.c.h.b16 %v631
        %v771 = vunpack.c.l.b16 %v632
        %v772 = vunpack.c.l.b16 %v633
        %v773 = vunpack.c.h.b16 %v633
        %v774 = vunpack.c.l.b16 %v634
        %v775 = vunpack.c.l.b16 %v635
        %v776 = vunpack.c.h.b16 %v635
        %v777 = vunpack.c.l.b16 %v636
        %v778 = vunpack.c.l.b16 %v637
        %v779 = vunpack.c.h.b16 %v637
        %v780 = vunpack.c.l.b16 %v638
        %v781 = vunpack.c.l.b16 %v639
        %v782 = vunpack.c.h.b16 %v639
        %v783 = vunpack.c.l.b16 %v640
        %v784 = vunpack.c.l.b16 %v641
        %v785 = vunpack.c.h.b16 %v641
        %v786 = vunpack.c.l.b16 %v642
        %v787 = vunpack.c.l.b16 %v643
        %v788 = vunpack.c.h.b16 %v643
        %v789 = vunpack.c.l.b16 %v644
        %v790 = vpack.c.b16 %v745, %v742
        %v791 = vpack.c.b16 %v746, %v743
        %v792 = vpack.c.b16 %v747, %v744
        %v793 = vpack.c.b16 %v751, %v748
        %v794 = vpack.c.b16 %v752, %v749
        %v795 = vpack.c.b16 %v753, %v750
        %v796 = vpack.c.b16 %v757, %v754
        %v797 = vpack.c.b16 %v758, %v755
        %v798 = vpack.c.b16 %v759, %v756
        %v799 = vpack.c.b16 %v763, %v760
        %v800 = vpack.c.b16 %v764, %v761
        %v801 = vpack.c.b16 %v765, %v762
        %v802 = vpack.c.b16 %v769, %v766
        %v803 = vpack.c.b16 %v770, %v767
        %v804 = vpack.c.b16 %v771, %v768
        %v805 = vpack.c.b16 %v775, %v772
        %v806 = vpack.c.b16 %v776, %v773
        %v807 = vpack.c.b16 %v777, %v774
        %v808 = vpack.c.b16 %v781, %v778
        %v809 = vpack.c.b16 %v782, %v779
        %v810 = vpack.c.b16 %v783, %v780
        %v811 = vpack.c.b16 %v787, %v784
        %v812 = vpack.c.b16 %v788, %v785
        %v813 = vpack.c.b16 %v789, %v786
        %838 = vmatprep.subr.bf16.mxu0 %v791
        %839 = vmatpush1.bf16.msra.mxu0 %v790
        %840 = vmatprep.subr.bf16.mxu0 %v794
        %841 = vmatpush1.bf16.msra.mxu0 %v793
        %842 = vmatprep.subr.bf16.mxu0 %v797
        %843 = vmatpush1.bf16.msra.mxu0 %v796
        %844 = vmatprep.subr.bf16.mxu0 %v800
        %845 = vmatpush1.bf16.msra.mxu0 %v799
        %846 = vmatprep.subr.bf16.mxu0 %v803
        %847 = vmatpush1.bf16.msra.mxu0 %v802
        %848 = vmatprep.subr.bf16.mxu0 %v806
        %849 = vmatpush1.bf16.msra.mxu0 %v805
        %850 = vmatprep.subr.bf16.mxu0 %v809
        %851 = vmatpush1.bf16.msra.mxu0 %v808
        %852 = vmatprep.subr.bf16.mxu0 %v812
        %853 = vmatpush1.bf16.msra.mxu0 %v811
        %854 = vmatprep.subr.bf16.mxu0 0
        %855 = vmatpush1.bf16.msra.mxu0 0
        %856 = vmatprep.subr.bf16.mxu0 0
        %857 = vmatpush1.bf16.msra.mxu0 0
        %858 = vmatprep.subr.bf16.mxu0 0
        %859 = vmatpush1.bf16.msra.mxu0 0
        %860 = vmatprep.subr.bf16.mxu0 0
        %861 = vmatpush1.bf16.msra.mxu0 0
        %862 = vmatprep.subr.bf16.mxu0 0
        %863 = vmatpush1.bf16.msra.mxu0 0
        %864 = vmatprep.subr.bf16.mxu0 0
        %865 = vmatpush1.bf16.msra.mxu0 0
        %866 = vmatprep.subr.bf16.mxu0 0
        %867 = vmatpush1.bf16.msra.mxu0 0
        %868 = vmatprep.subr.bf16.mxu0 0
        %869 = vmatpush1.bf16.msra.mxu0 0
        %870 = vmatprep.mubr.bf16.mxu0 0
        %871 = vmatmul.mubr.bf16.gmra.mrb[0].mxu0 %v709
        %v872 = vpop.f32.mrb[0].mxu0
        %v873 = vadd.f32 0.0, %v872
        %v874 = vpop.f32.mrb[0].mxu0
        %v875 = vadd.f32 0.0, %v874
        %v876 = vpop.f32.mrb[0].mxu0
        %v877 = vadd.f32 0.0, %v876
        %v878 = vpop.f32.mrb[0].mxu0
        %v879 = vadd.f32 0.0, %v878
        %880 = vdwg.mxu0
        %881 = vmatprep.subr.bf16.mxu0 0
        %882 = vmatpush1.bf16.msra.mxu0 %v792
        %883 = vmatprep.subr.bf16.mxu0 0
        %884 = vmatpush1.bf16.msra.mxu0 %v795
        %885 = vmatprep.subr.bf16.mxu0 0
        %886 = vmatpush1.bf16.msra.mxu0 %v798
        %887 = vmatprep.subr.bf16.mxu0 0
        %888 = vmatpush1.bf16.msra.mxu0 %v801
        %889 = vmatprep.subr.bf16.mxu0 0
        %890 = vmatpush1.bf16.msra.mxu0 %v804
        %891 = vmatprep.subr.bf16.mxu0 0
        %892 = vmatpush1.bf16.msra.mxu0 %v807
        %893 = vmatprep.subr.bf16.mxu0 0
        %894 = vmatpush1.bf16.msra.mxu0 %v810
        %895 = vmatprep.subr.bf16.mxu0 0
        %896 = vmatpush1.bf16.msra.mxu0 %v813
        %897 = vmatprep.subr.bf16.mxu0 0
        %898 = vmatpush1.bf16.msra.mxu0 0
        %899 = vmatprep.subr.bf16.mxu0 0
        %900 = vmatpush1.bf16.msra.mxu0 0
        %901 = vmatprep.subr.bf16.mxu0 0
        %902 = vmatpush1.bf16.msra.mxu0 0
        %903 = vmatprep.subr.bf16.mxu0 0
        %904 = vmatpush1.bf16.msra.mxu0 0
        %905 = vmatprep.subr.bf16.mxu0 0
        %906 = vmatpush1.bf16.msra.mxu0 0
        %907 = vmatprep.subr.bf16.mxu0 0
        %908 = vmatpush1.bf16.msra.mxu0 0
        %909 = vmatprep.subr.bf16.mxu0 0
        %910 = vmatpush1.bf16.msra.mxu0 0
        %911 = vmatprep.subr.bf16.mxu0 0
        %912 = vmatpush1.bf16.msra.mxu0 0
        %913 = vmatprep.mubr.bf16.mxu0 0
        %914 = vmatmul.mubr.bf16.gmra.mrb[0].mxu0 %v709
        %v915 = vpop.f32.mrb[0].mxu0
        %v916 = vadd.f32 0.0, %v915
        %v917 = vpop.f32.mrb[0].mxu0
        %v918 = vpop.f32.mrb[0].mxu0
        %v919 = vadd.f32 0.0, %v918
        %v920 = vpop.f32.mrb[0].mxu0
        %921 = vdwg.mxu0
        %v922 = vlaneseq
        %v923 = vshrl.u32 %v922, 7
        %v924 = vsub.s32 0, %v923
        %v925 = vrot.slane %v611, %v924
        %v926 = vadd.f32 %v873, %v925
        %v927 = vadd.f32 %v877, %v925
        %v928 = vlaneseq
        %v929 = vshrl.u32 %v928, 7
        %v930 = vsub.s32 1, %v929
        %v931 = vrot.slane %v611, %v930
        %v932 = vadd.f32 %v875, %v931
        %v933 = vadd.f32 %v879, %v931
        %v934 = vlaneseq
        %v935 = vshrl.u32 %v934, 7
        %v936 = vsub.s32 2, %v935
        %v937 = vrot.slane %v611, %v936
        %v938 = vadd.f32 %v916, %v937
        %v939 = vadd.f32 %v919, %v937
        %v940 = vpack.c.bf16 %v927, %v926
        %v942 = vunpack.c.l.b16 %v940
        %v943 = vunpack.c.h.b16 %v940
        %v944 = vpack.c.b16 %v942, %v942
        %v945 = vpack.c.b16 %v943, %v943
        %v946 = vpack.c.bf16 %v933, %v932
        %v948 = vunpack.c.l.b16 %v946
        %v949 = vunpack.c.h.b16 %v946
        %v950 = vpack.c.b16 %v948, %v948
        %v951 = vpack.c.b16 %v949, %v949
        %v952 = vpack.c.bf16 %v939, %v938
        %v954 = vunpack.c.l.b16 %v952
        %v955 = vunpack.c.h.b16 %v952
        %v956 = vpack.c.b16 %v954, %v954
        %v957 = vpack.c.b16 %v955, %v955
        %vm958 = vcmask 130048
        %v960 = vsel %vm958, %v944, 0
        %v963 = vsel %vm958, %v950, 0
        %965 = vmatprep.subr.bf16.mxu0 0
        %966 = vmatpush1.bf16.xpose.msra.mxu0 %v963
        %967 = vmatprep.subr.bf16.mxu0 0
        %968 = vmatpush1.bf16.xpose.msra.mxu0 0
        %969 = vmatprep.subr.bf16.mxu0 0
        %970 = vmatpush1.bf16.xpose.msra.mxu0 0
        %971 = vmatprep.subr.bf16.mxu0 0
        %972 = vmatpush1.bf16.xpose.msra.mxu0 0
        %973 = vmatprep.subr.bf16.mxu0 0
        %974 = vmatpush1.bf16.xpose.msra.mxu0 0
        %975 = vmatprep.subr.bf16.mxu0 0
        %976 = vmatpush1.bf16.xpose.msra.mxu0 0
        %977 = vmatprep.subr.bf16.mxu0 0
        %978 = vmatpush1.bf16.xpose.msra.mxu0 0
        %979 = vmatprep.subr.bf16.mxu0 0
        %980 = vmatpush1.bf16.xpose.msra.mxu0 0
        %981 = vmatprep.subr.bf16.mxu0 0
        %982 = vmatpush1.bf16.xpose.msra.mxu0 0
        %983 = vmatprep.subr.bf16.mxu0 0
        %984 = vmatpush1.bf16.xpose.msra.mxu0 0
        %985 = vmatprep.subr.bf16.mxu0 0
        %986 = vmatpush1.bf16.xpose.msra.mxu0 0
        %987 = vmatprep.subr.bf16.mxu0 0
        %988 = vmatpush1.bf16.xpose.msra.mxu0 0
        %989 = vmatprep.subr.bf16.mxu0 0
        %990 = vmatpush1.bf16.xpose.msra.mxu0 0
        %991 = vmatprep.subr.bf16.mxu0 0
        %992 = vmatpush1.bf16.xpose.msra.mxu0 0
        %993 = vmatprep.subr.bf16.mxu0 0
        %994 = vmatpush1.bf16.xpose.msra.mxu0 0
        %995 = vmatprep.subr.bf16.mxu0 0
        %996 = vmatpush1.bf16.xpose.msra.mxu0 0
        %997 = vmatprep.mubr.bf16.mxu0 0
        %998 = vmatmul.mubr.bf16.gmra.mrb[0].mxu0 %v960
        %v999 = vpop.f32.mrb[0].mxu0
        %v1000 = vadd.f32 0.0, %v999
        %v1001 = vpop.f32.mrb[0].mxu0
        %v1002 = vpop.f32.mrb[0].mxu0
        %v1003 = vpop.f32.mrb[0].mxu0
        %1004 = vdwg.mxu0
        %v1006 = vsel %vm958, %v945, 0
        %v1009 = vsel %vm958, %v951, 0
        %1011 = vmatprep.subr.bf16.mxu0 0
        %1012 = vmatpush1.bf16.xpose.msra.mxu0 %v1009
        %1013 = vmatprep.subr.bf16.mxu0 0
        %1014 = vmatpush1.bf16.xpose.msra.mxu0 0
        %1015 = vmatprep.subr.bf16.mxu0 0
        %1016 = vmatpush1.bf16.xpose.msra.mxu0 0
        %1017 = vmatprep.subr.bf16.mxu0 0
        %1018 = vmatpush1.bf16.xpose.msra.mxu0 0
        %1019 = vmatprep.subr.bf16.mxu0 0
        %1020 = vmatpush1.bf16.xpose.msra.mxu0 0
        %1021 = vmatprep.subr.bf16.mxu0 0
        %1022 = vmatpush1.bf16.xpose.msra.mxu0 0
        %1023 = vmatprep.subr.bf16.mxu0 0
        %1024 = vmatpush1.bf16.xpose.msra.mxu0 0
        %1025 = vmatprep.subr.bf16.mxu0 0
        %1026 = vmatpush1.bf16.xpose.msra.mxu0 0
        %1027 = vmatprep.subr.bf16.mxu0 0
        %1028 = vmatpush1.bf16.xpose.msra.mxu0 0
        %1029 = vmatprep.subr.bf16.mxu0 0
        %1030 = vmatpush1.bf16.xpose.msra.mxu0 0
        %1031 = vmatprep.subr.bf16.mxu0 0
        %1032 = vmatpush1.bf16.xpose.msra.mxu0 0
        %1033 = vmatprep.subr.bf16.mxu0 0
        %1034 = vmatpush1.bf16.xpose.msra.mxu0 0
        %1035 = vmatprep.subr.bf16.mxu0 0
        %1036 = vmatpush1.bf16.xpose.msra.mxu0 0
        %1037 = vmatprep.subr.bf16.mxu0 0
        %1038 = vmatpush1.bf16.xpose.msra.mxu0 0
        %1039 = vmatprep.subr.bf16.mxu0 0
        %1040 = vmatpush1.bf16.xpose.msra.mxu0 0
        %1041 = vmatprep.subr.bf16.mxu0 0
        %1042 = vmatpush1.bf16.xpose.msra.mxu0 0
        %1043 = vmatprep.mubr.bf16.mxu0 0
        %1044 = vmatmul.mubr.bf16.gmra.mrb[0].mxu0 %v1006
        %v1045 = vpop.f32.mrb[0].mxu0
        %v1046 = vadd.f32 0.0, %v1045
        %v1047 = vpop.f32.mrb[0].mxu0
        %v1048 = vpop.f32.mrb[0].mxu0
        %v1049 = vpop.f32.mrb[0].mxu0
        %1050 = vdwg.mxu0
        %v1051 = vmul.f32 %v1000, 0.25
        %v1052 = vmul.f32 %v1046, 0.25
        %vm1053 = vcmask 64512
        %v1054 = vsel %vm1053, %v1051, -inf
        %1055 = vmax.xlane.f32.xlu0 %v1054
        %v1056 = vpop.xlane.xlu0 %1055
        %v1057 = vsel %vm1053, %v1052, -inf
        %1058 = vmax.xlane.f32.xlu0 %v1057
        %v1059 = vpop.xlane.xlu0 %1058
        %v1060 = vsub.f32 %v1051, %v1056
        %v1061 = vsub.f32 %v1052, %v1059
        %v1062 = vmul.f32 %v1060, 1.442695
        %v1063 = vpow.pop %v1062
        %v1064 = vmul.f32 %v1061, 1.442695
        %v1065 = vpow.pop %v1064
        %v1066 = vsel %vm1053, %v1063, 0.0
        %1067 = vadd.xlane.f32.xlu0 %v1066
        %v1068 = vpop.xlane.xlu0 %1067
        %v1069 = vsel %vm1053, %v1065, 0.0
        %1070 = vadd.xlane.f32.xlu0 %v1069
        %v1071 = vpop.xlane.xlu0 %1070
        %v1072 = vrcp.pop %v1068
        %v1073 = vrcp.pop %v1071
        %v1074 = vmul.f32 %v1063, %v1072
        %v1075 = vmul.f32 %v1065, %v1073
        %v1076 = vpack.c.bf16 %v1074, %v1074
        %v1077 = vpack.c.bf16 %v1075, %v1075
        %v1079 = vsel %vm1053, %v1076, 0
        %vm1081 = vcmask 1043456
        %v1083 = vsel %vm1081, %v956, 0
        %1085 = vmatprep.subr.bf16.mxu0 0
        %1086 = vmatpush1.bf16.msra.mxu0 %v1083
        %1087 = vmatprep.subr.bf16.mxu0 0
        %1088 = vmatpush1.bf16.msra.mxu0 0
        %1089 = vmatprep.subr.bf16.mxu0 0
        %1090 = vmatpush1.bf16.msra.mxu0 0
        %1091 = vmatprep.subr.bf16.mxu0 0
        %1092 = vmatpush1.bf16.msra.mxu0 0
        %1093 = vmatprep.subr.bf16.mxu0 0
        %1094 = vmatpush1.bf16.msra.mxu0 0
        %1095 = vmatprep.subr.bf16.mxu0 0
        %1096 = vmatpush1.bf16.msra.mxu0 0
        %1097 = vmatprep.subr.bf16.mxu0 0
        %1098 = vmatpush1.bf16.msra.mxu0 0
        %1099 = vmatprep.subr.bf16.mxu0 0
        %1100 = vmatpush1.bf16.msra.mxu0 0
        %1101 = vmatprep.subr.bf16.mxu0 0
        %1102 = vmatpush1.bf16.msra.mxu0 0
        %1103 = vmatprep.subr.bf16.mxu0 0
        %1104 = vmatpush1.bf16.msra.mxu0 0
        %1105 = vmatprep.subr.bf16.mxu0 0
        %1106 = vmatpush1.bf16.msra.mxu0 0
        %1107 = vmatprep.subr.bf16.mxu0 0
        %1108 = vmatpush1.bf16.msra.mxu0 0
        %1109 = vmatprep.subr.bf16.mxu0 0
        %1110 = vmatpush1.bf16.msra.mxu0 0
        %1111 = vmatprep.subr.bf16.mxu0 0
        %1112 = vmatpush1.bf16.msra.mxu0 0
        %1113 = vmatprep.subr.bf16.mxu0 0
        %1114 = vmatpush1.bf16.msra.mxu0 0
        %1115 = vmatprep.subr.bf16.mxu0 0
        %1116 = vmatpush1.bf16.msra.mxu0 0
        %1117 = vmatprep.mubr.bf16.mxu0 0
        %1118 = vmatmul.mubr.bf16.gmra.mrb[0].mxu0 %v1079
        %v1119 = vpop.f32.mrb[0].mxu0
        %v1120 = vadd.f32 0.0, %v1119
        %v1121 = vpop.f32.mrb[0].mxu0
        %v1122 = vpop.f32.mrb[0].mxu0
        %v1123 = vpop.f32.mrb[0].mxu0
        %1124 = vdwg.mxu0
        %v1126 = vsel %vm1053, %v1077, 0
        %v1129 = vsel %vm1081, %v957, 0
        %1131 = vmatprep.subr.bf16.mxu0 0
        %1132 = vmatpush1.bf16.msra.mxu0 %v1129
        %1133 = vmatprep.subr.bf16.mxu0 0
        %1134 = vmatpush1.bf16.msra.mxu0 0
        %1135 = vmatprep.subr.bf16.mxu0 0
        %1136 = vmatpush1.bf16.msra.mxu0 0
        %1137 = vmatprep.subr.bf16.mxu0 0
        %1138 = vmatpush1.bf16.msra.mxu0 0
        %1139 = vmatprep.subr.bf16.mxu0 0
        %1140 = vmatpush1.bf16.msra.mxu0 0
        %1141 = vmatprep.subr.bf16.mxu0 0
        %1142 = vmatpush1.bf16.msra.mxu0 0
        %1143 = vmatprep.subr.bf16.mxu0 0
        %1144 = vmatpush1.bf16.msra.mxu0 0
        %1145 = vmatprep.subr.bf16.mxu0 0
        %1146 = vmatpush1.bf16.msra.mxu0 0
        %1147 = vmatprep.subr.bf16.mxu0 0
        %1148 = vmatpush1.bf16.msra.mxu0 0
        %1149 = vmatprep.subr.bf16.mxu0 0
        %1150 = vmatpush1.bf16.msra.mxu0 0
        %1151 = vmatprep.subr.bf16.mxu0 0
        %1152 = vmatpush1.bf16.msra.mxu0 0
        %1153 = vmatprep.subr.bf16.mxu0 0
        %1154 = vmatpush1.bf16.msra.mxu0 0
        %1155 = vmatprep.subr.bf16.mxu0 0
        %1156 = vmatpush1.bf16.msra.mxu0 0
        %1157 = vmatprep.subr.bf16.mxu0 0
        %1158 = vmatpush1.bf16.msra.mxu0 0
        %1159 = vmatprep.subr.bf16.mxu0 0
        %1160 = vmatpush1.bf16.msra.mxu0 0
        %1161 = vmatprep.subr.bf16.mxu0 0
        %1162 = vmatpush1.bf16.msra.mxu0 0
        %1163 = vmatprep.mubr.bf16.mxu0 0
        %1164 = vmatmul.mubr.bf16.gmra.mrb[0].mxu0 %v1126
        %v1165 = vpop.f32.mrb[0].mxu0
        %v1166 = vadd.f32 0.0, %v1165
        %v1167 = vpop.f32.mrb[0].mxu0
        %v1168 = vpop.f32.mrb[0].mxu0
        %v1169 = vpop.f32.mrb[0].mxu0
        %1170 = vdwg.mxu0
        %v1171 = vpack.c.bf16 %v1166, %v1120
        %1172 = vrot.lane.b32.xlu0 %v944, 112
        %v1173 = vpop.permute.xlu0 %1172
        %1174 = vrot.lane.b32.xlu0 %v950, 112
        %v1175 = vpop.permute.xlu0 %1174
        %v1177 = vsel %vm958, %v1173, 0
        %v1180 = vsel %vm958, %v1175, 0
        %1182 = vmatprep.subr.bf16.mxu0 0
        %1183 = vmatpush1.bf16.xpose.msra.mxu0 %v1180
        %1184 = vmatprep.subr.bf16.mxu0 0
        %1185 = vmatpush1.bf16.xpose.msra.mxu0 0
        %1186 = vmatprep.subr.bf16.mxu0 0
        %1187 = vmatpush1.bf16.xpose.msra.mxu0 0
        %1188 = vmatprep.subr.bf16.mxu0 0
        %1189 = vmatpush1.bf16.xpose.msra.mxu0 0
        %1190 = vmatprep.subr.bf16.mxu0 0
        %1191 = vmatpush1.bf16.xpose.msra.mxu0 0
        %1192 = vmatprep.subr.bf16.mxu0 0
        %1193 = vmatpush1.bf16.xpose.msra.mxu0 0
        %1194 = vmatprep.subr.bf16.mxu0 0
        %1195 = vmatpush1.bf16.xpose.msra.mxu0 0
        %1196 = vmatprep.subr.bf16.mxu0 0
        %1197 = vmatpush1.bf16.xpose.msra.mxu0 0
        %1198 = vmatprep.subr.bf16.mxu0 0
        %1199 = vmatpush1.bf16.xpose.msra.mxu0 0
        %1200 = vmatprep.subr.bf16.mxu0 0
        %1201 = vmatpush1.bf16.xpose.msra.mxu0 0
        %1202 = vmatprep.subr.bf16.mxu0 0
        %1203 = vmatpush1.bf16.xpose.msra.mxu0 0
        %1204 = vmatprep.subr.bf16.mxu0 0
        %1205 = vmatpush1.bf16.xpose.msra.mxu0 0
        %1206 = vmatprep.subr.bf16.mxu0 0
        %1207 = vmatpush1.bf16.xpose.msra.mxu0 0
        %1208 = vmatprep.subr.bf16.mxu0 0
        %1209 = vmatpush1.bf16.xpose.msra.mxu0 0
        %1210 = vmatprep.subr.bf16.mxu0 0
        %1211 = vmatpush1.bf16.xpose.msra.mxu0 0
        %1212 = vmatprep.subr.bf16.mxu0 0
        %1213 = vmatpush1.bf16.xpose.msra.mxu0 0
        %1214 = vmatprep.mubr.bf16.mxu0 0
        %1215 = vmatmul.mubr.bf16.gmra.mrb[0].mxu0 %v1177
        %v1216 = vpop.f32.mrb[0].mxu0
        %v1217 = vadd.f32 0.0, %v1216
        %v1218 = vpop.f32.mrb[0].mxu0
        %v1219 = vpop.f32.mrb[0].mxu0
        %v1220 = vpop.f32.mrb[0].mxu0
        %1221 = vdwg.mxu0
        %1222 = vrot.lane.b32.xlu0 %v945, 112
        %v1223 = vpop.permute.xlu0 %1222
        %1224 = vrot.lane.b32.xlu0 %v951, 112
        %v1225 = vpop.permute.xlu0 %1224
        %v1227 = vsel %vm958, %v1223, 0
        %v1230 = vsel %vm958, %v1225, 0
        %1232 = vmatprep.subr.bf16.mxu0 0
        %1233 = vmatpush1.bf16.xpose.msra.mxu0 %v1230
        %1234 = vmatprep.subr.bf16.mxu0 0
        %1235 = vmatpush1.bf16.xpose.msra.mxu0 0
        %1236 = vmatprep.subr.bf16.mxu0 0
        %1237 = vmatpush1.bf16.xpose.msra.mxu0 0
        %1238 = vmatprep.subr.bf16.mxu0 0
        %1239 = vmatpush1.bf16.xpose.msra.mxu0 0
        %1240 = vmatprep.subr.bf16.mxu0 0
        %1241 = vmatpush1.bf16.xpose.msra.mxu0 0
        %1242 = vmatprep.subr.bf16.mxu0 0
        %1243 = vmatpush1.bf16.xpose.msra.mxu0 0
        %1244 = vmatprep.subr.bf16.mxu0 0
        %1245 = vmatpush1.bf16.xpose.msra.mxu0 0
        %1246 = vmatprep.subr.bf16.mxu0 0
        %1247 = vmatpush1.bf16.xpose.msra.mxu0 0
        %1248 = vmatprep.subr.bf16.mxu0 0
        %1249 = vmatpush1.bf16.xpose.msra.mxu0 0
        %1250 = vmatprep.subr.bf16.mxu0 0
        %1251 = vmatpush1.bf16.xpose.msra.mxu0 0
        %1252 = vmatprep.subr.bf16.mxu0 0
        %1253 = vmatpush1.bf16.xpose.msra.mxu0 0
        %1254 = vmatprep.subr.bf16.mxu0 0
        %1255 = vmatpush1.bf16.xpose.msra.mxu0 0
        %1256 = vmatprep.subr.bf16.mxu0 0
        %1257 = vmatpush1.bf16.xpose.msra.mxu0 0
        %1258 = vmatprep.subr.bf16.mxu0 0
        %1259 = vmatpush1.bf16.xpose.msra.mxu0 0
        %1260 = vmatprep.subr.bf16.mxu0 0
        %1261 = vmatpush1.bf16.xpose.msra.mxu0 0
        %1262 = vmatprep.subr.bf16.mxu0 0
        %1263 = vmatpush1.bf16.xpose.msra.mxu0 0
        %1264 = vmatprep.mubr.bf16.mxu0 0
        %1265 = vmatmul.mubr.bf16.gmra.mrb[0].mxu0 %v1227
        %v1266 = vpop.f32.mrb[0].mxu0
        %v1267 = vadd.f32 0.0, %v1266
        %v1268 = vpop.f32.mrb[0].mxu0
        %v1269 = vpop.f32.mrb[0].mxu0
        %v1270 = vpop.f32.mrb[0].mxu0
        %1271 = vdwg.mxu0
        %v1272 = vmul.f32 %v1217, 0.25
        %v1273 = vmul.f32 %v1267, 0.25
        %v1274 = vsel %vm1053, %v1272, -inf
        %1275 = vmax.xlane.f32.xlu0 %v1274
        %v1276 = vpop.xlane.xlu0 %1275
        %v1277 = vsel %vm1053, %v1273, -inf
        %1278 = vmax.xlane.f32.xlu0 %v1277
        %v1279 = vpop.xlane.xlu0 %1278
        %v1280 = vsub.f32 %v1272, %v1276
        %v1281 = vsub.f32 %v1273, %v1279
        %v1282 = vmul.f32 %v1280, 1.442695
        %v1283 = vpow.pop %v1282
        %v1284 = vmul.f32 %v1281, 1.442695
        %v1285 = vpow.pop %v1284
        %v1286 = vsel %vm1053, %v1283, 0.0
        %1287 = vadd.xlane.f32.xlu0 %v1286
        %v1288 = vpop.xlane.xlu0 %1287
        %v1289 = vsel %vm1053, %v1285, 0.0
        %1290 = vadd.xlane.f32.xlu0 %v1289
        %v1291 = vpop.xlane.xlu0 %1290
        %v1292 = vrcp.pop %v1288
        %v1293 = vrcp.pop %v1291
        %v1294 = vmul.f32 %v1283, %v1292
        %v1295 = vmul.f32 %v1285, %v1293
        %v1296 = vpack.c.bf16 %v1294, %v1294
        %v1297 = vpack.c.bf16 %v1295, %v1295
        %1298 = vrot.lane.b32.xlu0 %v956, 112
        %v1299 = vpop.permute.xlu0 %1298
        %v1301 = vsel %vm1053, %v1296, 0
        %v1304 = vsel %vm1081, %v1299, 0
        %1306 = vmatprep.subr.bf16.mxu0 0
        %1307 = vmatpush1.bf16.msra.mxu0 %v1304
        %1308 = vmatprep.subr.bf16.mxu0 0
        %1309 = vmatpush1.bf16.msra.mxu0 0
        %1310 = vmatprep.subr.bf16.mxu0 0
        %1311 = vmatpush1.bf16.msra.mxu0 0
        %1312 = vmatprep.subr.bf16.mxu0 0
        %1313 = vmatpush1.bf16.msra.mxu0 0
        %1314 = vmatprep.subr.bf16.mxu0 0
        %1315 = vmatpush1.bf16.msra.mxu0 0
        %1316 = vmatprep.subr.bf16.mxu0 0
        %1317 = vmatpush1.bf16.msra.mxu0 0
        %1318 = vmatprep.subr.bf16.mxu0 0
        %1319 = vmatpush1.bf16.msra.mxu0 0
        %1320 = vmatprep.subr.bf16.mxu0 0
        %1321 = vmatpush1.bf16.msra.mxu0 0
        %1322 = vmatprep.subr.bf16.mxu0 0
        %1323 = vmatpush1.bf16.msra.mxu0 0
        %1324 = vmatprep.subr.bf16.mxu0 0
        %1325 = vmatpush1.bf16.msra.mxu0 0
        %1326 = vmatprep.subr.bf16.mxu0 0
        %1327 = vmatpush1.bf16.msra.mxu0 0
        %1328 = vmatprep.subr.bf16.mxu0 0
        %1329 = vmatpush1.bf16.msra.mxu0 0
        %1330 = vmatprep.subr.bf16.mxu0 0
        %1331 = vmatpush1.bf16.msra.mxu0 0
        %1332 = vmatprep.subr.bf16.mxu0 0
        %1333 = vmatpush1.bf16.msra.mxu0 0
        %1334 = vmatprep.subr.bf16.mxu0 0
        %1335 = vmatpush1.bf16.msra.mxu0 0
        %1336 = vmatprep.subr.bf16.mxu0 0
        %1337 = vmatpush1.bf16.msra.mxu0 0
        %1338 = vmatprep.mubr.bf16.mxu0 0
        %1339 = vmatmul.mubr.bf16.gmra.mrb[0].mxu0 %v1301
        %v1340 = vpop.f32.mrb[0].mxu0
        %v1341 = vadd.f32 0.0, %v1340
        %v1342 = vpop.f32.mrb[0].mxu0
        %v1343 = vpop.f32.mrb[0].mxu0
        %v1344 = vpop.f32.mrb[0].mxu0
        %1345 = vdwg.mxu0
        %1346 = vrot.lane.b32.xlu0 %v957, 112
        %v1347 = vpop.permute.xlu0 %1346
        %v1349 = vsel %vm1053, %v1297, 0
        %v1352 = vsel %vm1081, %v1347, 0
        %1354 = vmatprep.subr.bf16.mxu0 0
        %1355 = vmatpush1.bf16.msra.mxu0 %v1352
        %1356 = vmatprep.subr.bf16.mxu0 0
        %1357 = vmatpush1.bf16.msra.mxu0 0
        %1358 = vmatprep.subr.bf16.mxu0 0
        %1359 = vmatpush1.bf16.msra.mxu0 0
        %1360 = vmatprep.subr.bf16.mxu0 0
        %1361 = vmatpush1.bf16.msra.mxu0 0
        %1362 = vmatprep.subr.bf16.mxu0 0
        %1363 = vmatpush1.bf16.msra.mxu0 0
        %1364 = vmatprep.subr.bf16.mxu0 0
        %1365 = vmatpush1.bf16.msra.mxu0 0
        %1366 = vmatprep.subr.bf16.mxu0 0
        %1367 = vmatpush1.bf16.msra.mxu0 0
        %1368 = vmatprep.subr.bf16.mxu0 0
        %1369 = vmatpush1.bf16.msra.mxu0 0
        %1370 = vmatprep.subr.bf16.mxu0 0
        %1371 = vmatpush1.bf16.msra.mxu0 0
        %1372 = vmatprep.subr.bf16.mxu0 0
        %1373 = vmatpush1.bf16.msra.mxu0 0
        %1374 = vmatprep.subr.bf16.mxu0 0
        %1375 = vmatpush1.bf16.msra.mxu0 0
        %1376 = vmatprep.subr.bf16.mxu0 0
        %1377 = vmatpush1.bf16.msra.mxu0 0
        %1378 = vmatprep.subr.bf16.mxu0 0
        %1379 = vmatpush1.bf16.msra.mxu0 0
        %1380 = vmatprep.subr.bf16.mxu0 0
        %1381 = vmatpush1.bf16.msra.mxu0 0
        %1382 = vmatprep.subr.bf16.mxu0 0
        %1383 = vmatpush1.bf16.msra.mxu0 0
        %1384 = vmatprep.subr.bf16.mxu0 0
        %1385 = vmatpush1.bf16.msra.mxu0 0
        %1386 = vmatprep.mubr.bf16.mxu0 0
        %1387 = vmatmul.mubr.bf16.gmra.mrb[0].mxu0 %v1349
        %v1388 = vpop.f32.mrb[0].mxu0
        %v1389 = vadd.f32 0.0, %v1388
        %v1390 = vpop.f32.mrb[0].mxu0
        %v1391 = vpop.f32.mrb[0].mxu0
        %v1392 = vpop.f32.mrb[0].mxu0
        %1393 = vdwg.mxu0
        %v1394 = vpack.c.bf16 %v1389, %v1341
        %v1397 = vunpack.c.l.b16 %v647
        %v1398 = vunpack.c.l.b16 %v648
        %v1399 = vpack.c.b16 %v1398, %v1397
        %v1402 = vsel %vm958, %v1394, 0
        %1404 = vmatprep.subr.bf16.mxu0 0
        %1405 = vmatpush1.bf16.msra.mxu0 %v1399
        %1406 = vmatprep.subr.bf16.mxu0 0
        %1407 = vmatpush1.bf16.msra.mxu0 0
        %1408 = vmatprep.subr.bf16.mxu0 0
        %1409 = vmatpush1.bf16.msra.mxu0 0
        %1410 = vmatprep.subr.bf16.mxu0 0
        %1411 = vmatpush1.bf16.msra.mxu0 0
        %1412 = vmatprep.subr.bf16.mxu0 0
        %1413 = vmatpush1.bf16.msra.mxu0 0
        %1414 = vmatprep.subr.bf16.mxu0 0
        %1415 = vmatpush1.bf16.msra.mxu0 0
        %1416 = vmatprep.subr.bf16.mxu0 0
        %1417 = vmatpush1.bf16.msra.mxu0 0
        %1418 = vmatprep.subr.bf16.mxu0 0
        %1419 = vmatpush1.bf16.msra.mxu0 0
        %1420 = vmatprep.subr.bf16.mxu0 0
        %1421 = vmatpush1.bf16.msra.mxu0 0
        %1422 = vmatprep.subr.bf16.mxu0 0
        %1423 = vmatpush1.bf16.msra.mxu0 0
        %1424 = vmatprep.subr.bf16.mxu0 0
        %1425 = vmatpush1.bf16.msra.mxu0 0
        %1426 = vmatprep.subr.bf16.mxu0 0
        %1427 = vmatpush1.bf16.msra.mxu0 0
        %1428 = vmatprep.subr.bf16.mxu0 0
        %1429 = vmatpush1.bf16.msra.mxu0 0
        %1430 = vmatprep.subr.bf16.mxu0 0
        %1431 = vmatpush1.bf16.msra.mxu0 0
        %1432 = vmatprep.subr.bf16.mxu0 0
        %1433 = vmatpush1.bf16.msra.mxu0 0
        %1434 = vmatprep.subr.bf16.mxu0 0
        %1435 = vmatpush1.bf16.msra.mxu0 0
        %1436 = vmatprep.mubr.bf16.mxu0 0
        %1437 = vmatmul.mubr.bf16.gmra.mrb[0].mxu0 %v1402
        %v1438 = vpop.f32.mrb[0].mxu0
        %v1439 = vadd.f32 0.0, %v1438
        %v1440 = vpop.f32.mrb[0].mxu0
        %v1441 = vpop.f32.mrb[0].mxu0
        %v1442 = vadd.f32 0.0, %v1441
        %v1443 = vpop.f32.mrb[0].mxu0
        %1444 = vdwg.mxu0
        %v1447 = vunpack.c.l.b16 %v645
        %v1448 = vunpack.c.l.b16 %v646
        %v1449 = vpack.c.b16 %v1448, %v1447
        %v1452 = vsel %vm958, %v1171, 0
        %1454 = vmatprep.subr.bf16.mxu0 0
        %1455 = vmatpush1.bf16.msra.mxu0 %v1449
        %1456 = vmatprep.subr.bf16.mxu0 0
        %1457 = vmatpush1.bf16.msra.mxu0 0
        %1458 = vmatprep.subr.bf16.mxu0 0
        %1459 = vmatpush1.bf16.msra.mxu0 0
        %1460 = vmatprep.subr.bf16.mxu0 0
        %1461 = vmatpush1.bf16.msra.mxu0 0
        %1462 = vmatprep.subr.bf16.mxu0 0
        %1463 = vmatpush1.bf16.msra.mxu0 0
        %1464 = vmatprep.subr.bf16.mxu0 0
        %1465 = vmatpush1.bf16.msra.mxu0 0
        %1466 = vmatprep.subr.bf16.mxu0 0
        %1467 = vmatpush1.bf16.msra.mxu0 0
        %1468 = vmatprep.subr.bf16.mxu0 0
        %1469 = vmatpush1.bf16.msra.mxu0 0
        %1470 = vmatprep.subr.bf16.mxu0 0
        %1471 = vmatpush1.bf16.msra.mxu0 0
        %1472 = vmatprep.subr.bf16.mxu0 0
        %1473 = vmatpush1.bf16.msra.mxu0 0
        %1474 = vmatprep.subr.bf16.mxu0 0
        %1475 = vmatpush1.bf16.msra.mxu0 0
        %1476 = vmatprep.subr.bf16.mxu0 0
        %1477 = vmatpush1.bf16.msra.mxu0 0
        %1478 = vmatprep.subr.bf16.mxu0 0
        %1479 = vmatpush1.bf16.msra.mxu0 0
        %1480 = vmatprep.subr.bf16.mxu0 0
        %1481 = vmatpush1.bf16.msra.mxu0 0
        %1482 = vmatprep.subr.bf16.mxu0 0
        %1483 = vmatpush1.bf16.msra.mxu0 0
        %1484 = vmatprep.subr.bf16.mxu0 0
        %1485 = vmatpush1.bf16.msra.mxu0 0
        %1486 = vmatprep.mubr.bf16.mxu0 0
        %1487 = vmatmul.mubr.bf16.gmra.mrb[0].mxu0 %v1452
        %v1488 = vpop.f32.mrb[0].mxu0
        %v1489 = vadd.f32 %v1439, %v1488
        %v1490 = vpop.f32.mrb[0].mxu0
        %v1491 = vpop.f32.mrb[0].mxu0
        %v1492 = vadd.f32 %v1442, %v1491
        %v1493 = vpop.f32.mrb[0].mxu0
        %1494 = vdwg.mxu0
        %1495 = vrot.lane.b32.xlu0 %v944, 96
        %v1496 = vpop.permute.xlu0 %1495
        %1497 = vrot.lane.b32.xlu0 %v950, 96
        %v1498 = vpop.permute.xlu0 %1497
        %v1500 = vsel %vm958, %v1496, 0
        %v1503 = vsel %vm958, %v1498, 0
        %1505 = vmatprep.subr.bf16.mxu0 0
        %1506 = vmatpush1.bf16.xpose.msra.mxu0 %v1503
        %1507 = vmatprep.subr.bf16.mxu0 0
        %1508 = vmatpush1.bf16.xpose.msra.mxu0 0
        %1509 = vmatprep.subr.bf16.mxu0 0
        %1510 = vmatpush1.bf16.xpose.msra.mxu0 0
        %1511 = vmatprep.subr.bf16.mxu0 0
        %1512 = vmatpush1.bf16.xpose.msra.mxu0 0
        %1513 = vmatprep.subr.bf16.mxu0 0
        %1514 = vmatpush1.bf16.xpose.msra.mxu0 0
        %1515 = vmatprep.subr.bf16.mxu0 0
        %1516 = vmatpush1.bf16.xpose.msra.mxu0 0
        %1517 = vmatprep.subr.bf16.mxu0 0
        %1518 = vmatpush1.bf16.xpose.msra.mxu0 0
        %1519 = vmatprep.subr.bf16.mxu0 0
        %1520 = vmatpush1.bf16.xpose.msra.mxu0 0
        %1521 = vmatprep.subr.bf16.mxu0 0
        %1522 = vmatpush1.bf16.xpose.msra.mxu0 0
        %1523 = vmatprep.subr.bf16.mxu0 0
        %1524 = vmatpush1.bf16.xpose.msra.mxu0 0
        %1525 = vmatprep.subr.bf16.mxu0 0
        %1526 = vmatpush1.bf16.xpose.msra.mxu0 0
        %1527 = vmatprep.subr.bf16.mxu0 0
        %1528 = vmatpush1.bf16.xpose.msra.mxu0 0
        %1529 = vmatprep.subr.bf16.mxu0 0
        %1530 = vmatpush1.bf16.xpose.msra.mxu0 0
        %1531 = vmatprep.subr.bf16.mxu0 0
        %1532 = vmatpush1.bf16.xpose.msra.mxu0 0
        %1533 = vmatprep.subr.bf16.mxu0 0
        %1534 = vmatpush1.bf16.xpose.msra.mxu0 0
        %1535 = vmatprep.subr.bf16.mxu0 0
        %1536 = vmatpush1.bf16.xpose.msra.mxu0 0
        %1537 = vmatprep.mubr.bf16.mxu0 0
        %1538 = vmatmul.mubr.bf16.gmra.mrb[0].mxu0 %v1500
        %v1539 = vpop.f32.mrb[0].mxu0
        %v1540 = vadd.f32 0.0, %v1539
        %v1541 = vpop.f32.mrb[0].mxu0
        %v1542 = vpop.f32.mrb[0].mxu0
        %v1543 = vpop.f32.mrb[0].mxu0
        %1544 = vdwg.mxu0
        %1545 = vrot.lane.b32.xlu0 %v945, 96
        %v1546 = vpop.permute.xlu0 %1545
        %1547 = vrot.lane.b32.xlu0 %v951, 96
        %v1548 = vpop.permute.xlu0 %1547
        %v1550 = vsel %vm958, %v1546, 0
        %v1553 = vsel %vm958, %v1548, 0
        %1555 = vmatprep.subr.bf16.mxu0 0
        %1556 = vmatpush1.bf16.xpose.msra.mxu0 %v1553
        %1557 = vmatprep.subr.bf16.mxu0 0
        %1558 = vmatpush1.bf16.xpose.msra.mxu0 0
        %1559 = vmatprep.subr.bf16.mxu0 0
        %1560 = vmatpush1.bf16.xpose.msra.mxu0 0
        %1561 = vmatprep.subr.bf16.mxu0 0
        %1562 = vmatpush1.bf16.xpose.msra.mxu0 0
        %1563 = vmatprep.subr.bf16.mxu0 0
        %1564 = vmatpush1.bf16.xpose.msra.mxu0 0
        %1565 = vmatprep.subr.bf16.mxu0 0
        %1566 = vmatpush1.bf16.xpose.msra.mxu0 0
        %1567 = vmatprep.subr.bf16.mxu0 0
        %1568 = vmatpush1.bf16.xpose.msra.mxu0 0
        %1569 = vmatprep.subr.bf16.mxu0 0
        %1570 = vmatpush1.bf16.xpose.msra.mxu0 0
        %1571 = vmatprep.subr.bf16.mxu0 0
        %1572 = vmatpush1.bf16.xpose.msra.mxu0 0
        %1573 = vmatprep.subr.bf16.mxu0 0
        %1574 = vmatpush1.bf16.xpose.msra.mxu0 0
        %1575 = vmatprep.subr.bf16.mxu0 0
        %1576 = vmatpush1.bf16.xpose.msra.mxu0 0
        %1577 = vmatprep.subr.bf16.mxu0 0
        %1578 = vmatpush1.bf16.xpose.msra.mxu0 0
        %1579 = vmatprep.subr.bf16.mxu0 0
        %1580 = vmatpush1.bf16.xpose.msra.mxu0 0
        %1581 = vmatprep.subr.bf16.mxu0 0
        %1582 = vmatpush1.bf16.xpose.msra.mxu0 0
        %1583 = vmatprep.subr.bf16.mxu0 0
        %1584 = vmatpush1.bf16.xpose.msra.mxu0 0
        %1585 = vmatprep.subr.bf16.mxu0 0
        %1586 = vmatpush1.bf16.xpose.msra.mxu0 0
        %1587 = vmatprep.mubr.bf16.mxu0 0
        %1588 = vmatmul.mubr.bf16.gmra.mrb[0].mxu0 %v1550
        %v1589 = vpop.f32.mrb[0].mxu0
        %v1590 = vadd.f32 0.0, %v1589
        %v1591 = vpop.f32.mrb[0].mxu0
        %v1592 = vpop.f32.mrb[0].mxu0
        %v1593 = vpop.f32.mrb[0].mxu0
        %1594 = vdwg.mxu0
        %v1595 = vmul.f32 %v1540, 0.25
        %v1596 = vmul.f32 %v1590, 0.25
        %v1597 = vsel %vm1053, %v1595, -inf
        %1598 = vmax.xlane.f32.xlu0 %v1597
        %v1599 = vpop.xlane.xlu0 %1598
        %v1600 = vsel %vm1053, %v1596, -inf
        %1601 = vmax.xlane.f32.xlu0 %v1600
        %v1602 = vpop.xlane.xlu0 %1601
        %v1603 = vsub.f32 %v1595, %v1599
        %v1604 = vsub.f32 %v1596, %v1602
        %v1605 = vmul.f32 %v1603, 1.442695
        %v1606 = vpow.pop %v1605
        %v1607 = vmul.f32 %v1604, 1.442695
        %v1608 = vpow.pop %v1607
        %v1609 = vsel %vm1053, %v1606, 0.0
        %1610 = vadd.xlane.f32.xlu0 %v1609
        %v1611 = vpop.xlane.xlu0 %1610
        %v1612 = vsel %vm1053, %v1608, 0.0
        %1613 = vadd.xlane.f32.xlu0 %v1612
        %v1614 = vpop.xlane.xlu0 %1613
        %v1615 = vrcp.pop %v1611
        %v1616 = vrcp.pop %v1614
        %v1617 = vmul.f32 %v1606, %v1615
        %v1618 = vmul.f32 %v1608, %v1616
        %v1619 = vpack.c.bf16 %v1617, %v1617
        %v1620 = vpack.c.bf16 %v1618, %v1618
        %1621 = vrot.lane.b32.xlu0 %v956, 96
        %v1622 = vpop.permute.xlu0 %1621
        %v1624 = vsel %vm1053, %v1619, 0
        %v1627 = vsel %vm1081, %v1622, 0
        %1629 = vmatprep.subr.bf16.mxu0 0
        %1630 = vmatpush1.bf16.msra.mxu0 %v1627
        %1631 = vmatprep.subr.bf16.mxu0 0
        %1632 = vmatpush1.bf16.msra.mxu0 0
        %1633 = vmatprep.subr.bf16.mxu0 0
        %1634 = vmatpush1.bf16.msra.mxu0 0
        %1635 = vmatprep.subr.bf16.mxu0 0
        %1636 = vmatpush1.bf16.msra.mxu0 0
        %1637 = vmatprep.subr.bf16.mxu0 0
        %1638 = vmatpush1.bf16.msra.mxu0 0
        %1639 = vmatprep.subr.bf16.mxu0 0
        %1640 = vmatpush1.bf16.msra.mxu0 0
        %1641 = vmatprep.subr.bf16.mxu0 0
        %1642 = vmatpush1.bf16.msra.mxu0 0
        %1643 = vmatprep.subr.bf16.mxu0 0
        %1644 = vmatpush1.bf16.msra.mxu0 0
        %1645 = vmatprep.subr.bf16.mxu0 0
        %1646 = vmatpush1.bf16.msra.mxu0 0
        %1647 = vmatprep.subr.bf16.mxu0 0
        %1648 = vmatpush1.bf16.msra.mxu0 0
        %1649 = vmatprep.subr.bf16.mxu0 0
        %1650 = vmatpush1.bf16.msra.mxu0 0
        %1651 = vmatprep.subr.bf16.mxu0 0
        %1652 = vmatpush1.bf16.msra.mxu0 0
        %1653 = vmatprep.subr.bf16.mxu0 0
        %1654 = vmatpush1.bf16.msra.mxu0 0
        %1655 = vmatprep.subr.bf16.mxu0 0
        %1656 = vmatpush1.bf16.msra.mxu0 0
        %1657 = vmatprep.subr.bf16.mxu0 0
        %1658 = vmatpush1.bf16.msra.mxu0 0
        %1659 = vmatprep.subr.bf16.mxu0 0
        %1660 = vmatpush1.bf16.msra.mxu0 0
        %1661 = vmatprep.mubr.bf16.mxu0 0
        %1662 = vmatmul.mubr.bf16.gmra.mrb[0].mxu0 %v1624
        %v1663 = vpop.f32.mrb[0].mxu0
        %v1664 = vadd.f32 0.0, %v1663
        %v1665 = vpop.f32.mrb[0].mxu0
        %v1666 = vpop.f32.mrb[0].mxu0
        %v1667 = vpop.f32.mrb[0].mxu0
        %1668 = vdwg.mxu0
        %1669 = vrot.lane.b32.xlu0 %v957, 96
        %v1670 = vpop.permute.xlu0 %1669
        %v1672 = vsel %vm1053, %v1620, 0
        %v1675 = vsel %vm1081, %v1670, 0
        %1677 = vmatprep.subr.bf16.mxu0 0
        %1678 = vmatpush1.bf16.msra.mxu0 %v1675
        %1679 = vmatprep.subr.bf16.mxu0 0
        %1680 = vmatpush1.bf16.msra.mxu0 0
        %1681 = vmatprep.subr.bf16.mxu0 0
        %1682 = vmatpush1.bf16.msra.mxu0 0
        %1683 = vmatprep.subr.bf16.mxu0 0
        %1684 = vmatpush1.bf16.msra.mxu0 0
        %1685 = vmatprep.subr.bf16.mxu0 0
        %1686 = vmatpush1.bf16.msra.mxu0 0
        %1687 = vmatprep.subr.bf16.mxu0 0
        %1688 = vmatpush1.bf16.msra.mxu0 0
        %1689 = vmatprep.subr.bf16.mxu0 0
        %1690 = vmatpush1.bf16.msra.mxu0 0
        %1691 = vmatprep.subr.bf16.mxu0 0
        %1692 = vmatpush1.bf16.msra.mxu0 0
        %1693 = vmatprep.subr.bf16.mxu0 0
        %1694 = vmatpush1.bf16.msra.mxu0 0
        %1695 = vmatprep.subr.bf16.mxu0 0
        %1696 = vmatpush1.bf16.msra.mxu0 0
        %1697 = vmatprep.subr.bf16.mxu0 0
        %1698 = vmatpush1.bf16.msra.mxu0 0
        %1699 = vmatprep.subr.bf16.mxu0 0
        %1700 = vmatpush1.bf16.msra.mxu0 0
        %1701 = vmatprep.subr.bf16.mxu0 0
        %1702 = vmatpush1.bf16.msra.mxu0 0
        %1703 = vmatprep.subr.bf16.mxu0 0
        %1704 = vmatpush1.bf16.msra.mxu0 0
        %1705 = vmatprep.subr.bf16.mxu0 0
        %1706 = vmatpush1.bf16.msra.mxu0 0
        %1707 = vmatprep.subr.bf16.mxu0 0
        %1708 = vmatpush1.bf16.msra.mxu0 0
        %1709 = vmatprep.mubr.bf16.mxu0 0
        %1710 = vmatmul.mubr.bf16.gmra.mrb[0].mxu0 %v1672
        %v1711 = vpop.f32.mrb[0].mxu0
        %v1712 = vadd.f32 0.0, %v1711
        %v1713 = vpop.f32.mrb[0].mxu0
        %v1714 = vpop.f32.mrb[0].mxu0
        %v1715 = vpop.f32.mrb[0].mxu0
        %1716 = vdwg.mxu0
        %v1717 = vpack.c.bf16 %v1712, %v1664
        %v1720 = vunpack.c.l.b16 %v649
        %v1721 = vunpack.c.l.b16 %v650
        %v1722 = vpack.c.b16 %v1721, %v1720
        %v1725 = vsel %vm958, %v1717, 0
        %1727 = vmatprep.subr.bf16.mxu0 0
        %1728 = vmatpush1.bf16.msra.mxu0 %v1722
        %1729 = vmatprep.subr.bf16.mxu0 0
        %1730 = vmatpush1.bf16.msra.mxu0 0
        %1731 = vmatprep.subr.bf16.mxu0 0
        %1732 = vmatpush1.bf16.msra.mxu0 0
        %1733 = vmatprep.subr.bf16.mxu0 0
        %1734 = vmatpush1.bf16.msra.mxu0 0
        %1735 = vmatprep.subr.bf16.mxu0 0
        %1736 = vmatpush1.bf16.msra.mxu0 0
        %1737 = vmatprep.subr.bf16.mxu0 0
        %1738 = vmatpush1.bf16.msra.mxu0 0
        %1739 = vmatprep.subr.bf16.mxu0 0
        %1740 = vmatpush1.bf16.msra.mxu0 0
        %1741 = vmatprep.subr.bf16.mxu0 0
        %1742 = vmatpush1.bf16.msra.mxu0 0
        %1743 = vmatprep.subr.bf16.mxu0 0
        %1744 = vmatpush1.bf16.msra.mxu0 0
        %1745 = vmatprep.subr.bf16.mxu0 0
        %1746 = vmatpush1.bf16.msra.mxu0 0
        %1747 = vmatprep.subr.bf16.mxu0 0
        %1748 = vmatpush1.bf16.msra.mxu0 0
        %1749 = vmatprep.subr.bf16.mxu0 0
        %1750 = vmatpush1.bf16.msra.mxu0 0
        %1751 = vmatprep.subr.bf16.mxu0 0
        %1752 = vmatpush1.bf16.msra.mxu0 0
        %1753 = vmatprep.subr.bf16.mxu0 0
        %1754 = vmatpush1.bf16.msra.mxu0 0
        %1755 = vmatprep.subr.bf16.mxu0 0
        %1756 = vmatpush1.bf16.msra.mxu0 0
        %1757 = vmatprep.subr.bf16.mxu0 0
        %1758 = vmatpush1.bf16.msra.mxu0 0
        %1759 = vmatprep.mubr.bf16.mxu0 0
        %1760 = vmatmul.mubr.bf16.gmra.mrb[0].mxu0 %v1725
        %v1761 = vpop.f32.mrb[0].mxu0
        %v1762 = vadd.f32 0.0, %v1761
        %v1763 = vpop.f32.mrb[0].mxu0
        %v1764 = vpop.f32.mrb[0].mxu0
        %v1765 = vadd.f32 0.0, %v1764
        %v1766 = vpop.f32.mrb[0].mxu0
        %1767 = vdwg.mxu0
        %v1768 = vadd.f32 %v1489, %v1762
        %v1769 = vadd.f32 %v1492, %v1765
        %1770 = vrot.lane.b32.xlu0 %v944, 80
        %v1771 = vpop.permute.xlu0 %1770
        %1772 = vrot.lane.b32.xlu0 %v950, 80
        %v1773 = vpop.permute.xlu0 %1772
        %v1775 = vsel %vm958, %v1771, 0
        %v1778 = vsel %vm958, %v1773, 0
        %1780 = vmatprep.subr.bf16.mxu0 0
        %1781 = vmatpush1.bf16.xpose.msra.mxu0 %v1778
        %1782 = vmatprep.subr.bf16.mxu0 0
        %1783 = vmatpush1.bf16.xpose.msra.mxu0 0
        %1784 = vmatprep.subr.bf16.mxu0 0
        %1785 = vmatpush1.bf16.xpose.msra.mxu0 0
        %1786 = vmatprep.subr.bf16.mxu0 0
        %1787 = vmatpush1.bf16.xpose.msra.mxu0 0
        %1788 = vmatprep.subr.bf16.mxu0 0
        %1789 = vmatpush1.bf16.xpose.msra.mxu0 0
        %1790 = vmatprep.subr.bf16.mxu0 0
        %1791 = vmatpush1.bf16.xpose.msra.mxu0 0
        %1792 = vmatprep.subr.bf16.mxu0 0
        %1793 = vmatpush1.bf16.xpose.msra.mxu0 0
        %1794 = vmatprep.subr.bf16.mxu0 0
        %1795 = vmatpush1.bf16.xpose.msra.mxu0 0
        %1796 = vmatprep.subr.bf16.mxu0 0
        %1797 = vmatpush1.bf16.xpose.msra.mxu0 0
        %1798 = vmatprep.subr.bf16.mxu0 0
        %1799 = vmatpush1.bf16.xpose.msra.mxu0 0
        %1800 = vmatprep.subr.bf16.mxu0 0
        %1801 = vmatpush1.bf16.xpose.msra.mxu0 0
        %1802 = vmatprep.subr.bf16.mxu0 0
        %1803 = vmatpush1.bf16.xpose.msra.mxu0 0
        %1804 = vmatprep.subr.bf16.mxu0 0
        %1805 = vmatpush1.bf16.xpose.msra.mxu0 0
        %1806 = vmatprep.subr.bf16.mxu0 0
        %1807 = vmatpush1.bf16.xpose.msra.mxu0 0
        %1808 = vmatprep.subr.bf16.mxu0 0
        %1809 = vmatpush1.bf16.xpose.msra.mxu0 0
        %1810 = vmatprep.subr.bf16.mxu0 0
        %1811 = vmatpush1.bf16.xpose.msra.mxu0 0
        %1812 = vmatprep.mubr.bf16.mxu0 0
        %1813 = vmatmul.mubr.bf16.gmra.mrb[0].mxu0 %v1775
        %v1814 = vpop.f32.mrb[0].mxu0
        %v1815 = vadd.f32 0.0, %v1814
        %v1816 = vpop.f32.mrb[0].mxu0
        %v1817 = vpop.f32.mrb[0].mxu0
        %v1818 = vpop.f32.mrb[0].mxu0
        %1819 = vdwg.mxu0
        %1820 = vrot.lane.b32.xlu0 %v945, 80
        %v1821 = vpop.permute.xlu0 %1820
        %1822 = vrot.lane.b32.xlu0 %v951, 80
        %v1823 = vpop.permute.xlu0 %1822
        %v1825 = vsel %vm958, %v1821, 0
        %v1828 = vsel %vm958, %v1823, 0
        %1830 = vmatprep.subr.bf16.mxu0 0
        %1831 = vmatpush1.bf16.xpose.msra.mxu0 %v1828
        %1832 = vmatprep.subr.bf16.mxu0 0
        %1833 = vmatpush1.bf16.xpose.msra.mxu0 0
        %1834 = vmatprep.subr.bf16.mxu0 0
        %1835 = vmatpush1.bf16.xpose.msra.mxu0 0
        %1836 = vmatprep.subr.bf16.mxu0 0
        %1837 = vmatpush1.bf16.xpose.msra.mxu0 0
        %1838 = vmatprep.subr.bf16.mxu0 0
        %1839 = vmatpush1.bf16.xpose.msra.mxu0 0
        %1840 = vmatprep.subr.bf16.mxu0 0
        %1841 = vmatpush1.bf16.xpose.msra.mxu0 0
        %1842 = vmatprep.subr.bf16.mxu0 0
        %1843 = vmatpush1.bf16.xpose.msra.mxu0 0
        %1844 = vmatprep.subr.bf16.mxu0 0
        %1845 = vmatpush1.bf16.xpose.msra.mxu0 0
        %1846 = vmatprep.subr.bf16.mxu0 0
        %1847 = vmatpush1.bf16.xpose.msra.mxu0 0
        %1848 = vmatprep.subr.bf16.mxu0 0
        %1849 = vmatpush1.bf16.xpose.msra.mxu0 0
        %1850 = vmatprep.subr.bf16.mxu0 0
        %1851 = vmatpush1.bf16.xpose.msra.mxu0 0
        %1852 = vmatprep.subr.bf16.mxu0 0
        %1853 = vmatpush1.bf16.xpose.msra.mxu0 0
        %1854 = vmatprep.subr.bf16.mxu0 0
        %1855 = vmatpush1.bf16.xpose.msra.mxu0 0
        %1856 = vmatprep.subr.bf16.mxu0 0
        %1857 = vmatpush1.bf16.xpose.msra.mxu0 0
        %1858 = vmatprep.subr.bf16.mxu0 0
        %1859 = vmatpush1.bf16.xpose.msra.mxu0 0
        %1860 = vmatprep.subr.bf16.mxu0 0
        %1861 = vmatpush1.bf16.xpose.msra.mxu0 0
        %1862 = vmatprep.mubr.bf16.mxu0 0
        %1863 = vmatmul.mubr.bf16.gmra.mrb[0].mxu0 %v1825
        %v1864 = vpop.f32.mrb[0].mxu0
        %v1865 = vadd.f32 0.0, %v1864
        %v1866 = vpop.f32.mrb[0].mxu0
        %v1867 = vpop.f32.mrb[0].mxu0
        %v1868 = vpop.f32.mrb[0].mxu0
        %1869 = vdwg.mxu0
        %v1870 = vmul.f32 %v1815, 0.25
        %v1871 = vmul.f32 %v1865, 0.25
        %v1872 = vsel %vm1053, %v1870, -inf
        %1873 = vmax.xlane.f32.xlu0 %v1872
        %v1874 = vpop.xlane.xlu0 %1873
        %v1875 = vsel %vm1053, %v1871, -inf
        %1876 = vmax.xlane.f32.xlu0 %v1875
        %v1877 = vpop.xlane.xlu0 %1876
        %v1878 = vsub.f32 %v1870, %v1874
        %v1879 = vsub.f32 %v1871, %v1877
        %v1880 = vmul.f32 %v1878, 1.442695
        %v1881 = vpow.pop %v1880
        %v1882 = vmul.f32 %v1879, 1.442695
        %v1883 = vpow.pop %v1882
        %v1884 = vsel %vm1053, %v1881, 0.0
        %1885 = vadd.xlane.f32.xlu0 %v1884
        %v1886 = vpop.xlane.xlu0 %1885
        %v1887 = vsel %vm1053, %v1883, 0.0
        %1888 = vadd.xlane.f32.xlu0 %v1887
        %v1889 = vpop.xlane.xlu0 %1888
        %v1890 = vrcp.pop %v1886
        %v1891 = vrcp.pop %v1889
        %v1892 = vmul.f32 %v1881, %v1890
        %v1893 = vmul.f32 %v1883, %v1891
        %v1894 = vpack.c.bf16 %v1892, %v1892
        %v1895 = vpack.c.bf16 %v1893, %v1893
        %1896 = vrot.lane.b32.xlu0 %v956, 80
        %v1897 = vpop.permute.xlu0 %1896
        %v1899 = vsel %vm1053, %v1894, 0
        %v1902 = vsel %vm1081, %v1897, 0
        %1904 = vmatprep.subr.bf16.mxu0 0
        %1905 = vmatpush1.bf16.msra.mxu0 %v1902
        %1906 = vmatprep.subr.bf16.mxu0 0
        %1907 = vmatpush1.bf16.msra.mxu0 0
        %1908 = vmatprep.subr.bf16.mxu0 0
        %1909 = vmatpush1.bf16.msra.mxu0 0
        %1910 = vmatprep.subr.bf16.mxu0 0
        %1911 = vmatpush1.bf16.msra.mxu0 0
        %1912 = vmatprep.subr.bf16.mxu0 0
        %1913 = vmatpush1.bf16.msra.mxu0 0
        %1914 = vmatprep.subr.bf16.mxu0 0
        %1915 = vmatpush1.bf16.msra.mxu0 0
        %1916 = vmatprep.subr.bf16.mxu0 0
        %1917 = vmatpush1.bf16.msra.mxu0 0
        %1918 = vmatprep.subr.bf16.mxu0 0
        %1919 = vmatpush1.bf16.msra.mxu0 0
        %1920 = vmatprep.subr.bf16.mxu0 0
        %1921 = vmatpush1.bf16.msra.mxu0 0
        %1922 = vmatprep.subr.bf16.mxu0 0
        %1923 = vmatpush1.bf16.msra.mxu0 0
        %1924 = vmatprep.subr.bf16.mxu0 0
        %1925 = vmatpush1.bf16.msra.mxu0 0
        %1926 = vmatprep.subr.bf16.mxu0 0
        %1927 = vmatpush1.bf16.msra.mxu0 0
        %1928 = vmatprep.subr.bf16.mxu0 0
        %1929 = vmatpush1.bf16.msra.mxu0 0
        %1930 = vmatprep.subr.bf16.mxu0 0
        %1931 = vmatpush1.bf16.msra.mxu0 0
        %1932 = vmatprep.subr.bf16.mxu0 0
        %1933 = vmatpush1.bf16.msra.mxu0 0
        %1934 = vmatprep.subr.bf16.mxu0 0
        %1935 = vmatpush1.bf16.msra.mxu0 0
        %1936 = vmatprep.mubr.bf16.mxu0 0
        %1937 = vmatmul.mubr.bf16.gmra.mrb[0].mxu0 %v1899
        %v1938 = vpop.f32.mrb[0].mxu0
        %v1939 = vadd.f32 0.0, %v1938
        %v1940 = vpop.f32.mrb[0].mxu0
        %v1941 = vpop.f32.mrb[0].mxu0
        %v1942 = vpop.f32.mrb[0].mxu0
        %1943 = vdwg.mxu0
        %1944 = vrot.lane.b32.xlu0 %v957, 80
        %v1945 = vpop.permute.xlu0 %1944
        %v1947 = vsel %vm1053, %v1895, 0
        %v1950 = vsel %vm1081, %v1945, 0
        %1952 = vmatprep.subr.bf16.mxu0 0
        %1953 = vmatpush1.bf16.msra.mxu0 %v1950
        %1954 = vmatprep.subr.bf16.mxu0 0
        %1955 = vmatpush1.bf16.msra.mxu0 0
        %1956 = vmatprep.subr.bf16.mxu0 0
        %1957 = vmatpush1.bf16.msra.mxu0 0
        %1958 = vmatprep.subr.bf16.mxu0 0
        %1959 = vmatpush1.bf16.msra.mxu0 0
        %1960 = vmatprep.subr.bf16.mxu0 0
        %1961 = vmatpush1.bf16.msra.mxu0 0
        %1962 = vmatprep.subr.bf16.mxu0 0
        %1963 = vmatpush1.bf16.msra.mxu0 0
        %1964 = vmatprep.subr.bf16.mxu0 0
        %1965 = vmatpush1.bf16.msra.mxu0 0
        %1966 = vmatprep.subr.bf16.mxu0 0
        %1967 = vmatpush1.bf16.msra.mxu0 0
        %1968 = vmatprep.subr.bf16.mxu0 0
        %1969 = vmatpush1.bf16.msra.mxu0 0
        %1970 = vmatprep.subr.bf16.mxu0 0
        %1971 = vmatpush1.bf16.msra.mxu0 0
        %1972 = vmatprep.subr.bf16.mxu0 0
        %1973 = vmatpush1.bf16.msra.mxu0 0
        %1974 = vmatprep.subr.bf16.mxu0 0
        %1975 = vmatpush1.bf16.msra.mxu0 0
        %1976 = vmatprep.subr.bf16.mxu0 0
        %1977 = vmatpush1.bf16.msra.mxu0 0
        %1978 = vmatprep.subr.bf16.mxu0 0
        %1979 = vmatpush1.bf16.msra.mxu0 0
        %1980 = vmatprep.subr.bf16.mxu0 0
        %1981 = vmatpush1.bf16.msra.mxu0 0
        %1982 = vmatprep.subr.bf16.mxu0 0
        %1983 = vmatpush1.bf16.msra.mxu0 0
        %1984 = vmatprep.mubr.bf16.mxu0 0
        %1985 = vmatmul.mubr.bf16.gmra.mrb[0].mxu0 %v1947
        %v1986 = vpop.f32.mrb[0].mxu0
        %v1987 = vadd.f32 0.0, %v1986
        %v1988 = vpop.f32.mrb[0].mxu0
        %v1989 = vpop.f32.mrb[0].mxu0
        %v1990 = vpop.f32.mrb[0].mxu0
        %1991 = vdwg.mxu0
        %v1992 = vpack.c.bf16 %v1987, %v1939
        %v1995 = vunpack.c.l.b16 %v651
        %v1996 = vunpack.c.l.b16 %v652
        %v1997 = vpack.c.b16 %v1996, %v1995
        %v2000 = vsel %vm958, %v1992, 0
        %2002 = vmatprep.subr.bf16.mxu0 0
        %2003 = vmatpush1.bf16.msra.mxu0 %v1997
        %2004 = vmatprep.subr.bf16.mxu0 0
        %2005 = vmatpush1.bf16.msra.mxu0 0
        %2006 = vmatprep.subr.bf16.mxu0 0
        %2007 = vmatpush1.bf16.msra.mxu0 0
        %2008 = vmatprep.subr.bf16.mxu0 0
        %2009 = vmatpush1.bf16.msra.mxu0 0
        %2010 = vmatprep.subr.bf16.mxu0 0
        %2011 = vmatpush1.bf16.msra.mxu0 0
        %2012 = vmatprep.subr.bf16.mxu0 0
        %2013 = vmatpush1.bf16.msra.mxu0 0
        %2014 = vmatprep.subr.bf16.mxu0 0
        %2015 = vmatpush1.bf16.msra.mxu0 0
        %2016 = vmatprep.subr.bf16.mxu0 0
        %2017 = vmatpush1.bf16.msra.mxu0 0
        %2018 = vmatprep.subr.bf16.mxu0 0
        %2019 = vmatpush1.bf16.msra.mxu0 0
        %2020 = vmatprep.subr.bf16.mxu0 0
        %2021 = vmatpush1.bf16.msra.mxu0 0
        %2022 = vmatprep.subr.bf16.mxu0 0
        %2023 = vmatpush1.bf16.msra.mxu0 0
        %2024 = vmatprep.subr.bf16.mxu0 0
        %2025 = vmatpush1.bf16.msra.mxu0 0
        %2026 = vmatprep.subr.bf16.mxu0 0
        %2027 = vmatpush1.bf16.msra.mxu0 0
        %2028 = vmatprep.subr.bf16.mxu0 0
        %2029 = vmatpush1.bf16.msra.mxu0 0
        %2030 = vmatprep.subr.bf16.mxu0 0
        %2031 = vmatpush1.bf16.msra.mxu0 0
        %2032 = vmatprep.subr.bf16.mxu0 0
        %2033 = vmatpush1.bf16.msra.mxu0 0
        %2034 = vmatprep.mubr.bf16.mxu0 0
        %2035 = vmatmul.mubr.bf16.gmra.mrb[0].mxu0 %v2000
        %v2036 = vpop.f32.mrb[0].mxu0
        %v2037 = vadd.f32 0.0, %v2036
        %v2038 = vpop.f32.mrb[0].mxu0
        %v2039 = vpop.f32.mrb[0].mxu0
        %v2040 = vadd.f32 0.0, %v2039
        %v2041 = vpop.f32.mrb[0].mxu0
        %2042 = vdwg.mxu0
        %v2043 = vadd.f32 %v1768, %v2037
        %v2044 = vadd.f32 %v1769, %v2040
        %2045 = vrot.lane.b32.xlu0 %v944, 64
        %v2046 = vpop.permute.xlu0 %2045
        %2047 = vrot.lane.b32.xlu0 %v950, 64
        %v2048 = vpop.permute.xlu0 %2047
        %v2050 = vsel %vm958, %v2046, 0
        %v2053 = vsel %vm958, %v2048, 0
        %2055 = vmatprep.subr.bf16.mxu0 0
        %2056 = vmatpush1.bf16.xpose.msra.mxu0 %v2053
        %2057 = vmatprep.subr.bf16.mxu0 0
        %2058 = vmatpush1.bf16.xpose.msra.mxu0 0
        %2059 = vmatprep.subr.bf16.mxu0 0
        %2060 = vmatpush1.bf16.xpose.msra.mxu0 0
        %2061 = vmatprep.subr.bf16.mxu0 0
        %2062 = vmatpush1.bf16.xpose.msra.mxu0 0
        %2063 = vmatprep.subr.bf16.mxu0 0
        %2064 = vmatpush1.bf16.xpose.msra.mxu0 0
        %2065 = vmatprep.subr.bf16.mxu0 0
        %2066 = vmatpush1.bf16.xpose.msra.mxu0 0
        %2067 = vmatprep.subr.bf16.mxu0 0
        %2068 = vmatpush1.bf16.xpose.msra.mxu0 0
        %2069 = vmatprep.subr.bf16.mxu0 0
        %2070 = vmatpush1.bf16.xpose.msra.mxu0 0
        %2071 = vmatprep.subr.bf16.mxu0 0
        %2072 = vmatpush1.bf16.xpose.msra.mxu0 0
        %2073 = vmatprep.subr.bf16.mxu0 0
        %2074 = vmatpush1.bf16.xpose.msra.mxu0 0
        %2075 = vmatprep.subr.bf16.mxu0 0
        %2076 = vmatpush1.bf16.xpose.msra.mxu0 0
        %2077 = vmatprep.subr.bf16.mxu0 0
        %2078 = vmatpush1.bf16.xpose.msra.mxu0 0
        %2079 = vmatprep.subr.bf16.mxu0 0
        %2080 = vmatpush1.bf16.xpose.msra.mxu0 0
        %2081 = vmatprep.subr.bf16.mxu0 0
        %2082 = vmatpush1.bf16.xpose.msra.mxu0 0
        %2083 = vmatprep.subr.bf16.mxu0 0
        %2084 = vmatpush1.bf16.xpose.msra.mxu0 0
        %2085 = vmatprep.subr.bf16.mxu0 0
        %2086 = vmatpush1.bf16.xpose.msra.mxu0 0
        %2087 = vmatprep.mubr.bf16.mxu0 0
        %2088 = vmatmul.mubr.bf16.gmra.mrb[0].mxu0 %v2050
        %v2089 = vpop.f32.mrb[0].mxu0
        %v2090 = vadd.f32 0.0, %v2089
        %v2091 = vpop.f32.mrb[0].mxu0
        %v2092 = vpop.f32.mrb[0].mxu0
        %v2093 = vpop.f32.mrb[0].mxu0
        %2094 = vdwg.mxu0
        %2095 = vrot.lane.b32.xlu0 %v945, 64
        %v2096 = vpop.permute.xlu0 %2095
        %2097 = vrot.lane.b32.xlu0 %v951, 64
        %v2098 = vpop.permute.xlu0 %2097
        %v2100 = vsel %vm958, %v2096, 0
        %v2103 = vsel %vm958, %v2098, 0
        %2105 = vmatprep.subr.bf16.mxu0 0
        %2106 = vmatpush1.bf16.xpose.msra.mxu0 %v2103
        %2107 = vmatprep.subr.bf16.mxu0 0
        %2108 = vmatpush1.bf16.xpose.msra.mxu0 0
        %2109 = vmatprep.subr.bf16.mxu0 0
        %2110 = vmatpush1.bf16.xpose.msra.mxu0 0
        %2111 = vmatprep.subr.bf16.mxu0 0
        %2112 = vmatpush1.bf16.xpose.msra.mxu0 0
        %2113 = vmatprep.subr.bf16.mxu0 0
        %2114 = vmatpush1.bf16.xpose.msra.mxu0 0
        %2115 = vmatprep.subr.bf16.mxu0 0
        %2116 = vmatpush1.bf16.xpose.msra.mxu0 0
        %2117 = vmatprep.subr.bf16.mxu0 0
        %2118 = vmatpush1.bf16.xpose.msra.mxu0 0
        %2119 = vmatprep.subr.bf16.mxu0 0
        %2120 = vmatpush1.bf16.xpose.msra.mxu0 0
        %2121 = vmatprep.subr.bf16.mxu0 0
        %2122 = vmatpush1.bf16.xpose.msra.mxu0 0
        %2123 = vmatprep.subr.bf16.mxu0 0
        %2124 = vmatpush1.bf16.xpose.msra.mxu0 0
        %2125 = vmatprep.subr.bf16.mxu0 0
        %2126 = vmatpush1.bf16.xpose.msra.mxu0 0
        %2127 = vmatprep.subr.bf16.mxu0 0
        %2128 = vmatpush1.bf16.xpose.msra.mxu0 0
        %2129 = vmatprep.subr.bf16.mxu0 0
        %2130 = vmatpush1.bf16.xpose.msra.mxu0 0
        %2131 = vmatprep.subr.bf16.mxu0 0
        %2132 = vmatpush1.bf16.xpose.msra.mxu0 0
        %2133 = vmatprep.subr.bf16.mxu0 0
        %2134 = vmatpush1.bf16.xpose.msra.mxu0 0
        %2135 = vmatprep.subr.bf16.mxu0 0
        %2136 = vmatpush1.bf16.xpose.msra.mxu0 0
        %2137 = vmatprep.mubr.bf16.mxu0 0
        %2138 = vmatmul.mubr.bf16.gmra.mrb[0].mxu0 %v2100
        %v2139 = vpop.f32.mrb[0].mxu0
        %v2140 = vadd.f32 0.0, %v2139
        %v2141 = vpop.f32.mrb[0].mxu0
        %v2142 = vpop.f32.mrb[0].mxu0
        %v2143 = vpop.f32.mrb[0].mxu0
        %2144 = vdwg.mxu0
        %v2145 = vmul.f32 %v2090, 0.25
        %v2146 = vmul.f32 %v2140, 0.25
        %v2147 = vsel %vm1053, %v2145, -inf
        %2148 = vmax.xlane.f32.xlu0 %v2147
        %v2149 = vpop.xlane.xlu0 %2148
        %v2150 = vsel %vm1053, %v2146, -inf
        %2151 = vmax.xlane.f32.xlu0 %v2150
        %v2152 = vpop.xlane.xlu0 %2151
        %v2153 = vsub.f32 %v2145, %v2149
        %v2154 = vsub.f32 %v2146, %v2152
        %v2155 = vmul.f32 %v2153, 1.442695
        %v2156 = vpow.pop %v2155
        %v2157 = vmul.f32 %v2154, 1.442695
        %v2158 = vpow.pop %v2157
        %v2159 = vsel %vm1053, %v2156, 0.0
        %2160 = vadd.xlane.f32.xlu0 %v2159
        %v2161 = vpop.xlane.xlu0 %2160
        %v2162 = vsel %vm1053, %v2158, 0.0
        %2163 = vadd.xlane.f32.xlu0 %v2162
        %v2164 = vpop.xlane.xlu0 %2163
        %v2165 = vrcp.pop %v2161
        %v2166 = vrcp.pop %v2164
        %v2167 = vmul.f32 %v2156, %v2165
        %v2168 = vmul.f32 %v2158, %v2166
        %v2169 = vpack.c.bf16 %v2167, %v2167
        %v2170 = vpack.c.bf16 %v2168, %v2168
        %2171 = vrot.lane.b32.xlu0 %v956, 64
        %v2172 = vpop.permute.xlu0 %2171
        %v2174 = vsel %vm1053, %v2169, 0
        %v2177 = vsel %vm1081, %v2172, 0
        %2179 = vmatprep.subr.bf16.mxu0 0
        %2180 = vmatpush1.bf16.msra.mxu0 %v2177
        %2181 = vmatprep.subr.bf16.mxu0 0
        %2182 = vmatpush1.bf16.msra.mxu0 0
        %2183 = vmatprep.subr.bf16.mxu0 0
        %2184 = vmatpush1.bf16.msra.mxu0 0
        %2185 = vmatprep.subr.bf16.mxu0 0
        %2186 = vmatpush1.bf16.msra.mxu0 0
        %2187 = vmatprep.subr.bf16.mxu0 0
        %2188 = vmatpush1.bf16.msra.mxu0 0
        %2189 = vmatprep.subr.bf16.mxu0 0
        %2190 = vmatpush1.bf16.msra.mxu0 0
        %2191 = vmatprep.subr.bf16.mxu0 0
        %2192 = vmatpush1.bf16.msra.mxu0 0
        %2193 = vmatprep.subr.bf16.mxu0 0
        %2194 = vmatpush1.bf16.msra.mxu0 0
        %2195 = vmatprep.subr.bf16.mxu0 0
        %2196 = vmatpush1.bf16.msra.mxu0 0
        %2197 = vmatprep.subr.bf16.mxu0 0
        %2198 = vmatpush1.bf16.msra.mxu0 0
        %2199 = vmatprep.subr.bf16.mxu0 0
        %2200 = vmatpush1.bf16.msra.mxu0 0
        %2201 = vmatprep.subr.bf16.mxu0 0
        %2202 = vmatpush1.bf16.msra.mxu0 0
        %2203 = vmatprep.subr.bf16.mxu0 0
        %2204 = vmatpush1.bf16.msra.mxu0 0
        %2205 = vmatprep.subr.bf16.mxu0 0
        %2206 = vmatpush1.bf16.msra.mxu0 0
        %2207 = vmatprep.subr.bf16.mxu0 0
        %2208 = vmatpush1.bf16.msra.mxu0 0
        %2209 = vmatprep.subr.bf16.mxu0 0
        %2210 = vmatpush1.bf16.msra.mxu0 0
        %2211 = vmatprep.mubr.bf16.mxu0 0
        %2212 = vmatmul.mubr.bf16.gmra.mrb[0].mxu0 %v2174
        %v2213 = vpop.f32.mrb[0].mxu0
        %v2214 = vadd.f32 0.0, %v2213
        %v2215 = vpop.f32.mrb[0].mxu0
        %v2216 = vpop.f32.mrb[0].mxu0
        %v2217 = vpop.f32.mrb[0].mxu0
        %2218 = vdwg.mxu0
        %2219 = vrot.lane.b32.xlu0 %v957, 64
        %v2220 = vpop.permute.xlu0 %2219
        %v2222 = vsel %vm1053, %v2170, 0
        %v2225 = vsel %vm1081, %v2220, 0
        %2227 = vmatprep.subr.bf16.mxu0 0
        %2228 = vmatpush1.bf16.msra.mxu0 %v2225
        %2229 = vmatprep.subr.bf16.mxu0 0
        %2230 = vmatpush1.bf16.msra.mxu0 0
        %2231 = vmatprep.subr.bf16.mxu0 0
        %2232 = vmatpush1.bf16.msra.mxu0 0
        %2233 = vmatprep.subr.bf16.mxu0 0
        %2234 = vmatpush1.bf16.msra.mxu0 0
        %2235 = vmatprep.subr.bf16.mxu0 0
        %2236 = vmatpush1.bf16.msra.mxu0 0
        %2237 = vmatprep.subr.bf16.mxu0 0
        %2238 = vmatpush1.bf16.msra.mxu0 0
        %2239 = vmatprep.subr.bf16.mxu0 0
        %2240 = vmatpush1.bf16.msra.mxu0 0
        %2241 = vmatprep.subr.bf16.mxu0 0
        %2242 = vmatpush1.bf16.msra.mxu0 0
        %2243 = vmatprep.subr.bf16.mxu0 0
        %2244 = vmatpush1.bf16.msra.mxu0 0
        %2245 = vmatprep.subr.bf16.mxu0 0
        %2246 = vmatpush1.bf16.msra.mxu0 0
        %2247 = vmatprep.subr.bf16.mxu0 0
        %2248 = vmatpush1.bf16.msra.mxu0 0
        %2249 = vmatprep.subr.bf16.mxu0 0
        %2250 = vmatpush1.bf16.msra.mxu0 0
        %2251 = vmatprep.subr.bf16.mxu0 0
        %2252 = vmatpush1.bf16.msra.mxu0 0
        %2253 = vmatprep.subr.bf16.mxu0 0
        %2254 = vmatpush1.bf16.msra.mxu0 0
        %2255 = vmatprep.subr.bf16.mxu0 0
        %2256 = vmatpush1.bf16.msra.mxu0 0
        %2257 = vmatprep.subr.bf16.mxu0 0
        %2258 = vmatpush1.bf16.msra.mxu0 0
        %2259 = vmatprep.mubr.bf16.mxu0 0
        %2260 = vmatmul.mubr.bf16.gmra.mrb[0].mxu0 %v2222
        %v2261 = vpop.f32.mrb[0].mxu0
        %v2262 = vadd.f32 0.0, %v2261
        %v2263 = vpop.f32.mrb[0].mxu0
        %v2264 = vpop.f32.mrb[0].mxu0
        %v2265 = vpop.f32.mrb[0].mxu0
        %2266 = vdwg.mxu0
        %v2267 = vpack.c.bf16 %v2262, %v2214
        %v2270 = vunpack.c.l.b16 %v653
        %v2271 = vunpack.c.l.b16 %v654
        %v2272 = vpack.c.b16 %v2271, %v2270
        %v2275 = vsel %vm958, %v2267, 0
        %2277 = vmatprep.subr.bf16.mxu0 0
        %2278 = vmatpush1.bf16.msra.mxu0 %v2272
        %2279 = vmatprep.subr.bf16.mxu0 0
        %2280 = vmatpush1.bf16.msra.mxu0 0
        %2281 = vmatprep.subr.bf16.mxu0 0
        %2282 = vmatpush1.bf16.msra.mxu0 0
        %2283 = vmatprep.subr.bf16.mxu0 0
        %2284 = vmatpush1.bf16.msra.mxu0 0
        %2285 = vmatprep.subr.bf16.mxu0 0
        %2286 = vmatpush1.bf16.msra.mxu0 0
        %2287 = vmatprep.subr.bf16.mxu0 0
        %2288 = vmatpush1.bf16.msra.mxu0 0
        %2289 = vmatprep.subr.bf16.mxu0 0
        %2290 = vmatpush1.bf16.msra.mxu0 0
        %2291 = vmatprep.subr.bf16.mxu0 0
        %2292 = vmatpush1.bf16.msra.mxu0 0
        %2293 = vmatprep.subr.bf16.mxu0 0
        %2294 = vmatpush1.bf16.msra.mxu0 0
        %2295 = vmatprep.subr.bf16.mxu0 0
        %2296 = vmatpush1.bf16.msra.mxu0 0
        %2297 = vmatprep.subr.bf16.mxu0 0
        %2298 = vmatpush1.bf16.msra.mxu0 0
        %2299 = vmatprep.subr.bf16.mxu0 0
        %2300 = vmatpush1.bf16.msra.mxu0 0
        %2301 = vmatprep.subr.bf16.mxu0 0
        %2302 = vmatpush1.bf16.msra.mxu0 0
        %2303 = vmatprep.subr.bf16.mxu0 0
        %2304 = vmatpush1.bf16.msra.mxu0 0
        %2305 = vmatprep.subr.bf16.mxu0 0
        %2306 = vmatpush1.bf16.msra.mxu0 0
        %2307 = vmatprep.subr.bf16.mxu0 0
        %2308 = vmatpush1.bf16.msra.mxu0 0
        %2309 = vmatprep.mubr.bf16.mxu0 0
        %2310 = vmatmul.mubr.bf16.gmra.mrb[0].mxu0 %v2275
        %v2311 = vpop.f32.mrb[0].mxu0
        %v2312 = vadd.f32 0.0, %v2311
        %v2313 = vpop.f32.mrb[0].mxu0
        %v2314 = vpop.f32.mrb[0].mxu0
        %v2315 = vadd.f32 0.0, %v2314
        %v2316 = vpop.f32.mrb[0].mxu0
        %2317 = vdwg.mxu0
        %v2318 = vadd.f32 %v2043, %v2312
        %v2319 = vadd.f32 %v2044, %v2315
        %2320 = vrot.lane.b32.xlu0 %v944, 48
        %v2321 = vpop.permute.xlu0 %2320
        %2322 = vrot.lane.b32.xlu0 %v950, 48
        %v2323 = vpop.permute.xlu0 %2322
        %v2325 = vsel %vm958, %v2321, 0
        %v2328 = vsel %vm958, %v2323, 0
        %2330 = vmatprep.subr.bf16.mxu0 0
        %2331 = vmatpush1.bf16.xpose.msra.mxu0 %v2328
        %2332 = vmatprep.subr.bf16.mxu0 0
        %2333 = vmatpush1.bf16.xpose.msra.mxu0 0
        %2334 = vmatprep.subr.bf16.mxu0 0
        %2335 = vmatpush1.bf16.xpose.msra.mxu0 0
        %2336 = vmatprep.subr.bf16.mxu0 0
        %2337 = vmatpush1.bf16.xpose.msra.mxu0 0
        %2338 = vmatprep.subr.bf16.mxu0 0
        %2339 = vmatpush1.bf16.xpose.msra.mxu0 0
        %2340 = vmatprep.subr.bf16.mxu0 0
        %2341 = vmatpush1.bf16.xpose.msra.mxu0 0
        %2342 = vmatprep.subr.bf16.mxu0 0
        %2343 = vmatpush1.bf16.xpose.msra.mxu0 0
        %2344 = vmatprep.subr.bf16.mxu0 0
        %2345 = vmatpush1.bf16.xpose.msra.mxu0 0
        %2346 = vmatprep.subr.bf16.mxu0 0
        %2347 = vmatpush1.bf16.xpose.msra.mxu0 0
        %2348 = vmatprep.subr.bf16.mxu0 0
        %2349 = vmatpush1.bf16.xpose.msra.mxu0 0
        %2350 = vmatprep.subr.bf16.mxu0 0
        %2351 = vmatpush1.bf16.xpose.msra.mxu0 0
        %2352 = vmatprep.subr.bf16.mxu0 0
        %2353 = vmatpush1.bf16.xpose.msra.mxu0 0
        %2354 = vmatprep.subr.bf16.mxu0 0
        %2355 = vmatpush1.bf16.xpose.msra.mxu0 0
        %2356 = vmatprep.subr.bf16.mxu0 0
        %2357 = vmatpush1.bf16.xpose.msra.mxu0 0
        %2358 = vmatprep.subr.bf16.mxu0 0
        %2359 = vmatpush1.bf16.xpose.msra.mxu0 0
        %2360 = vmatprep.subr.bf16.mxu0 0
        %2361 = vmatpush1.bf16.xpose.msra.mxu0 0
        %2362 = vmatprep.mubr.bf16.mxu0 0
        %2363 = vmatmul.mubr.bf16.gmra.mrb[0].mxu0 %v2325
        %v2364 = vpop.f32.mrb[0].mxu0
        %v2365 = vadd.f32 0.0, %v2364
        %v2366 = vpop.f32.mrb[0].mxu0
        %v2367 = vpop.f32.mrb[0].mxu0
        %v2368 = vpop.f32.mrb[0].mxu0
        %2369 = vdwg.mxu0
        %2370 = vrot.lane.b32.xlu0 %v945, 48
        %v2371 = vpop.permute.xlu0 %2370
        %2372 = vrot.lane.b32.xlu0 %v951, 48
        %v2373 = vpop.permute.xlu0 %2372
        %v2375 = vsel %vm958, %v2371, 0
        %v2378 = vsel %vm958, %v2373, 0
        %2380 = vmatprep.subr.bf16.mxu0 0
        %2381 = vmatpush1.bf16.xpose.msra.mxu0 %v2378
        %2382 = vmatprep.subr.bf16.mxu0 0
        %2383 = vmatpush1.bf16.xpose.msra.mxu0 0
        %2384 = vmatprep.subr.bf16.mxu0 0
        %2385 = vmatpush1.bf16.xpose.msra.mxu0 0
        %2386 = vmatprep.subr.bf16.mxu0 0
        %2387 = vmatpush1.bf16.xpose.msra.mxu0 0
        %2388 = vmatprep.subr.bf16.mxu0 0
        %2389 = vmatpush1.bf16.xpose.msra.mxu0 0
        %2390 = vmatprep.subr.bf16.mxu0 0
        %2391 = vmatpush1.bf16.xpose.msra.mxu0 0
        %2392 = vmatprep.subr.bf16.mxu0 0
        %2393 = vmatpush1.bf16.xpose.msra.mxu0 0
        %2394 = vmatprep.subr.bf16.mxu0 0
        %2395 = vmatpush1.bf16.xpose.msra.mxu0 0
        %2396 = vmatprep.subr.bf16.mxu0 0
        %2397 = vmatpush1.bf16.xpose.msra.mxu0 0
        %2398 = vmatprep.subr.bf16.mxu0 0
        %2399 = vmatpush1.bf16.xpose.msra.mxu0 0
        %2400 = vmatprep.subr.bf16.mxu0 0
        %2401 = vmatpush1.bf16.xpose.msra.mxu0 0
        %2402 = vmatprep.subr.bf16.mxu0 0
        %2403 = vmatpush1.bf16.xpose.msra.mxu0 0
        %2404 = vmatprep.subr.bf16.mxu0 0
        %2405 = vmatpush1.bf16.xpose.msra.mxu0 0
        %2406 = vmatprep.subr.bf16.mxu0 0
        %2407 = vmatpush1.bf16.xpose.msra.mxu0 0
        %2408 = vmatprep.subr.bf16.mxu0 0
        %2409 = vmatpush1.bf16.xpose.msra.mxu0 0
        %2410 = vmatprep.subr.bf16.mxu0 0
        %2411 = vmatpush1.bf16.xpose.msra.mxu0 0
        %2412 = vmatprep.mubr.bf16.mxu0 0
        %2413 = vmatmul.mubr.bf16.gmra.mrb[0].mxu0 %v2375
        %v2414 = vpop.f32.mrb[0].mxu0
        %v2415 = vadd.f32 0.0, %v2414
        %v2416 = vpop.f32.mrb[0].mxu0
        %v2417 = vpop.f32.mrb[0].mxu0
        %v2418 = vpop.f32.mrb[0].mxu0
        %2419 = vdwg.mxu0
        %v2420 = vmul.f32 %v2365, 0.25
        %v2421 = vmul.f32 %v2415, 0.25
        %v2422 = vsel %vm1053, %v2420, -inf
        %2423 = vmax.xlane.f32.xlu0 %v2422
        %v2424 = vpop.xlane.xlu0 %2423
        %v2425 = vsel %vm1053, %v2421, -inf
        %2426 = vmax.xlane.f32.xlu0 %v2425
        %v2427 = vpop.xlane.xlu0 %2426
        %v2428 = vsub.f32 %v2420, %v2424
        %v2429 = vsub.f32 %v2421, %v2427
        %v2430 = vmul.f32 %v2428, 1.442695
        %v2431 = vpow.pop %v2430
        %v2432 = vmul.f32 %v2429, 1.442695
        %v2433 = vpow.pop %v2432
        %v2434 = vsel %vm1053, %v2431, 0.0
        %2435 = vadd.xlane.f32.xlu0 %v2434
        %v2436 = vpop.xlane.xlu0 %2435
        %v2437 = vsel %vm1053, %v2433, 0.0
        %2438 = vadd.xlane.f32.xlu0 %v2437
        %v2439 = vpop.xlane.xlu0 %2438
        %v2440 = vrcp.pop %v2436
        %v2441 = vrcp.pop %v2439
        %v2442 = vmul.f32 %v2431, %v2440
        %v2443 = vmul.f32 %v2433, %v2441
        %v2444 = vpack.c.bf16 %v2442, %v2442
        %v2445 = vpack.c.bf16 %v2443, %v2443
        %2446 = vrot.lane.b32.xlu0 %v956, 48
        %v2447 = vpop.permute.xlu0 %2446
        %v2449 = vsel %vm1053, %v2444, 0
        %v2452 = vsel %vm1081, %v2447, 0
        %2454 = vmatprep.subr.bf16.mxu0 0
        %2455 = vmatpush1.bf16.msra.mxu0 %v2452
        %2456 = vmatprep.subr.bf16.mxu0 0
        %2457 = vmatpush1.bf16.msra.mxu0 0
        %2458 = vmatprep.subr.bf16.mxu0 0
        %2459 = vmatpush1.bf16.msra.mxu0 0
        %2460 = vmatprep.subr.bf16.mxu0 0
        %2461 = vmatpush1.bf16.msra.mxu0 0
        %2462 = vmatprep.subr.bf16.mxu0 0
        %2463 = vmatpush1.bf16.msra.mxu0 0
        %2464 = vmatprep.subr.bf16.mxu0 0
        %2465 = vmatpush1.bf16.msra.mxu0 0
        %2466 = vmatprep.subr.bf16.mxu0 0
        %2467 = vmatpush1.bf16.msra.mxu0 0
        %2468 = vmatprep.subr.bf16.mxu0 0
        %2469 = vmatpush1.bf16.msra.mxu0 0
        %2470 = vmatprep.subr.bf16.mxu0 0
        %2471 = vmatpush1.bf16.msra.mxu0 0
        %2472 = vmatprep.subr.bf16.mxu0 0
        %2473 = vmatpush1.bf16.msra.mxu0 0
        %2474 = vmatprep.subr.bf16.mxu0 0
        %2475 = vmatpush1.bf16.msra.mxu0 0
        %2476 = vmatprep.subr.bf16.mxu0 0
        %2477 = vmatpush1.bf16.msra.mxu0 0
        %2478 = vmatprep.subr.bf16.mxu0 0
        %2479 = vmatpush1.bf16.msra.mxu0 0
        %2480 = vmatprep.subr.bf16.mxu0 0
        %2481 = vmatpush1.bf16.msra.mxu0 0
        %2482 = vmatprep.subr.bf16.mxu0 0
        %2483 = vmatpush1.bf16.msra.mxu0 0
        %2484 = vmatprep.subr.bf16.mxu0 0
        %2485 = vmatpush1.bf16.msra.mxu0 0
        %2486 = vmatprep.mubr.bf16.mxu0 0
        %2487 = vmatmul.mubr.bf16.gmra.mrb[0].mxu0 %v2449
        %v2488 = vpop.f32.mrb[0].mxu0
        %v2489 = vadd.f32 0.0, %v2488
        %v2490 = vpop.f32.mrb[0].mxu0
        %v2491 = vpop.f32.mrb[0].mxu0
        %v2492 = vpop.f32.mrb[0].mxu0
        %2493 = vdwg.mxu0
        %2494 = vrot.lane.b32.xlu0 %v957, 48
        %v2495 = vpop.permute.xlu0 %2494
        %v2497 = vsel %vm1053, %v2445, 0
        %v2500 = vsel %vm1081, %v2495, 0
        %2502 = vmatprep.subr.bf16.mxu0 0
        %2503 = vmatpush1.bf16.msra.mxu0 %v2500
        %2504 = vmatprep.subr.bf16.mxu0 0
        %2505 = vmatpush1.bf16.msra.mxu0 0
        %2506 = vmatprep.subr.bf16.mxu0 0
        %2507 = vmatpush1.bf16.msra.mxu0 0
        %2508 = vmatprep.subr.bf16.mxu0 0
        %2509 = vmatpush1.bf16.msra.mxu0 0
        %2510 = vmatprep.subr.bf16.mxu0 0
        %2511 = vmatpush1.bf16.msra.mxu0 0
        %2512 = vmatprep.subr.bf16.mxu0 0
        %2513 = vmatpush1.bf16.msra.mxu0 0
        %2514 = vmatprep.subr.bf16.mxu0 0
        %2515 = vmatpush1.bf16.msra.mxu0 0
        %2516 = vmatprep.subr.bf16.mxu0 0
        %2517 = vmatpush1.bf16.msra.mxu0 0
        %2518 = vmatprep.subr.bf16.mxu0 0
        %2519 = vmatpush1.bf16.msra.mxu0 0
        %2520 = vmatprep.subr.bf16.mxu0 0
        %2521 = vmatpush1.bf16.msra.mxu0 0
        %2522 = vmatprep.subr.bf16.mxu0 0
        %2523 = vmatpush1.bf16.msra.mxu0 0
        %2524 = vmatprep.subr.bf16.mxu0 0
        %2525 = vmatpush1.bf16.msra.mxu0 0
        %2526 = vmatprep.subr.bf16.mxu0 0
        %2527 = vmatpush1.bf16.msra.mxu0 0
        %2528 = vmatprep.subr.bf16.mxu0 0
        %2529 = vmatpush1.bf16.msra.mxu0 0
        %2530 = vmatprep.subr.bf16.mxu0 0
        %2531 = vmatpush1.bf16.msra.mxu0 0
        %2532 = vmatprep.subr.bf16.mxu0 0
        %2533 = vmatpush1.bf16.msra.mxu0 0
        %2534 = vmatprep.mubr.bf16.mxu0 0
        %2535 = vmatmul.mubr.bf16.gmra.mrb[0].mxu0 %v2497
        %v2536 = vpop.f32.mrb[0].mxu0
        %v2537 = vadd.f32 0.0, %v2536
        %v2538 = vpop.f32.mrb[0].mxu0
        %v2539 = vpop.f32.mrb[0].mxu0
        %v2540 = vpop.f32.mrb[0].mxu0
        %2541 = vdwg.mxu0
        %v2542 = vpack.c.bf16 %v2537, %v2489
        %v2545 = vunpack.c.l.b16 %v655
        %v2546 = vunpack.c.l.b16 %v656
        %v2547 = vpack.c.b16 %v2546, %v2545
        %v2550 = vsel %vm958, %v2542, 0
        %2552 = vmatprep.subr.bf16.mxu0 0
        %2553 = vmatpush1.bf16.msra.mxu0 %v2547
        %2554 = vmatprep.subr.bf16.mxu0 0
        %2555 = vmatpush1.bf16.msra.mxu0 0
        %2556 = vmatprep.subr.bf16.mxu0 0
        %2557 = vmatpush1.bf16.msra.mxu0 0
        %2558 = vmatprep.subr.bf16.mxu0 0
        %2559 = vmatpush1.bf16.msra.mxu0 0
        %2560 = vmatprep.subr.bf16.mxu0 0
        %2561 = vmatpush1.bf16.msra.mxu0 0
        %2562 = vmatprep.subr.bf16.mxu0 0
        %2563 = vmatpush1.bf16.msra.mxu0 0
        %2564 = vmatprep.subr.bf16.mxu0 0
        %2565 = vmatpush1.bf16.msra.mxu0 0
        %2566 = vmatprep.subr.bf16.mxu0 0
        %2567 = vmatpush1.bf16.msra.mxu0 0
        %2568 = vmatprep.subr.bf16.mxu0 0
        %2569 = vmatpush1.bf16.msra.mxu0 0
        %2570 = vmatprep.subr.bf16.mxu0 0
        %2571 = vmatpush1.bf16.msra.mxu0 0
        %2572 = vmatprep.subr.bf16.mxu0 0
        %2573 = vmatpush1.bf16.msra.mxu0 0
        %2574 = vmatprep.subr.bf16.mxu0 0
        %2575 = vmatpush1.bf16.msra.mxu0 0
        %2576 = vmatprep.subr.bf16.mxu0 0
        %2577 = vmatpush1.bf16.msra.mxu0 0
        %2578 = vmatprep.subr.bf16.mxu0 0
        %2579 = vmatpush1.bf16.msra.mxu0 0
        %2580 = vmatprep.subr.bf16.mxu0 0
        %2581 = vmatpush1.bf16.msra.mxu0 0
        %2582 = vmatprep.subr.bf16.mxu0 0
        %2583 = vmatpush1.bf16.msra.mxu0 0
        %2584 = vmatprep.mubr.bf16.mxu0 0
        %2585 = vmatmul.mubr.bf16.gmra.mrb[0].mxu0 %v2550
        %v2586 = vpop.f32.mrb[0].mxu0
        %v2587 = vadd.f32 0.0, %v2586
        %v2588 = vpop.f32.mrb[0].mxu0
        %v2589 = vpop.f32.mrb[0].mxu0
        %v2590 = vadd.f32 0.0, %v2589
        %v2591 = vpop.f32.mrb[0].mxu0
        %2592 = vdwg.mxu0
        %v2593 = vadd.f32 %v2318, %v2587
        %v2594 = vadd.f32 %v2319, %v2590
        %2595 = vrot.lane.b32.xlu0 %v944, 32
        %v2596 = vpop.permute.xlu0 %2595
        %2597 = vrot.lane.b32.xlu0 %v950, 32
        %v2598 = vpop.permute.xlu0 %2597
        %v2600 = vsel %vm958, %v2596, 0
        %v2603 = vsel %vm958, %v2598, 0
        %2605 = vmatprep.subr.bf16.mxu0 0
        %2606 = vmatpush1.bf16.xpose.msra.mxu0 %v2603
        %2607 = vmatprep.subr.bf16.mxu0 0
        %2608 = vmatpush1.bf16.xpose.msra.mxu0 0
        %2609 = vmatprep.subr.bf16.mxu0 0
        %2610 = vmatpush1.bf16.xpose.msra.mxu0 0
        %2611 = vmatprep.subr.bf16.mxu0 0
        %2612 = vmatpush1.bf16.xpose.msra.mxu0 0
        %2613 = vmatprep.subr.bf16.mxu0 0
        %2614 = vmatpush1.bf16.xpose.msra.mxu0 0
        %2615 = vmatprep.subr.bf16.mxu0 0
        %2616 = vmatpush1.bf16.xpose.msra.mxu0 0
        %2617 = vmatprep.subr.bf16.mxu0 0
        %2618 = vmatpush1.bf16.xpose.msra.mxu0 0
        %2619 = vmatprep.subr.bf16.mxu0 0
        %2620 = vmatpush1.bf16.xpose.msra.mxu0 0
        %2621 = vmatprep.subr.bf16.mxu0 0
        %2622 = vmatpush1.bf16.xpose.msra.mxu0 0
        %2623 = vmatprep.subr.bf16.mxu0 0
        %2624 = vmatpush1.bf16.xpose.msra.mxu0 0
        %2625 = vmatprep.subr.bf16.mxu0 0
        %2626 = vmatpush1.bf16.xpose.msra.mxu0 0
        %2627 = vmatprep.subr.bf16.mxu0 0
        %2628 = vmatpush1.bf16.xpose.msra.mxu0 0
        %2629 = vmatprep.subr.bf16.mxu0 0
        %2630 = vmatpush1.bf16.xpose.msra.mxu0 0
        %2631 = vmatprep.subr.bf16.mxu0 0
        %2632 = vmatpush1.bf16.xpose.msra.mxu0 0
        %2633 = vmatprep.subr.bf16.mxu0 0
        %2634 = vmatpush1.bf16.xpose.msra.mxu0 0
        %2635 = vmatprep.subr.bf16.mxu0 0
        %2636 = vmatpush1.bf16.xpose.msra.mxu0 0
        %2637 = vmatprep.mubr.bf16.mxu0 0
        %2638 = vmatmul.mubr.bf16.gmra.mrb[0].mxu0 %v2600
        %v2639 = vpop.f32.mrb[0].mxu0
        %v2640 = vadd.f32 0.0, %v2639
        %v2641 = vpop.f32.mrb[0].mxu0
        %v2642 = vpop.f32.mrb[0].mxu0
        %v2643 = vpop.f32.mrb[0].mxu0
        %2644 = vdwg.mxu0
        %2645 = vrot.lane.b32.xlu0 %v945, 32
        %v2646 = vpop.permute.xlu0 %2645
        %2647 = vrot.lane.b32.xlu0 %v951, 32
        %v2648 = vpop.permute.xlu0 %2647
        %v2650 = vsel %vm958, %v2646, 0
        %v2653 = vsel %vm958, %v2648, 0
        %2655 = vmatprep.subr.bf16.mxu0 0
        %2656 = vmatpush1.bf16.xpose.msra.mxu0 %v2653
        %2657 = vmatprep.subr.bf16.mxu0 0
        %2658 = vmatpush1.bf16.xpose.msra.mxu0 0
        %2659 = vmatprep.subr.bf16.mxu0 0
        %2660 = vmatpush1.bf16.xpose.msra.mxu0 0
        %2661 = vmatprep.subr.bf16.mxu0 0
        %2662 = vmatpush1.bf16.xpose.msra.mxu0 0
        %2663 = vmatprep.subr.bf16.mxu0 0
        %2664 = vmatpush1.bf16.xpose.msra.mxu0 0
        %2665 = vmatprep.subr.bf16.mxu0 0
        %2666 = vmatpush1.bf16.xpose.msra.mxu0 0
        %2667 = vmatprep.subr.bf16.mxu0 0
        %2668 = vmatpush1.bf16.xpose.msra.mxu0 0
        %2669 = vmatprep.subr.bf16.mxu0 0
        %2670 = vmatpush1.bf16.xpose.msra.mxu0 0
        %2671 = vmatprep.subr.bf16.mxu0 0
        %2672 = vmatpush1.bf16.xpose.msra.mxu0 0
        %2673 = vmatprep.subr.bf16.mxu0 0
        %2674 = vmatpush1.bf16.xpose.msra.mxu0 0
        %2675 = vmatprep.subr.bf16.mxu0 0
        %2676 = vmatpush1.bf16.xpose.msra.mxu0 0
        %2677 = vmatprep.subr.bf16.mxu0 0
        %2678 = vmatpush1.bf16.xpose.msra.mxu0 0
        %2679 = vmatprep.subr.bf16.mxu0 0
        %2680 = vmatpush1.bf16.xpose.msra.mxu0 0
        %2681 = vmatprep.subr.bf16.mxu0 0
        %2682 = vmatpush1.bf16.xpose.msra.mxu0 0
        %2683 = vmatprep.subr.bf16.mxu0 0
        %2684 = vmatpush1.bf16.xpose.msra.mxu0 0
        %2685 = vmatprep.subr.bf16.mxu0 0
        %2686 = vmatpush1.bf16.xpose.msra.mxu0 0
        %2687 = vmatprep.mubr.bf16.mxu0 0
        %2688 = vmatmul.mubr.bf16.gmra.mrb[0].mxu0 %v2650
        %v2689 = vpop.f32.mrb[0].mxu0
        %v2690 = vadd.f32 0.0, %v2689
        %v2691 = vpop.f32.mrb[0].mxu0
        %v2692 = vpop.f32.mrb[0].mxu0
        %v2693 = vpop.f32.mrb[0].mxu0
        %2694 = vdwg.mxu0
        %v2695 = vmul.f32 %v2640, 0.25
        %v2696 = vmul.f32 %v2690, 0.25
        %v2697 = vsel %vm1053, %v2695, -inf
        %2698 = vmax.xlane.f32.xlu0 %v2697
        %v2699 = vpop.xlane.xlu0 %2698
        %v2700 = vsel %vm1053, %v2696, -inf
        %2701 = vmax.xlane.f32.xlu0 %v2700
        %v2702 = vpop.xlane.xlu0 %2701
        %v2703 = vsub.f32 %v2695, %v2699
        %v2704 = vsub.f32 %v2696, %v2702
        %v2705 = vmul.f32 %v2703, 1.442695
        %v2706 = vpow.pop %v2705
        %v2707 = vmul.f32 %v2704, 1.442695
        %v2708 = vpow.pop %v2707
        %v2709 = vsel %vm1053, %v2706, 0.0
        %2710 = vadd.xlane.f32.xlu0 %v2709
        %v2711 = vpop.xlane.xlu0 %2710
        %v2712 = vsel %vm1053, %v2708, 0.0
        %2713 = vadd.xlane.f32.xlu0 %v2712
        %v2714 = vpop.xlane.xlu0 %2713
        %v2715 = vrcp.pop %v2711
        %v2716 = vrcp.pop %v2714
        %v2717 = vmul.f32 %v2706, %v2715
        %v2718 = vmul.f32 %v2708, %v2716
        %v2719 = vpack.c.bf16 %v2717, %v2717
        %v2720 = vpack.c.bf16 %v2718, %v2718
        %2721 = vrot.lane.b32.xlu0 %v956, 32
        %v2722 = vpop.permute.xlu0 %2721
        %v2724 = vsel %vm1053, %v2719, 0
        %v2727 = vsel %vm1081, %v2722, 0
        %2729 = vmatprep.subr.bf16.mxu0 0
        %2730 = vmatpush1.bf16.msra.mxu0 %v2727
        %2731 = vmatprep.subr.bf16.mxu0 0
        %2732 = vmatpush1.bf16.msra.mxu0 0
        %2733 = vmatprep.subr.bf16.mxu0 0
        %2734 = vmatpush1.bf16.msra.mxu0 0
        %2735 = vmatprep.subr.bf16.mxu0 0
        %2736 = vmatpush1.bf16.msra.mxu0 0
        %2737 = vmatprep.subr.bf16.mxu0 0
        %2738 = vmatpush1.bf16.msra.mxu0 0
        %2739 = vmatprep.subr.bf16.mxu0 0
        %2740 = vmatpush1.bf16.msra.mxu0 0
        %2741 = vmatprep.subr.bf16.mxu0 0
        %2742 = vmatpush1.bf16.msra.mxu0 0
        %2743 = vmatprep.subr.bf16.mxu0 0
        %2744 = vmatpush1.bf16.msra.mxu0 0
        %2745 = vmatprep.subr.bf16.mxu0 0
        %2746 = vmatpush1.bf16.msra.mxu0 0
        %2747 = vmatprep.subr.bf16.mxu0 0
        %2748 = vmatpush1.bf16.msra.mxu0 0
        %2749 = vmatprep.subr.bf16.mxu0 0
        %2750 = vmatpush1.bf16.msra.mxu0 0
        %2751 = vmatprep.subr.bf16.mxu0 0
        %2752 = vmatpush1.bf16.msra.mxu0 0
        %2753 = vmatprep.subr.bf16.mxu0 0
        %2754 = vmatpush1.bf16.msra.mxu0 0
        %2755 = vmatprep.subr.bf16.mxu0 0
        %2756 = vmatpush1.bf16.msra.mxu0 0
        %2757 = vmatprep.subr.bf16.mxu0 0
        %2758 = vmatpush1.bf16.msra.mxu0 0
        %2759 = vmatprep.subr.bf16.mxu0 0
        %2760 = vmatpush1.bf16.msra.mxu0 0
        %2761 = vmatprep.mubr.bf16.mxu0 0
        %2762 = vmatmul.mubr.bf16.gmra.mrb[0].mxu0 %v2724
        %v2763 = vpop.f32.mrb[0].mxu0
        %v2764 = vadd.f32 0.0, %v2763
        %v2765 = vpop.f32.mrb[0].mxu0
        %v2766 = vpop.f32.mrb[0].mxu0
        %v2767 = vpop.f32.mrb[0].mxu0
        %2768 = vdwg.mxu0
        %2769 = vrot.lane.b32.xlu0 %v957, 32
        %v2770 = vpop.permute.xlu0 %2769
        %v2772 = vsel %vm1053, %v2720, 0
        %v2775 = vsel %vm1081, %v2770, 0
        %2777 = vmatprep.subr.bf16.mxu0 0
        %2778 = vmatpush1.bf16.msra.mxu0 %v2775
        %2779 = vmatprep.subr.bf16.mxu0 0
        %2780 = vmatpush1.bf16.msra.mxu0 0
        %2781 = vmatprep.subr.bf16.mxu0 0
        %2782 = vmatpush1.bf16.msra.mxu0 0
        %2783 = vmatprep.subr.bf16.mxu0 0
        %2784 = vmatpush1.bf16.msra.mxu0 0
        %2785 = vmatprep.subr.bf16.mxu0 0
        %2786 = vmatpush1.bf16.msra.mxu0 0
        %2787 = vmatprep.subr.bf16.mxu0 0
        %2788 = vmatpush1.bf16.msra.mxu0 0
        %2789 = vmatprep.subr.bf16.mxu0 0
        %2790 = vmatpush1.bf16.msra.mxu0 0
        %2791 = vmatprep.subr.bf16.mxu0 0
        %2792 = vmatpush1.bf16.msra.mxu0 0
        %2793 = vmatprep.subr.bf16.mxu0 0
        %2794 = vmatpush1.bf16.msra.mxu0 0
        %2795 = vmatprep.subr.bf16.mxu0 0
        %2796 = vmatpush1.bf16.msra.mxu0 0
        %2797 = vmatprep.subr.bf16.mxu0 0
        %2798 = vmatpush1.bf16.msra.mxu0 0
        %2799 = vmatprep.subr.bf16.mxu0 0
        %2800 = vmatpush1.bf16.msra.mxu0 0
        %2801 = vmatprep.subr.bf16.mxu0 0
        %2802 = vmatpush1.bf16.msra.mxu0 0
        %2803 = vmatprep.subr.bf16.mxu0 0
        %2804 = vmatpush1.bf16.msra.mxu0 0
        %2805 = vmatprep.subr.bf16.mxu0 0
        %2806 = vmatpush1.bf16.msra.mxu0 0
        %2807 = vmatprep.subr.bf16.mxu0 0
        %2808 = vmatpush1.bf16.msra.mxu0 0
        %2809 = vmatprep.mubr.bf16.mxu0 0
        %2810 = vmatmul.mubr.bf16.gmra.mrb[0].mxu0 %v2772
        %v2811 = vpop.f32.mrb[0].mxu0
        %v2812 = vadd.f32 0.0, %v2811
        %v2813 = vpop.f32.mrb[0].mxu0
        %v2814 = vpop.f32.mrb[0].mxu0
        %v2815 = vpop.f32.mrb[0].mxu0
        %2816 = vdwg.mxu0
        %v2817 = vpack.c.bf16 %v2812, %v2764
        %v2820 = vunpack.c.l.b16 %v657
        %v2821 = vunpack.c.l.b16 %v658
        %v2822 = vpack.c.b16 %v2821, %v2820
        %v2825 = vsel %vm958, %v2817, 0
        %2827 = vmatprep.subr.bf16.mxu0 0
        %2828 = vmatpush1.bf16.msra.mxu0 %v2822
        %2829 = vmatprep.subr.bf16.mxu0 0
        %2830 = vmatpush1.bf16.msra.mxu0 0
        %2831 = vmatprep.subr.bf16.mxu0 0
        %2832 = vmatpush1.bf16.msra.mxu0 0
        %2833 = vmatprep.subr.bf16.mxu0 0
        %2834 = vmatpush1.bf16.msra.mxu0 0
        %2835 = vmatprep.subr.bf16.mxu0 0
        %2836 = vmatpush1.bf16.msra.mxu0 0
        %2837 = vmatprep.subr.bf16.mxu0 0
        %2838 = vmatpush1.bf16.msra.mxu0 0
        %2839 = vmatprep.subr.bf16.mxu0 0
        %2840 = vmatpush1.bf16.msra.mxu0 0
        %2841 = vmatprep.subr.bf16.mxu0 0
        %2842 = vmatpush1.bf16.msra.mxu0 0
        %2843 = vmatprep.subr.bf16.mxu0 0
        %2844 = vmatpush1.bf16.msra.mxu0 0
        %2845 = vmatprep.subr.bf16.mxu0 0
        %2846 = vmatpush1.bf16.msra.mxu0 0
        %2847 = vmatprep.subr.bf16.mxu0 0
        %2848 = vmatpush1.bf16.msra.mxu0 0
        %2849 = vmatprep.subr.bf16.mxu0 0
        %2850 = vmatpush1.bf16.msra.mxu0 0
        %2851 = vmatprep.subr.bf16.mxu0 0
        %2852 = vmatpush1.bf16.msra.mxu0 0
        %2853 = vmatprep.subr.bf16.mxu0 0
        %2854 = vmatpush1.bf16.msra.mxu0 0
        %2855 = vmatprep.subr.bf16.mxu0 0
        %2856 = vmatpush1.bf16.msra.mxu0 0
        %2857 = vmatprep.subr.bf16.mxu0 0
        %2858 = vmatpush1.bf16.msra.mxu0 0
        %2859 = vmatprep.mubr.bf16.mxu0 0
        %2860 = vmatmul.mubr.bf16.gmra.mrb[0].mxu0 %v2825
        %v2861 = vpop.f32.mrb[0].mxu0
        %v2862 = vadd.f32 0.0, %v2861
        %v2863 = vpop.f32.mrb[0].mxu0
        %v2864 = vpop.f32.mrb[0].mxu0
        %v2865 = vadd.f32 0.0, %v2864
        %v2866 = vpop.f32.mrb[0].mxu0
        %2867 = vdwg.mxu0
        %v2868 = vadd.f32 %v2593, %v2862
        %v2869 = vadd.f32 %v2594, %v2865
        %2870 = vrot.lane.b32.xlu0 %v944, 16
        %v2871 = vpop.permute.xlu0 %2870
        %2872 = vrot.lane.b32.xlu0 %v950, 16
        %v2873 = vpop.permute.xlu0 %2872
        %v2875 = vsel %vm958, %v2871, 0
        %v2878 = vsel %vm958, %v2873, 0
        %2880 = vmatprep.subr.bf16.mxu0 0
        %2881 = vmatpush1.bf16.xpose.msra.mxu0 %v2878
        %2882 = vmatprep.subr.bf16.mxu0 0
        %2883 = vmatpush1.bf16.xpose.msra.mxu0 0
        %2884 = vmatprep.subr.bf16.mxu0 0
        %2885 = vmatpush1.bf16.xpose.msra.mxu0 0
        %2886 = vmatprep.subr.bf16.mxu0 0
        %2887 = vmatpush1.bf16.xpose.msra.mxu0 0
        %2888 = vmatprep.subr.bf16.mxu0 0
        %2889 = vmatpush1.bf16.xpose.msra.mxu0 0
        %2890 = vmatprep.subr.bf16.mxu0 0
        %2891 = vmatpush1.bf16.xpose.msra.mxu0 0
        %2892 = vmatprep.subr.bf16.mxu0 0
        %2893 = vmatpush1.bf16.xpose.msra.mxu0 0
        %2894 = vmatprep.subr.bf16.mxu0 0
        %2895 = vmatpush1.bf16.xpose.msra.mxu0 0
        %2896 = vmatprep.subr.bf16.mxu0 0
        %2897 = vmatpush1.bf16.xpose.msra.mxu0 0
        %2898 = vmatprep.subr.bf16.mxu0 0
        %2899 = vmatpush1.bf16.xpose.msra.mxu0 0
        %2900 = vmatprep.subr.bf16.mxu0 0
        %2901 = vmatpush1.bf16.xpose.msra.mxu0 0
        %2902 = vmatprep.subr.bf16.mxu0 0
        %2903 = vmatpush1.bf16.xpose.msra.mxu0 0
        %2904 = vmatprep.subr.bf16.mxu0 0
        %2905 = vmatpush1.bf16.xpose.msra.mxu0 0
        %2906 = vmatprep.subr.bf16.mxu0 0
        %2907 = vmatpush1.bf16.xpose.msra.mxu0 0
        %2908 = vmatprep.subr.bf16.mxu0 0
        %2909 = vmatpush1.bf16.xpose.msra.mxu0 0
        %2910 = vmatprep.subr.bf16.mxu0 0
        %2911 = vmatpush1.bf16.xpose.msra.mxu0 0
        %2912 = vmatprep.mubr.bf16.mxu0 0
        %2913 = vmatmul.mubr.bf16.gmra.mrb[0].mxu0 %v2875
        %v2914 = vpop.f32.mrb[0].mxu0
        %v2915 = vadd.f32 0.0, %v2914
        %v2916 = vpop.f32.mrb[0].mxu0
        %v2917 = vpop.f32.mrb[0].mxu0
        %v2918 = vpop.f32.mrb[0].mxu0
        %2919 = vdwg.mxu0
        %2920 = vrot.lane.b32.xlu0 %v945, 16
        %v2921 = vpop.permute.xlu0 %2920
        %2922 = vrot.lane.b32.xlu0 %v951, 16
        %v2923 = vpop.permute.xlu0 %2922
        %v2925 = vsel %vm958, %v2921, 0
        %v2928 = vsel %vm958, %v2923, 0
        %2930 = vmatprep.subr.bf16.mxu0 0
        %2931 = vmatpush1.bf16.xpose.msra.mxu0 %v2928
        %2932 = vmatprep.subr.bf16.mxu0 0
        %2933 = vmatpush1.bf16.xpose.msra.mxu0 0
        %2934 = vmatprep.subr.bf16.mxu0 0
        %2935 = vmatpush1.bf16.xpose.msra.mxu0 0
        %2936 = vmatprep.subr.bf16.mxu0 0
        %2937 = vmatpush1.bf16.xpose.msra.mxu0 0
        %2938 = vmatprep.subr.bf16.mxu0 0
        %2939 = vmatpush1.bf16.xpose.msra.mxu0 0
        %2940 = vmatprep.subr.bf16.mxu0 0
        %2941 = vmatpush1.bf16.xpose.msra.mxu0 0
        %2942 = vmatprep.subr.bf16.mxu0 0
        %2943 = vmatpush1.bf16.xpose.msra.mxu0 0
        %2944 = vmatprep.subr.bf16.mxu0 0
        %2945 = vmatpush1.bf16.xpose.msra.mxu0 0
        %2946 = vmatprep.subr.bf16.mxu0 0
        %2947 = vmatpush1.bf16.xpose.msra.mxu0 0
        %2948 = vmatprep.subr.bf16.mxu0 0
        %2949 = vmatpush1.bf16.xpose.msra.mxu0 0
        %2950 = vmatprep.subr.bf16.mxu0 0
        %2951 = vmatpush1.bf16.xpose.msra.mxu0 0
        %2952 = vmatprep.subr.bf16.mxu0 0
        %2953 = vmatpush1.bf16.xpose.msra.mxu0 0
        %2954 = vmatprep.subr.bf16.mxu0 0
        %2955 = vmatpush1.bf16.xpose.msra.mxu0 0
        %2956 = vmatprep.subr.bf16.mxu0 0
        %2957 = vmatpush1.bf16.xpose.msra.mxu0 0
        %2958 = vmatprep.subr.bf16.mxu0 0
        %2959 = vmatpush1.bf16.xpose.msra.mxu0 0
        %2960 = vmatprep.subr.bf16.mxu0 0
        %2961 = vmatpush1.bf16.xpose.msra.mxu0 0
        %2962 = vmatprep.mubr.bf16.mxu0 0
        %2963 = vmatmul.mubr.bf16.gmra.mrb[0].mxu0 %v2925
        %v2964 = vpop.f32.mrb[0].mxu0
        %v2965 = vadd.f32 0.0, %v2964
        %v2966 = vpop.f32.mrb[0].mxu0
        %v2967 = vpop.f32.mrb[0].mxu0
        %v2968 = vpop.f32.mrb[0].mxu0
        %2969 = vdwg.mxu0
        %v2970 = vmul.f32 %v2915, 0.25
        %v2971 = vmul.f32 %v2965, 0.25
        %v2972 = vsel %vm1053, %v2970, -inf
        %2973 = vmax.xlane.f32.xlu0 %v2972
        %v2974 = vpop.xlane.xlu0 %2973
        %v2975 = vsel %vm1053, %v2971, -inf
        %2976 = vmax.xlane.f32.xlu0 %v2975
        %v2977 = vpop.xlane.xlu0 %2976
        %v2978 = vsub.f32 %v2970, %v2974
        %v2979 = vsub.f32 %v2971, %v2977
        %v2980 = vmul.f32 %v2978, 1.442695
        %v2981 = vpow.pop %v2980
        %v2982 = vmul.f32 %v2979, 1.442695
        %v2983 = vpow.pop %v2982
        %v2984 = vsel %vm1053, %v2981, 0.0
        %2985 = vadd.xlane.f32.xlu0 %v2984
        %v2986 = vpop.xlane.xlu0 %2985
        %v2987 = vsel %vm1053, %v2983, 0.0
        %2988 = vadd.xlane.f32.xlu0 %v2987
        %v2989 = vpop.xlane.xlu0 %2988
        %v2990 = vrcp.pop %v2986
        %v2991 = vrcp.pop %v2989
        %v2992 = vmul.f32 %v2981, %v2990
        %v2993 = vmul.f32 %v2983, %v2991
        %v2994 = vpack.c.bf16 %v2992, %v2992
        %v2995 = vpack.c.bf16 %v2993, %v2993
        %2996 = vrot.lane.b32.xlu0 %v956, 16
        %v2997 = vpop.permute.xlu0 %2996
        %v2999 = vsel %vm1053, %v2994, 0
        %v3002 = vsel %vm1081, %v2997, 0
        %3004 = vmatprep.subr.bf16.mxu0 0
        %3005 = vmatpush1.bf16.msra.mxu0 %v3002
        %3006 = vmatprep.subr.bf16.mxu0 0
        %3007 = vmatpush1.bf16.msra.mxu0 0
        %3008 = vmatprep.subr.bf16.mxu0 0
        %3009 = vmatpush1.bf16.msra.mxu0 0
        %3010 = vmatprep.subr.bf16.mxu0 0
        %3011 = vmatpush1.bf16.msra.mxu0 0
        %3012 = vmatprep.subr.bf16.mxu0 0
        %3013 = vmatpush1.bf16.msra.mxu0 0
        %3014 = vmatprep.subr.bf16.mxu0 0
        %3015 = vmatpush1.bf16.msra.mxu0 0
        %3016 = vmatprep.subr.bf16.mxu0 0
        %3017 = vmatpush1.bf16.msra.mxu0 0
        %3018 = vmatprep.subr.bf16.mxu0 0
        %3019 = vmatpush1.bf16.msra.mxu0 0
        %3020 = vmatprep.subr.bf16.mxu0 0
        %3021 = vmatpush1.bf16.msra.mxu0 0
        %3022 = vmatprep.subr.bf16.mxu0 0
        %3023 = vmatpush1.bf16.msra.mxu0 0
        %3024 = vmatprep.subr.bf16.mxu0 0
        %3025 = vmatpush1.bf16.msra.mxu0 0
        %3026 = vmatprep.subr.bf16.mxu0 0
        %3027 = vmatpush1.bf16.msra.mxu0 0
        %3028 = vmatprep.subr.bf16.mxu0 0
        %3029 = vmatpush1.bf16.msra.mxu0 0
        %3030 = vmatprep.subr.bf16.mxu0 0
        %3031 = vmatpush1.bf16.msra.mxu0 0
        %3032 = vmatprep.subr.bf16.mxu0 0
        %3033 = vmatpush1.bf16.msra.mxu0 0
        %3034 = vmatprep.subr.bf16.mxu0 0
        %3035 = vmatpush1.bf16.msra.mxu0 0
        %3036 = vmatprep.mubr.bf16.mxu0 0
        %3037 = vmatmul.mubr.bf16.gmra.mrb[0].mxu0 %v2999
        %v3038 = vpop.f32.mrb[0].mxu0
        %v3039 = vadd.f32 0.0, %v3038
        %v3040 = vpop.f32.mrb[0].mxu0
        %v3041 = vpop.f32.mrb[0].mxu0
        %v3042 = vpop.f32.mrb[0].mxu0
        %3043 = vdwg.mxu0
        %3044 = vrot.lane.b32.xlu0 %v957, 16
        %v3045 = vpop.permute.xlu0 %3044
        %v3047 = vsel %vm1053, %v2995, 0
        %v3050 = vsel %vm1081, %v3045, 0
        %3052 = vmatprep.subr.bf16.mxu0 0
        %3053 = vmatpush1.bf16.msra.mxu0 %v3050
        %3054 = vmatprep.subr.bf16.mxu0 0
        %3055 = vmatpush1.bf16.msra.mxu0 0
        %3056 = vmatprep.subr.bf16.mxu0 0
        %3057 = vmatpush1.bf16.msra.mxu0 0
        %3058 = vmatprep.subr.bf16.mxu0 0
        %3059 = vmatpush1.bf16.msra.mxu0 0
        %3060 = vmatprep.subr.bf16.mxu0 0
        %3061 = vmatpush1.bf16.msra.mxu0 0
        %3062 = vmatprep.subr.bf16.mxu0 0
        %3063 = vmatpush1.bf16.msra.mxu0 0
        %3064 = vmatprep.subr.bf16.mxu0 0
        %3065 = vmatpush1.bf16.msra.mxu0 0
        %3066 = vmatprep.subr.bf16.mxu0 0
        %3067 = vmatpush1.bf16.msra.mxu0 0
        %3068 = vmatprep.subr.bf16.mxu0 0
        %3069 = vmatpush1.bf16.msra.mxu0 0
        %3070 = vmatprep.subr.bf16.mxu0 0
        %3071 = vmatpush1.bf16.msra.mxu0 0
        %3072 = vmatprep.subr.bf16.mxu0 0
        %3073 = vmatpush1.bf16.msra.mxu0 0
        %3074 = vmatprep.subr.bf16.mxu0 0
        %3075 = vmatpush1.bf16.msra.mxu0 0
        %3076 = vmatprep.subr.bf16.mxu0 0
        %3077 = vmatpush1.bf16.msra.mxu0 0
        %3078 = vmatprep.subr.bf16.mxu0 0
        %3079 = vmatpush1.bf16.msra.mxu0 0
        %3080 = vmatprep.subr.bf16.mxu0 0
        %3081 = vmatpush1.bf16.msra.mxu0 0
        %3082 = vmatprep.subr.bf16.mxu0 0
        %3083 = vmatpush1.bf16.msra.mxu0 0
        %3084 = vmatprep.mubr.bf16.mxu0 0
        %3085 = vmatmul.mubr.bf16.gmra.mrb[0].mxu0 %v3047
        %v3086 = vpop.f32.mrb[0].mxu0
        %v3087 = vadd.f32 0.0, %v3086
        %v3088 = vpop.f32.mrb[0].mxu0
        %v3089 = vpop.f32.mrb[0].mxu0
        %v3090 = vpop.f32.mrb[0].mxu0
        %3091 = vdwg.mxu0
        %v3092 = vpack.c.bf16 %v3087, %v3039
        %v3095 = vunpack.c.l.b16 %v659
        %v3096 = vunpack.c.l.b16 %v660
        %v3097 = vpack.c.b16 %v3096, %v3095
        %v3100 = vsel %vm958, %v3092, 0
        %3102 = vmatprep.subr.bf16.mxu0 0
        %3103 = vmatpush1.bf16.msra.mxu0 %v3097
        %3104 = vmatprep.subr.bf16.mxu0 0
        %3105 = vmatpush1.bf16.msra.mxu0 0
        %3106 = vmatprep.subr.bf16.mxu0 0
        %3107 = vmatpush1.bf16.msra.mxu0 0
        %3108 = vmatprep.subr.bf16.mxu0 0
        %3109 = vmatpush1.bf16.msra.mxu0 0
        %3110 = vmatprep.subr.bf16.mxu0 0
        %3111 = vmatpush1.bf16.msra.mxu0 0
        %3112 = vmatprep.subr.bf16.mxu0 0
        %3113 = vmatpush1.bf16.msra.mxu0 0
        %3114 = vmatprep.subr.bf16.mxu0 0
        %3115 = vmatpush1.bf16.msra.mxu0 0
        %3116 = vmatprep.subr.bf16.mxu0 0
        %3117 = vmatpush1.bf16.msra.mxu0 0
        %3118 = vmatprep.subr.bf16.mxu0 0
        %3119 = vmatpush1.bf16.msra.mxu0 0
        %3120 = vmatprep.subr.bf16.mxu0 0
        %3121 = vmatpush1.bf16.msra.mxu0 0
        %3122 = vmatprep.subr.bf16.mxu0 0
        %3123 = vmatpush1.bf16.msra.mxu0 0
        %3124 = vmatprep.subr.bf16.mxu0 0
        %3125 = vmatpush1.bf16.msra.mxu0 0
        %3126 = vmatprep.subr.bf16.mxu0 0
        %3127 = vmatpush1.bf16.msra.mxu0 0
        %3128 = vmatprep.subr.bf16.mxu0 0
        %3129 = vmatpush1.bf16.msra.mxu0 0
        %3130 = vmatprep.subr.bf16.mxu0 0
        %3131 = vmatpush1.bf16.msra.mxu0 0
        %3132 = vmatprep.subr.bf16.mxu0 0
        %3133 = vmatpush1.bf16.msra.mxu0 0
        %3134 = vmatprep.mubr.bf16.mxu0 0
        %3135 = vmatmul.mubr.bf16.gmra.mrb[0].mxu0 %v3100
        %v3136 = vpop.f32.mrb[0].mxu0
        %v3137 = vadd.f32 0.0, %v3136
        %v3138 = vpop.f32.mrb[0].mxu0
        %v3139 = vpop.f32.mrb[0].mxu0
        %v3140 = vadd.f32 0.0, %v3139
        %v3141 = vpop.f32.mrb[0].mxu0
        %3142 = vdwg.mxu0
        %v3143 = vadd.f32 %v2868, %v3137
        %v3144 = vadd.f32 %v2869, %v3140
        %v3145 = vlaneseq
        %v3146 = vshrl.u32 %v3145, 7
        %v3147 = vsub.s32 3, %v3146
        %v3148 = vrot.slane %v611, %v3147
        %v3149 = vadd.f32 %v3143, %v3148
        %v3150 = vadd.f32 %v3144, %v3148
        %v3151 = vadd.f32 %v609, %v3149
        %v3152 = vadd.f32 %v610, %v3150
        %3153 = vadd.xlane.f32.xlu0 %v3151
        %v3154 = vpop.xlane.xlu0 %3153
        %3155 = vadd.xlane.f32.xlu0 %v3152
        %v3156 = vpop.xlane.xlu0 %3155
        %v3157 = vrcp.pop 128.0
        %v3158 = vmul.f32 %v3154, %v3157
        %v3159 = vmul.f32 %v3156, %v3157
        %v3160 = vsub.f32 %v3151, %v3158
        %v3161 = vsub.f32 %v3152, %v3159
        %v3162 = vmul.f32 %v3160, %v3160
        %v3163 = vmul.f32 %v3161, %v3161
        %3164 = vadd.xlane.f32.xlu0 %v3162
        %v3165 = vpop.xlane.xlu0 %3164
        %3166 = vadd.xlane.f32.xlu0 %v3163
        %v3167 = vpop.xlane.xlu0 %3166
        %v3168 = vmul.f32 %v3165, %v3157
        %v3169 = vmul.f32 %v3167, %v3157
        %v3170 = vadd.f32 %v3168, 1e-05
        %v3171 = vadd.f32 %v3169, 1e-05
        %v3172 = vrsqrt.pop %v3170
        %v3173 = vrsqrt.pop %v3171
        %v3174 = vmul.f32 %v3160, %v3172
        %v3175 = vmul.f32 %v3161, %v3173
        %v3176 = vlaneseq
        %v3177 = vshrl.u32 %v3176, 7
        %v3178 = vsub.s32 4, %v3177
        %v3179 = vrot.slane %v611, %v3178
        %v3180 = vmul.f32 %v3174, %v3179
        %v3181 = vmul.f32 %v3175, %v3179
        %v3182 = vlaneseq
        %v3183 = vshrl.u32 %v3182, 7
        %v3184 = vsub.s32 5, %v3183
        %v3185 = vrot.slane %v611, %v3184
        %v3186 = vadd.f32 %v3180, %v3185
        %v3187 = vadd.f32 %v3181, %v3185
        %v3189 = vrot.slane %v611, 1
        %v3191 = vpack.c.bf16 %v3187, %v3186
        %v3192 = vlaneseq
        %v3193 = vshrl.u32 %v3192, 7
        %v3194 = vsub.s32 6, %v3193
        %v3195 = vrot.slane %v611, %v3194
        %v3196 = vlaneseq
        %v3197 = vshrl.u32 %v3196, 7
        %v3198 = vsub.s32 6, %v3197
        %v3199 = vrot.slane %v3189, %v3198
        %v3216 = vunpack.c.l.b16 %v661
        %v3217 = vunpack.c.h.b16 %v661
        %v3218 = vunpack.c.l.b16 %v662
        %v3219 = vunpack.c.h.b16 %v662
        %v3220 = vunpack.c.l.b16 %v663
        %v3221 = vunpack.c.h.b16 %v663
        %v3222 = vunpack.c.l.b16 %v664
        %v3223 = vunpack.c.h.b16 %v664
        %v3224 = vunpack.c.l.b16 %v665
        %v3225 = vunpack.c.h.b16 %v665
        %v3226 = vunpack.c.l.b16 %v666
        %v3227 = vunpack.c.h.b16 %v666
        %v3228 = vunpack.c.l.b16 %v667
        %v3229 = vunpack.c.h.b16 %v667
        %v3230 = vunpack.c.l.b16 %v668
        %v3231 = vunpack.c.h.b16 %v668
        %v3232 = vunpack.c.l.b16 %v669
        %v3233 = vunpack.c.h.b16 %v669
        %v3234 = vunpack.c.l.b16 %v670
        %v3235 = vunpack.c.h.b16 %v670
        %v3236 = vunpack.c.l.b16 %v671
        %v3237 = vunpack.c.h.b16 %v671
        %v3238 = vunpack.c.l.b16 %v672
        %v3239 = vunpack.c.h.b16 %v672
        %v3240 = vunpack.c.l.b16 %v673
        %v3241 = vunpack.c.h.b16 %v673
        %v3242 = vunpack.c.l.b16 %v674
        %v3243 = vunpack.c.h.b16 %v674
        %v3244 = vunpack.c.l.b16 %v675
        %v3245 = vunpack.c.h.b16 %v675
        %v3246 = vunpack.c.l.b16 %v676
        %v3247 = vunpack.c.h.b16 %v676
        %v3248 = vpack.c.b16 %v3218, %v3216
        %v3249 = vpack.c.b16 %v3219, %v3217
        %v3250 = vpack.c.b16 %v3222, %v3220
        %v3251 = vpack.c.b16 %v3223, %v3221
        %v3252 = vpack.c.b16 %v3226, %v3224
        %v3253 = vpack.c.b16 %v3227, %v3225
        %v3254 = vpack.c.b16 %v3230, %v3228
        %v3255 = vpack.c.b16 %v3231, %v3229
        %v3256 = vpack.c.b16 %v3234, %v3232
        %v3257 = vpack.c.b16 %v3235, %v3233
        %v3258 = vpack.c.b16 %v3238, %v3236
        %v3259 = vpack.c.b16 %v3239, %v3237
        %v3260 = vpack.c.b16 %v3242, %v3240
        %v3261 = vpack.c.b16 %v3243, %v3241
        %v3262 = vpack.c.b16 %v3246, %v3244
        %v3263 = vpack.c.b16 %v3247, %v3245
        %3280 = vmatprep.subr.bf16.mxu0 %v3249
        %3281 = vmatpush1.bf16.msra.mxu0 %v3248
        %3282 = vmatprep.subr.bf16.mxu0 %v3251
        %3283 = vmatpush1.bf16.msra.mxu0 %v3250
        %3284 = vmatprep.subr.bf16.mxu0 %v3253
        %3285 = vmatpush1.bf16.msra.mxu0 %v3252
        %3286 = vmatprep.subr.bf16.mxu0 %v3255
        %3287 = vmatpush1.bf16.msra.mxu0 %v3254
        %3288 = vmatprep.subr.bf16.mxu0 %v3257
        %3289 = vmatpush1.bf16.msra.mxu0 %v3256
        %3290 = vmatprep.subr.bf16.mxu0 %v3259
        %3291 = vmatpush1.bf16.msra.mxu0 %v3258
        %3292 = vmatprep.subr.bf16.mxu0 %v3261
        %3293 = vmatpush1.bf16.msra.mxu0 %v3260
        %3294 = vmatprep.subr.bf16.mxu0 %v3263
        %3295 = vmatpush1.bf16.msra.mxu0 %v3262
        %3296 = vmatprep.subr.bf16.mxu0 0
        %3297 = vmatpush1.bf16.msra.mxu0 0
        %3298 = vmatprep.subr.bf16.mxu0 0
        %3299 = vmatpush1.bf16.msra.mxu0 0
        %3300 = vmatprep.subr.bf16.mxu0 0
        %3301 = vmatpush1.bf16.msra.mxu0 0
        %3302 = vmatprep.subr.bf16.mxu0 0
        %3303 = vmatpush1.bf16.msra.mxu0 0
        %3304 = vmatprep.subr.bf16.mxu0 0
        %3305 = vmatpush1.bf16.msra.mxu0 0
        %3306 = vmatprep.subr.bf16.mxu0 0
        %3307 = vmatpush1.bf16.msra.mxu0 0
        %3308 = vmatprep.subr.bf16.mxu0 0
        %3309 = vmatpush1.bf16.msra.mxu0 0
        %3310 = vmatprep.subr.bf16.mxu0 0
        %3311 = vmatpush1.bf16.msra.mxu0 0
        %3312 = vmatprep.mubr.bf16.mxu0 0
        %3313 = vmatmul.mubr.bf16.gmra.mrb[0].mxu0 %v3191
        %v3314 = vpop.f32.mrb[0].mxu0
        %v3315 = vadd.f32 %v3195, %v3314
        %v3316 = vpop.f32.mrb[0].mxu0
        %v3317 = vadd.f32 %v3199, %v3316
        %v3318 = vpop.f32.mrb[0].mxu0
        %v3319 = vadd.f32 %v3195, %v3318
        %v3320 = vpop.f32.mrb[0].mxu0
        %v3321 = vadd.f32 %v3199, %v3320
        %3322 = vdwg.mxu0
        %v3323 = vmax.f32 %v3315, 0.0
        %v3324 = vmax.f32 %v3317, 0.0
        %v3325 = vmax.f32 %v3319, 0.0
        %v3326 = vmax.f32 %v3321, 0.0
        %v3327 = vpack.c.bf16 %v3325, %v3323
        %v3328 = vpack.c.bf16 %v3326, %v3324
        %v3329 = vlaneseq
        %v3330 = vshrl.u32 %v3329, 7
        %v3331 = vsub.s32 0, %v3330
        %v3332 = vrot.slane %v612, %v3331
        %v3365 = vunpack.c.l.b16 %v677
        %v3366 = vunpack.c.l.b16 %v678
        %v3367 = vunpack.c.l.b16 %v679
        %v3368 = vunpack.c.l.b16 %v680
        %v3369 = vunpack.c.l.b16 %v681
        %v3370 = vunpack.c.l.b16 %v682
        %v3371 = vunpack.c.l.b16 %v683
        %v3372 = vunpack.c.l.b16 %v684
        %v3373 = vunpack.c.l.b16 %v685
        %v3374 = vunpack.c.l.b16 %v686
        %v3375 = vunpack.c.l.b16 %v687
        %v3376 = vunpack.c.l.b16 %v688
        %v3377 = vunpack.c.l.b16 %v689
        %v3378 = vunpack.c.l.b16 %v690
        %v3379 = vunpack.c.l.b16 %v691
        %v3380 = vunpack.c.l.b16 %v692
        %v3381 = vunpack.c.l.b16 %v693
        %v3382 = vunpack.c.l.b16 %v694
        %v3383 = vunpack.c.l.b16 %v695
        %v3384 = vunpack.c.l.b16 %v696
        %v3385 = vunpack.c.l.b16 %v697
        %v3386 = vunpack.c.l.b16 %v698
        %v3387 = vunpack.c.l.b16 %v699
        %v3388 = vunpack.c.l.b16 %v700
        %v3389 = vunpack.c.l.b16 %v701
        %v3390 = vunpack.c.l.b16 %v702
        %v3391 = vunpack.c.l.b16 %v703
        %v3392 = vunpack.c.l.b16 %v704
        %v3393 = vunpack.c.l.b16 %v705
        %v3394 = vunpack.c.l.b16 %v706
        %v3395 = vunpack.c.l.b16 %v707
        %v3396 = vunpack.c.l.b16 %v708
        %v3397 = vpack.c.b16 %v3366, %v3365
        %v3398 = vpack.c.b16 %v3368, %v3367
        %v3399 = vpack.c.b16 %v3370, %v3369
        %v3400 = vpack.c.b16 %v3372, %v3371
        %v3401 = vpack.c.b16 %v3374, %v3373
        %v3402 = vpack.c.b16 %v3376, %v3375
        %v3403 = vpack.c.b16 %v3378, %v3377
        %v3404 = vpack.c.b16 %v3380, %v3379
        %v3405 = vpack.c.b16 %v3382, %v3381
        %v3406 = vpack.c.b16 %v3384, %v3383
        %v3407 = vpack.c.b16 %v3386, %v3385
        %v3408 = vpack.c.b16 %v3388, %v3387
        %v3409 = vpack.c.b16 %v3390, %v3389
        %v3410 = vpack.c.b16 %v3392, %v3391
        %v3411 = vpack.c.b16 %v3394, %v3393
        %v3412 = vpack.c.b16 %v3396, %v3395
        %3429 = vmatprep.subr.bf16.mxu0 0
        %3430 = vmatpush1.bf16.msra.mxu0 %v3397
        %3431 = vmatprep.subr.bf16.mxu0 0
        %3432 = vmatpush1.bf16.msra.mxu0 %v3398
        %3433 = vmatprep.subr.bf16.mxu0 0
        %3434 = vmatpush1.bf16.msra.mxu0 %v3399
        %3435 = vmatprep.subr.bf16.mxu0 0
        %3436 = vmatpush1.bf16.msra.mxu0 %v3400
        %3437 = vmatprep.subr.bf16.mxu0 0
        %3438 = vmatpush1.bf16.msra.mxu0 %v3401
        %3439 = vmatprep.subr.bf16.mxu0 0
        %3440 = vmatpush1.bf16.msra.mxu0 %v3402
        %3441 = vmatprep.subr.bf16.mxu0 0
        %3442 = vmatpush1.bf16.msra.mxu0 %v3403
        %3443 = vmatprep.subr.bf16.mxu0 0
        %3444 = vmatpush1.bf16.msra.mxu0 %v3404
        %3445 = vmatprep.subr.bf16.mxu0 0
        %3446 = vmatpush1.bf16.msra.mxu0 %v3405
        %3447 = vmatprep.subr.bf16.mxu0 0
        %3448 = vmatpush1.bf16.msra.mxu0 %v3406
        %3449 = vmatprep.subr.bf16.mxu0 0
        %3450 = vmatpush1.bf16.msra.mxu0 %v3407
        %3451 = vmatprep.subr.bf16.mxu0 0
        %3452 = vmatpush1.bf16.msra.mxu0 %v3408
        %3453 = vmatprep.subr.bf16.mxu0 0
        %3454 = vmatpush1.bf16.msra.mxu0 %v3409
        %3455 = vmatprep.subr.bf16.mxu0 0
        %3456 = vmatpush1.bf16.msra.mxu0 %v3410
        %3457 = vmatprep.subr.bf16.mxu0 0
        %3458 = vmatpush1.bf16.msra.mxu0 %v3411
        %3459 = vmatprep.subr.bf16.mxu0 0
        %3460 = vmatpush1.bf16.msra.mxu0 %v3412
        %3461 = vmatprep.mubr.bf16.mxu0 %v3328
        %3462 = vmatmul.mubr.bf16.gmra.mrb[0].mxu0 %v3327
        %v3463 = vpop.f32.mrb[0].mxu0
        %v3464 = vadd.f32 %v3332, %v3463
        %v3465 = vpop.f32.mrb[0].mxu0
        %v3466 = vpop.f32.mrb[0].mxu0
        %v3467 = vadd.f32 %v3332, %v3466
        %v3468 = vpop.f32.mrb[0].mxu0
        %3469 = vdwg.mxu0
        %v3470 = vadd.f32 %v3186, %v3464
        %v3471 = vadd.f32 %v3187, %v3467
        %3472 = vadd.xlane.f32.xlu0 %v3470
        %v3473 = vpop.xlane.xlu0 %3472
        %3474 = vadd.xlane.f32.xlu0 %v3471
        %v3475 = vpop.xlane.xlu0 %3474
        %v3476 = vmul.f32 %v3473, %v3157
        %v3477 = vmul.f32 %v3475, %v3157
        %v3478 = vsub.f32 %v3470, %v3476
        %v3479 = vsub.f32 %v3471, %v3477
        %v3480 = vmul.f32 %v3478, %v3478
        %v3481 = vmul.f32 %v3479, %v3479
        %3482 = vadd.xlane.f32.xlu0 %v3480
        %v3483 = vpop.xlane.xlu0 %3482
        %3484 = vadd.xlane.f32.xlu0 %v3481
        %v3485 = vpop.xlane.xlu0 %3484
        %v3486 = vmul.f32 %v3483, %v3157
        %v3487 = vmul.f32 %v3485, %v3157
        %v3488 = vadd.f32 %v3486, 1e-05
        %v3489 = vadd.f32 %v3487, 1e-05
        %v3490 = vrsqrt.pop %v3488
        %v3491 = vrsqrt.pop %v3489
        %v3492 = vmul.f32 %v3478, %v3490
        %v3493 = vmul.f32 %v3479, %v3491
        %v3494 = vlaneseq
        %v3495 = vshrl.u32 %v3494, 7
        %v3496 = vsub.s32 1, %v3495
        %v3497 = vrot.slane %v612, %v3496
        %v3498 = vmul.f32 %v3492, %v3497
        %v3499 = vmul.f32 %v3493, %v3497
        %v3500 = vlaneseq
        %v3501 = vshrl.u32 %v3500, 7
        %v3502 = vsub.s32 2, %v3501
        %v3503 = vrot.slane %v612, %v3502
        %v3504 = vadd.f32 %v3498, %v3503
        %v3505 = vadd.f32 %v3499, %v3503
        %3506 = vst [vmem:[#allocation2] sm:$0xff] %v3504
        %3507 = vst [vmem:[#allocation2 + $0x8] sm:$0xff] %v3505
        %p3508 = scmp.eq.s32.totalorder %s34, 2
        // Predicated region
        $region81: #{transformer_forecaster.1} parent=59 // pred_check
          %p3509 = pneg %p3508
        $region82: #{transformer_forecaster.1} parent=59 // pred_check_branch
          %3511 = sbr.rel (%p3509) target = $region84
        $region83: #{transformer_forecaster.1} parent=59 // pred_region
          %v3513 = vrot.slane %v3504, 7
          %v3516 = vrot.slane %v3505, 6
          %vm3518 = vcmask 1040384
          %v3519 = vsel %vm3518, %v3513, %v3516
          %v3520 = vpack.c.bf16 %v3519, %v3519
          %v3521 = vld [vmem:[#allocation9] sm:$0xf]
          %v3522 = vld [vmem:[#allocation9 + $0x4] sm:$0xf]
          %v3523 = vld [vmem:[#allocation9 + $0x8] sm:$0xf]
          %v3524 = vld [vmem:[#allocation9 + $0xc] sm:$0xf]
          %v3525 = vld [vmem:[#allocation9 + $0x10] sm:$0xf]
          %v3526 = vld [vmem:[#allocation9 + $0x14] sm:$0xf]
          %v3527 = vld [vmem:[#allocation9 + $0x18] sm:$0xf]
          %v3528 = vld [vmem:[#allocation9 + $0x1c] sm:$0xf]
          %v3529 = vld [vmem:[#allocation9 + $0x20] sm:$0xf]
          %v3530 = vld [vmem:[#allocation9 + $0x24] sm:$0xf]
          %v3531 = vld [vmem:[#allocation9 + $0x28] sm:$0xf]
          %v3532 = vld [vmem:[#allocation9 + $0x2c] sm:$0xf]
          %v3533 = vld [vmem:[#allocation9 + $0x30] sm:$0xf]
          %v3534 = vld [vmem:[#allocation9 + $0x34] sm:$0xf]
          %v3535 = vld [vmem:[#allocation9 + $0x38] sm:$0xf]
          %v3536 = vld [vmem:[#allocation9 + $0x3c] sm:$0xf]
          %v3537 = vlaneseq
          %v3538 = vshrl.u32 %v3537, 7
          %v3539 = vsub.s32 1, %v3538
          %v3540 = vrot.slane %v538, %v3539
          %v3557 = vunpack.c.l.b16 %v3521
          %v3558 = vunpack.c.l.b16 %v3522
          %v3559 = vunpack.c.l.b16 %v3523
          %v3560 = vunpack.c.l.b16 %v3524
          %v3561 = vunpack.c.l.b16 %v3525
          %v3562 = vunpack.c.l.b16 %v3526
          %v3563 = vunpack.c.l.b16 %v3527
          %v3564 = vunpack.c.l.b16 %v3528
          %v3565 = vunpack.c.l.b16 %v3529
          %v3566 = vunpack.c.l.b16 %v3530
          %v3567 = vunpack.c.l.b16 %v3531
          %v3568 = vunpack.c.l.b16 %v3532
          %v3569 = vunpack.c.l.b16 %v3533
          %v3570 = vunpack.c.l.b16 %v3534
          %v3571 = vunpack.c.l.b16 %v3535
          %v3572 = vunpack.c.l.b16 %v3536
          %v3573 = vpack.c.b16 %v3558, %v3557
          %v3574 = vpack.c.b16 %v3560, %v3559
          %v3575 = vpack.c.b16 %v3562, %v3561
          %v3576 = vpack.c.b16 %v3564, %v3563
          %v3577 = vpack.c.b16 %v3566, %v3565
          %v3578 = vpack.c.b16 %v3568, %v3567
          %v3579 = vpack.c.b16 %v3570, %v3569
          %v3580 = vpack.c.b16 %v3572, %v3571
          %3589 = vmatprep.subr.bf16.mxu0 0
          %3590 = vmatpush1.bf16.msra.mxu0 %v3573
          %3591 = vmatprep.subr.bf16.mxu0 0
          %3592 = vmatpush1.bf16.msra.mxu0 %v3574
          %3593 = vmatprep.subr.bf16.mxu0 0
          %3594 = vmatpush1.bf16.msra.mxu0 %v3575
          %3595 = vmatprep.subr.bf16.mxu0 0
          %3596 = vmatpush1.bf16.msra.mxu0 %v3576
          %3597 = vmatprep.subr.bf16.mxu0 0
          %3598 = vmatpush1.bf16.msra.mxu0 %v3577
          %3599 = vmatprep.subr.bf16.mxu0 0
          %3600 = vmatpush1.bf16.msra.mxu0 %v3578
          %3601 = vmatprep.subr.bf16.mxu0 0
          %3602 = vmatpush1.bf16.msra.mxu0 %v3579
          %3603 = vmatprep.subr.bf16.mxu0 0
          %3604 = vmatpush1.bf16.msra.mxu0 %v3580
          %3605 = vmatprep.subr.bf16.mxu0 0
          %3606 = vmatpush1.bf16.msra.mxu0 0
          %3607 = vmatprep.subr.bf16.mxu0 0
          %3608 = vmatpush1.bf16.msra.mxu0 0
          %3609 = vmatprep.subr.bf16.mxu0 0
          %3610 = vmatpush1.bf16.msra.mxu0 0
          %3611 = vmatprep.subr.bf16.mxu0 0
          %3612 = vmatpush1.bf16.msra.mxu0 0
          %3613 = vmatprep.subr.bf16.mxu0 0
          %3614 = vmatpush1.bf16.msra.mxu0 0
          %3615 = vmatprep.subr.bf16.mxu0 0
          %3616 = vmatpush1.bf16.msra.mxu0 0
          %3617 = vmatprep.subr.bf16.mxu0 0
          %3618 = vmatpush1.bf16.msra.mxu0 0
          %3619 = vmatprep.subr.bf16.mxu0 0
          %3620 = vmatpush1.bf16.msra.mxu0 0
          %3621 = vmatprep.mubr.bf16.mxu0 0
          %3622 = vmatmul.mubr.bf16.gmra.mrb[0].mxu0 %v3520
          %v3623 = vpop.f32.mrb[0].mxu0
          %v3624 = vadd.f32 %v3540, %v3623
          %v3625 = vpop.f32.mrb[0].mxu0
          %v3626 = vpop.f32.mrb[0].mxu0
          %v3627 = vpop.f32.mrb[0].mxu0
          %3628 = vdwg.mxu0
          %v3629 = vmax.f32 %v3624, 0.0
          %v3630 = vpack.c.bf16 %v3629, %v3629
          %v3631 = vld [vmem:[%s8] sm:$0xf]
          %v3632 = vld [vmem:[%s8 + $0x4] sm:$0xf]
          %v3633 = vld [vmem:[%s8 + $0x8] sm:$0xf]
          %v3634 = vld [vmem:[%s8 + $0xc] sm:$0xf]
          %v3635 = vld [vmem:[%s8 + $0x10] sm:$0xf]
          %v3636 = vld [vmem:[%s8 + $0x14] sm:$0xf]
          %v3637 = vld [vmem:[%s8 + $0x18] sm:$0xf]
          %v3638 = vld [vmem:[%s8 + $0x1c] sm:$0xf]
          %v3639 = vld [vmem:[%s8 + $0x20] sm:$0xf]
          %v3640 = vld [vmem:[%s8 + $0x24] sm:$0xf]
          %v3641 = vld [vmem:[%s8 + $0x28] sm:$0xf]
          %v3642 = vld [vmem:[%s8 + $0x2c] sm:$0xf]
          %v3643 = vld [vmem:[%s8 + $0x30] sm:$0xf]
          %v3644 = vld [vmem:[%s8 + $0x34] sm:$0xf]
          %v3645 = vld [vmem:[%s8 + $0x38] sm:$0xf]
          %v3646 = vld [vmem:[%s8 + $0x3c] sm:$0xf]
          %v3647 = vlaneseq
          %v3648 = vshrl.u32 %v3647, 7
          %v3649 = vsub.s32 2, %v3648
          %v3650 = vrot.slane %v538, %v3649
          %v3667 = vunpack.c.l.b16 %v3631
          %v3668 = vunpack.c.l.b16 %v3632
          %v3669 = vunpack.c.l.b16 %v3633
          %v3670 = vunpack.c.l.b16 %v3634
          %v3671 = vunpack.c.l.b16 %v3635
          %v3672 = vunpack.c.l.b16 %v3636
          %v3673 = vunpack.c.l.b16 %v3637
          %v3674 = vunpack.c.l.b16 %v3638
          %v3675 = vunpack.c.l.b16 %v3639
          %v3676 = vunpack.c.l.b16 %v3640
          %v3677 = vunpack.c.l.b16 %v3641
          %v3678 = vunpack.c.l.b16 %v3642
          %v3679 = vunpack.c.l.b16 %v3643
          %v3680 = vunpack.c.l.b16 %v3644
          %v3681 = vunpack.c.l.b16 %v3645
          %v3682 = vunpack.c.l.b16 %v3646
          %v3683 = vpack.c.b16 %v3668, %v3667
          %v3684 = vpack.c.b16 %v3670, %v3669
          %v3685 = vpack.c.b16 %v3672, %v3671
          %v3686 = vpack.c.b16 %v3674, %v3673
          %v3687 = vpack.c.b16 %v3676, %v3675
          %v3688 = vpack.c.b16 %v3678, %v3677
          %v3689 = vpack.c.b16 %v3680, %v3679
          %v3690 = vpack.c.b16 %v3682, %v3681
          %3699 = vmatprep.subr.bf16.mxu0 0
          %3700 = vmatpush1.bf16.msra.mxu0 %v3683
          %3701 = vmatprep.subr.bf16.mxu0 0
          %3702 = vmatpush1.bf16.msra.mxu0 %v3684
          %3703 = vmatprep.subr.bf16.mxu0 0
          %3704 = vmatpush1.bf16.msra.mxu0 %v3685
          %3705 = vmatprep.subr.bf16.mxu0 0
          %3706 = vmatpush1.bf16.msra.mxu0 %v3686
          %3707 = vmatprep.subr.bf16.mxu0 0
          %3708 = vmatpush1.bf16.msra.mxu0 %v3687
          %3709 = vmatprep.subr.bf16.mxu0 0
          %3710 = vmatpush1.bf16.msra.mxu0 %v3688
          %3711 = vmatprep.subr.bf16.mxu0 0
          %3712 = vmatpush1.bf16.msra.mxu0 %v3689
          %3713 = vmatprep.subr.bf16.mxu0 0
          %3714 = vmatpush1.bf16.msra.mxu0 %v3690
          %3715 = vmatprep.subr.bf16.mxu0 0
          %3716 = vmatpush1.bf16.msra.mxu0 0
          %3717 = vmatprep.subr.bf16.mxu0 0
          %3718 = vmatpush1.bf16.msra.mxu0 0
          %3719 = vmatprep.subr.bf16.mxu0 0
          %3720 = vmatpush1.bf16.msra.mxu0 0
          %3721 = vmatprep.subr.bf16.mxu0 0
          %3722 = vmatpush1.bf16.msra.mxu0 0
          %3723 = vmatprep.subr.bf16.mxu0 0
          %3724 = vmatpush1.bf16.msra.mxu0 0
          %3725 = vmatprep.subr.bf16.mxu0 0
          %3726 = vmatpush1.bf16.msra.mxu0 0
          %3727 = vmatprep.subr.bf16.mxu0 0
          %3728 = vmatpush1.bf16.msra.mxu0 0
          %3729 = vmatprep.subr.bf16.mxu0 0
          %3730 = vmatpush1.bf16.msra.mxu0 0
          %3731 = vmatprep.mubr.bf16.mxu0 0
          %3732 = vmatmul.mubr.bf16.gmra.mrb[0].mxu0 %v3630
          %v3733 = vpop.f32.mrb[0].mxu0
          %v3734 = vadd.f32 %v3650, %v3733
          %v3735 = vpop.f32.mrb[0].mxu0
          %v3736 = vpop.f32.mrb[0].mxu0
          %v3737 = vpop.f32.mrb[0].mxu0
          %3738 = vdwg.mxu0
          %vm3739 = vcmask 25600
          %3740 = vst.msk [vmem:[#allocation11] sm:$0x3] %vm3739, %v3734
        $region84: #{transformer_forecaster.1} parent=59 // pred_fallthru
          _
        // Predicated region
        $region85: #{transformer_forecaster.1} parent=59 // pred_check
          %p3741 = pneg %p299
        $region86: #{transformer_forecaster.1} parent=59 // pred_check_branch
          %3743 = sbr.rel (%p3741) target = $region88
        $region87: #{transformer_forecaster.1} parent=59 // pred_region
          %s3745 = ssub.s32 32, 32
          %3746 = vsyncadd [#allocation5], %s3745
          %s3747 = smul.addr %s33, 32
          %s3748 = scalar_lea.hbm %s10, %s3747
          %s3750 = sshll.u32 [#allocation11], 4
          %s3751 = int_to_ptr.vmem [resolvable:$true] %s3750
          %3753 = dma.vmem_to_hbm [thread:$0]  %s3751, 32, %s3748, [#allocation5]
        $region88: #{transformer_forecaster.1} parent=59 // pred_fallthru
          _
        // Predicated region
        $region89: #{transformer_forecaster.1} parent=59 // pred_check
          %p3754 = pneg %p299
        $region90: #{transformer_forecaster.1} parent=59 // pred_check_branch
          %3756 = sbr.rel (%p3754) target = $region92
        $region91: #{transformer_forecaster.1} parent=59 // pred_region
          %3757 = dma.done [#allocation5], 32
        $region92: #{transformer_forecaster.1} parent=59 // pred_fallthru
          _
      $region60: #{transformer_forecaster.1} parent=5 // pred_fallthru
        _
      %p3758 = scmp.le.s32.totalorder 2, %s24
      // Predicated region
      $region93: #{transformer_forecaster.1} parent=5 // pred_check
        %p3759 = pneg %p3758
      $region94: #{transformer_forecaster.1} parent=5 // pred_check_branch
        %3761 = sbr.rel (%p3759) target = $region96
      $region95: #{transformer_forecaster.1} parent=5 // pred_region
        %s3762 = ssub.s32 %s24, 2
      $region96: #{transformer_forecaster.1} parent=5 // pred_fallthru
        _
    $region6: #{transformer_forecaster.1} parent=1 // loop_footer
      %s28 = sadd.s32 1, %s24
    $region7: #{transformer_forecaster.1} parent=1 // loop_footer_branch
      %23 = sbr.rel target = $region3
    $region8: #{transformer_forecaster.1} parent=1 // loop_exit
      _
    %3763 = vsyncpa [#allocation4], 1
    %s3764 = scalar_lea.sflag [#allocation4], 1
    %3765 = vsyncpa %s3764, 1
    %3766 = vsyncpa [#allocation7], 1
    %s3767 = scalar_lea.sflag [#allocation7], 1
    %3768 = vsyncpa %s3767, 1
    %3769 = vsyncpa [#allocation10], 1
    %3770 = vsyncpa [#allocation5], 1
    %s3771 = scalar_lea.sflag [#allocation5], 1
    %3772 = vsyncpa %s3771, 1

</llo_original>
